<compile_context>
chip_gen: v7x
topology: tpu7x:2x2x1
jax: 0.10.0
libtpu: 0.0.40
codegen_flags: <defaults>
</compile_context>

<pallas_src>
import jax
import jax.numpy as jnp
from jax.experimental import pallas as pl
from jax.experimental.pallas import tpu as pltpu


def _boundary_refine_kernel(x_ref, scale_ref, shift_ref, w1_ref, b1_ref,
                            w2_ref, b2_ref, o_ref, act_ref, mid_ref):
    """One (image, row-tile) grid step.

    x_ref   : (TH+4, W+2, Cp)  raw-x slab: rows [t*TH-2, t*TH+TH+2), cols [-1, W+1),
                               channels zero-padded to Cp; zeros outside the image.
    o_ref   : (TH, W, Cp)      output tile.
    act_ref : (TH+4, W+2, Cp)  scratch: zero-padded relu(bn(x)).
    mid_ref : (TH+2, W+2, Cp)  scratch: zero-padded conv1 output (+bias).
    """
    th4, wp2, cp = act_ref.shape
    th = th4 - 4
    w = wp2 - 2
    t = pl.program_id(1)
    last_t = pl.num_programs(1) - 1
    cdt = w1_ref.dtype                       # matmul input dtype (f32 or bf16)

    x = x_ref[...]                           # raw x (pre-BN) == residual source
    scale = scale_ref[...].reshape(1, 1, cp)
    shift = shift_ref[...].reshape(1, 1, cp)

    # ---- folded BatchNorm (affine) + ReLU into the padded scratch -------------
    act_ref[...] = jnp.maximum(x * scale + shift, 0.0)
    # conv "same" padding must be exact zeros (not relu(shift)): re-zero the
    # out-of-image border of the activation.
    zcol = jnp.zeros((th4, 1, cp), jnp.float32)
    act_ref[:, 0:1, :] = zcol                          # col -1
    act_ref[:, w + 1:w + 2, :] = zcol                  # col W

    @pl.when(t == 0)
    def _():                                           # rows -2, -1 (image top)
        act_ref[0:2, :, :] = jnp.zeros((2, wp2, cp), jnp.float32)

    @pl.when(t == last_t)
    def _():                                           # rows H, H+1 (image bottom)
        act_ref[th + 2:th + 4, :, :] = jnp.zeros((2, wp2, cp), jnp.float32)

    # ---- conv1: 9 tap-wise matmuls, accumulated in f32 (no im2col) ------------
    rows1 = th + 2                                     # TH rows + 1-row halo each side
    acc1 = jnp.zeros((rows1 * w, cp), jnp.float32)
    for ky in range(3):
        for kx in range(3):
            tap = act_ref[ky:ky + rows1, kx:kx + w, :].reshape(rows1 * w, cp)
            acc1 = acc1 + jnp.dot(tap.astype(cdt), w1_ref[ky * 3 + kx],
                                  preferred_element_type=jnp.float32)
    acc1 = acc1 + b1_ref[...]                          # (1, Cp) broadcast
    mid_ref[:, 1:w + 1, :] = acc1.reshape(rows1, w, cp)
    # conv2's zero padding: out-of-image cols / rows of the conv1 output.
    zcol2 = jnp.zeros((rows1, 1, cp), jnp.float32)
    mid_ref[:, 0:1, :] = zcol2
    mid_ref[:, w + 1:w + 2, :] = zcol2

    @pl.when(t == 0)
    def _():
        mid_ref[0:1, :, :] = jnp.zeros((1, wp2, cp), jnp.float32)

    @pl.when(t == last_t)
    def _():
        mid_ref[th + 1:th + 2, :, :] = jnp.zeros((1, wp2, cp), jnp.float32)

    # ---- conv2: 9 tap-wise matmuls --------------------------------------------
    acc2 = jnp.zeros((th * w, cp), jnp.float32)
    for ky in range(3):
        for kx in range(3):
            tap = mid_ref[ky:ky + th, kx:kx + w, :].reshape(th * w, cp)
            acc2 = acc2 + jnp.dot(tap.astype(cdt), w2_ref[ky * 3 + kx],
                                  preferred_element_type=jnp.float32)
    acc2 = acc2 + b2_ref[...]

    # ---- residual add (pre-BN x) + lane-dense full-block store ----------------
    residual = x_ref[2:th + 2, 1:w + 1, :]
    o_ref[...] = (residual + acc2.reshape(th, w, cp)).astype(o_ref.dtype)


def _largest_divisor_leq(n, cap):
    best = 1
    for d in range(1, n + 1):
        if n % d == 0 and d <= cap:
            best = d
    return best


def boundary_refine_forward(x_nchw, gamma, beta, w1, b1, w2, b2, *,
                            eps=1e-5, row_tile=None, matmul_dtype=jnp.float32):
    """boundary_refine forward (NCHW in/out). Conv weights are PyTorch OIHW.

    matmul_dtype=jnp.bfloat16 is recommended on v6e/v7x for C >= ~64
    (bf16 MXU inputs, f32 accumulate).
    """
    N, C, H, W = x_nchw.shape
    x = jnp.transpose(x_nchw, (0, 2, 3, 1)).astype(jnp.float32)    # NHWC

    # training-mode BatchNorm2d: batch mean / biased variance -> per-channel affine
    mean = jnp.mean(x, axis=(0, 1, 2))
    var = jnp.mean((x - mean) ** 2, axis=(0, 1, 2))
    scale = gamma / jnp.sqrt(var + eps)
    shift = beta - mean * scale

    # ---- lane-dense channel padding (C -> multiple of 128) ---------------------
    cp = ((C + 127) // 128) * 128
    pad_c = cp - C

    # ---- spatial row tiling -----------------------------------------------------
    if row_tile is None:
        # keep the (TH+4, W+2, Cp) activation scratch around ~2 MiB, cap 128 rows
        budget_rows = max(8, (2 * 1024 * 1024) // ((W + 2) * cp * 4))
        row_tile = _largest_divisor_leq(H, min(128, budget_rows))
    assert H % row_tile == 0, "row_tile must divide H"
    th = row_tile
    n_tiles = H // th

    # ---- haloed, zero-padded input slabs in HBM (2-row halo for 2 stacked 3x3) --
    xp = jnp.pad(x, ((0, 0), (2, 2), (1, 1), (0, pad_c)))          # (N, H+4, W+2, Cp)
    slabs = jnp.stack([xp[:, t * th:t * th + th + 4] for t in range(n_tiles)],
                      axis=1)                                      # (N, nT, TH+4, W+2, Cp)

    # ---- per-tap conv weights: (9, Cp, Cp) with rows=cin, cols=cout -------------
    def tapify(w_oihw):
        wt = jnp.transpose(w_oihw, (2, 3, 1, 0)).reshape(9, C, C)  # (ky*3+kx, cin, cout)
        return jnp.pad(wt, ((0, 0), (0, pad_c), (0, pad_c))).astype(matmul_dtype)

    w1_t, w2_t = tapify(w1), tapify(w2)

    def pad_vec(v):
        return jnp.pad(v.astype(jnp.float32), (0, pad_c)).reshape(1, cp)

    scale_p, shift_p = pad_vec(scale), pad_vec(shift)
    b1_p, b2_p = pad_vec(b1), pad_vec(b2)

    # ---- VMEM budget / scheduler hints ------------------------------------------
    wbytes = jnp.dtype(matmul_dtype).itemsize
    vmem_est = 4 * (2 * (th + 4) * (W + 2) * cp        # input slab (double-buffered)
                    + 2 * th * W * cp                  # output tile (double-buffered)
                    + (th + 4) * (W + 2) * cp          # act scratch
                    + (th + 2) * (W + 2) * cp          # mid scratch
                    + 3 * (th + 2) * W * cp)           # matmul accumulators / temps
    vmem_est += 2 * 2 * 9 * cp * cp * wbytes           # both tap-weight arrays
    vmem_limit = int(min(max(int(1.5 * vmem_est), 32 * 2**20), 64 * 2**20))

    cost = pl.CostEstimate(
        flops=2 * 2 * N * H * W * 9 * cp * cp,
        transcendentals=0,
        bytes_accessed=int(slabs.size * 4 + N * H * W * cp * 4
                           + 2 * 9 * cp * cp * wbytes + 6 * cp * 4))

    out = pl.pallas_call(
        _boundary_refine_kernel,
        out_shape=jax.ShapeDtypeStruct((N, H, W, cp), jnp.float32),
        grid_spec=pltpu.PrefetchScalarGridSpec(
            num_scalar_prefetch=0,
            grid=(N, n_tiles),
            in_specs=[
                pl.BlockSpec((pl.Squeezed(), pl.Squeezed(), th + 4, W + 2, cp),
                             lambda n, t: (n, t, 0, 0, 0)),
                pl.BlockSpec((1, cp), lambda n, t: (0, 0)),          # scale
                pl.BlockSpec((1, cp), lambda n, t: (0, 0)),          # shift
                pl.BlockSpec((9, cp, cp), lambda n, t: (0, 0, 0)),   # w1 taps
                pl.BlockSpec((1, cp), lambda n, t: (0, 0)),          # b1
                pl.BlockSpec((9, cp, cp), lambda n, t: (0, 0, 0)),   # w2 taps
                pl.BlockSpec((1, cp), lambda n, t: (0, 0)),          # b2
            ],
            out_specs=pl.BlockSpec((pl.Squeezed(), th, W, cp),
                                   lambda n, t: (n, t, 0, 0)),
            scratch_shapes=[pltpu.VMEM((th + 4, W + 2, cp), jnp.float32),
                            pltpu.VMEM((th + 2, W + 2, cp), jnp.float32)],
        ),
        compiler_params=pltpu.CompilerParams(
            dimension_semantics=("parallel", "parallel"),
            vmem_limit_bytes=vmem_limit),
        cost_estimate=cost,
    )(slabs, scale_p, shift_p, w1_t, b1_p, w2_t, b2_p)

    return jnp.transpose(out[..., :C], (0, 3, 1, 2))               # back to NCHW


def _reference_forward(x, gamma, beta, w1, b1, w2, b2, eps=1e-5):
    """Pure-JAX reference (NCHW), matches PyTorch training-mode forward."""
    mean = jnp.mean(x, axis=(0, 2, 3), keepdims=True)
    var = jnp.mean((x - mean) ** 2, axis=(0, 2, 3), keepdims=True)
    y = (x - mean) / jnp.sqrt(var + eps)
    y = y * gamma.reshape(1, -1, 1, 1) + beta.reshape(1, -1, 1, 1)
    y = jnp.maximum(y, 0.0)
    dn = ('NCHW', 'OIHW', 'NCHW')
    y = jax.lax.conv_general_dilated(y, w1, (1, 1), 'SAME',
                                     dimension_numbers=dn) + b1.reshape(1, -1, 1, 1)
    y = jax.lax.conv_general_dilated(y, w2, (1, 1), 'SAME',
                                     dimension_numbers=dn) + b2.reshape(1, -1, 1, 1)
    return x + y


if __name__ == "__main__":
    N, C, H, W = 2, 4, 16, 16
    key = jax.random.PRNGKey(0)
    kx, kg, kb, kw1, kb1, kw2, kb2 = jax.random.split(key, 7)

    x = jax.random.normal(kx, (N, C, H, W), dtype=jnp.float32)
    gamma = 1.0 + 0.1 * jax.random.normal(kg, (C,), dtype=jnp.float32)
    beta = 0.1 * jax.random.normal(kb, (C,), dtype=jnp.float32)
    w1 = 0.2 * jax.random.normal(kw1, (C, C, 3, 3), dtype=jnp.float32)
    b1 = 0.1 * jax.random.normal(kb1, (C,), dtype=jnp.float32)
    w2 = 0.2 * jax.random.normal(kw2, (C, C, 3, 3), dtype=jnp.float32)
    b2 = 0.1 * jax.random.normal(kb2, (C,), dtype=jnp.float32)

    ref = jax.block_until_ready(_reference_forward(x, gamma, beta, w1, b1, w2, b2))

    # f32 path: multi-row-tile (exercises the halo logic) and whole-image tile.
    for rt in (8, 16):
        out = jax.block_until_ready(
            boundary_refine_forward(x, gamma, beta, w1, b1, w2, b2, row_tile=rt))
        assert out.shape == (N, C, H, W)
        err = float(jnp.max(jnp.abs(out - ref)))
        assert err < 1e-4, f"row_tile={rt}: mismatch vs reference: {err}"

    # bf16 MXU-input path (v6e/v7x recommendation), f32 accumulate -> loose tol.
    out_bf16 = jax.block_until_ready(
        boundary_refine_forward(x, gamma, beta, w1, b1, w2, b2,
                                row_tile=8, matmul_dtype=jnp.bfloat16))
    err_bf16 = float(jnp.max(jnp.abs(out_bf16 - ref)))
    assert err_bf16 < 2e-1, f"bf16 path: mismatch vs reference: {err_bf16}"

    print("KERNEL_OK")
</pallas_src>

<mosaic_0001>
module attributes {stable_mosaic.version = 11 : i64} {
  func.func @_boundary_refine_kernel(%arg0: i32, %arg1: i32, %arg2: memref<1x1x12x18x128xf32, #tpu.memory_space<vmem>>, %arg3: memref<1x128xf32, #tpu.memory_space<vmem>>, %arg4: memref<1x128xf32, #tpu.memory_space<vmem>>, %arg5: memref<9x128x128xf32, #tpu.memory_space<vmem>>, %arg6: memref<1x128xf32, #tpu.memory_space<vmem>>, %arg7: memref<9x128x128xf32, #tpu.memory_space<vmem>>, %arg8: memref<1x128xf32, #tpu.memory_space<vmem>>, %arg9: memref<1x8x16x128xf32, #tpu.memory_space<vmem>>, %arg10: memref<12x18x128xf32, #tpu.memory_space<vmem>>, %arg11: memref<10x18x128xf32, #tpu.memory_space<vmem>>) attributes {dimension_semantics = [#tpu.dimension_semantics<parallel>, #tpu.dimension_semantics<parallel>], iteration_bounds = array<i64: 2, 2>, scalar_prefetch = 0 : i64, scratch_operands = 2 : i64, tpu.core_type = #tpu.core_type<tc>, window_params = [{transform_indices = @transform_0, window_bounds = array<i64: 1, 1, 12, 18, 128>}, {pipeline_mode = #tpu.pipeline_mode<synchronous>, transform_indices = @transform_1, window_bounds = array<i64: 1, 128>}, {pipeline_mode = #tpu.pipeline_mode<synchronous>, transform_indices = @transform_2, window_bounds = array<i64: 1, 128>}, {pipeline_mode = #tpu.pipeline_mode<synchronous>, transform_indices = @transform_3, window_bounds = array<i64: 9, 128, 128>}, {pipeline_mode = #tpu.pipeline_mode<synchronous>, transform_indices = @transform_4, window_bounds = array<i64: 1, 128>}, {pipeline_mode = #tpu.pipeline_mode<synchronous>, transform_indices = @transform_5, window_bounds = array<i64: 9, 128, 128>}, {pipeline_mode = #tpu.pipeline_mode<synchronous>, transform_indices = @transform_6, window_bounds = array<i64: 1, 128>}, {transform_indices = @transform_7, window_bounds = array<i64: 1, 8, 16, 128>}]} {
    %c0 = arith.constant 0 : index
    %c0_0 = arith.constant 0 : index
    %c0_1 = arith.constant 0 : index
    %c0_2 = arith.constant 0 : index
    %c0_3 = arith.constant 0 : index
    %0 = vector.load %arg2[%c0, %c0_0, %c0_1, %c0_2, %c0_3] : memref<1x1x12x18x128xf32, #tpu.memory_space<vmem>>, vector<1x1x12x18x128xf32>
    %1 = vector.shape_cast %0 : vector<1x1x12x18x128xf32> to vector<12x18x128xf32>
    %c0_4 = arith.constant 0 : index
    %c0_5 = arith.constant 0 : index
    %2 = vector.load %arg3[%c0_4, %c0_5] : memref<1x128xf32, #tpu.memory_space<vmem>>, vector<1x128xf32>
    %3 = vector.shape_cast %2 : vector<1x128xf32> to vector<1x1x128xf32>
    %c0_6 = arith.constant 0 : index
    %c0_7 = arith.constant 0 : index
    %4 = vector.load %arg4[%c0_6, %c0_7] : memref<1x128xf32, #tpu.memory_space<vmem>>, vector<1x128xf32>
    %5 = vector.shape_cast %4 : vector<1x128xf32> to vector<1x1x128xf32>
    %6 = vector.broadcast %3 : vector<1x1x128xf32> to vector<12x18x128xf32>
    %7 = arith.mulf %1, %6 : vector<12x18x128xf32>
    %8 = vector.broadcast %5 : vector<1x1x128xf32> to vector<12x18x128xf32>
    %9 = arith.addf %7, %8 : vector<12x18x128xf32>
    %cst = arith.constant 0.000000e+00 : f32
    %10 = vector.broadcast %cst : f32 to vector<12x18x128xf32>
    %11 = arith.maximumf %9, %10 : vector<12x18x128xf32>
    %c0_8 = arith.constant 0 : index
    %c0_9 = arith.constant 0 : index
    %c0_10 = arith.constant 0 : index
    %12 = vector.load %arg10[%c0_8, %c0_9, %c0_10] : memref<12x18x128xf32, #tpu.memory_space<vmem>>, vector<12x18x128xf32>
    tpu.vector_store %arg10[%c0_8, %c0_9, %c0_10], %11 {strides = array<i32>} : memref<12x18x128xf32, #tpu.memory_space<vmem>>, vector<12x18x128xf32>,
    %cst_11 = arith.constant 0.000000e+00 : f32
    %13 = vector.broadcast %cst_11 : f32 to vector<12x1x128xf32>
    %c0_12 = arith.constant 0 : index
    %c0_13 = arith.constant 0 : index
    %c0_14 = arith.constant 0 : index
    %14 = vector.load %arg10[%c0_12, %c0_13, %c0_14] : memref<12x18x128xf32, #tpu.memory_space<vmem>>, vector<12x1x128xf32>
    tpu.vector_store %arg10[%c0_12, %c0_13, %c0_14], %13 {strides = array<i32>} : memref<12x18x128xf32, #tpu.memory_space<vmem>>, vector<12x1x128xf32>,
    %c0_15 = arith.constant 0 : index
    %c17 = arith.constant 17 : index
    %c0_16 = arith.constant 0 : index
    %15 = vector.load %arg10[%c0_15, %c17, %c0_16] : memref<12x18x128xf32, #tpu.memory_space<vmem>>, vector<12x1x128xf32>
    tpu.vector_store %arg10[%c0_15, %c17, %c0_16], %13 {strides = array<i32>} : memref<12x18x128xf32, #tpu.memory_space<vmem>>, vector<12x1x128xf32>,
    %c0_i32 = arith.constant 0 : i32
    %16 = arith.cmpi eq, %arg1, %c0_i32 : i32
    %17 = arith.extui %16 : i1 to i32
    %c0_i32_17 = arith.constant 0 : i32
    %18 = arith.cmpi ne, %17, %c0_i32_17 : i32
    scf.if %18 {
      %cst_166 = arith.constant 0.000000e+00 : f32
      %156 = vector.broadcast %cst_166 : f32 to vector<2x18x128xf32>
      %c0_167 = arith.constant 0 : index
      %c0_168 = arith.constant 0 : index
      %c0_169 = arith.constant 0 : index
      %157 = vector.load %arg10[%c0_167, %c0_168, %c0_169] : memref<12x18x128xf32, #tpu.memory_space<vmem>>, vector<2x18x128xf32>
      tpu.vector_store %arg10[%c0_167, %c0_168, %c0_169], %156 {strides = array<i32>} : memref<12x18x128xf32, #tpu.memory_space<vmem>>, vector<2x18x128xf32>,
    } else {
    }
    %c1_i32 = arith.constant 1 : i32
    %19 = arith.cmpi eq, %arg1, %c1_i32 : i32
    %20 = arith.extui %19 : i1 to i32
    %c0_i32_18 = arith.constant 0 : i32
    %21 = arith.cmpi ne, %20, %c0_i32_18 : i32
    scf.if %21 {
      %cst_166 = arith.constant 0.000000e+00 : f32
      %156 = vector.broadcast %cst_166 : f32 to vector<2x18x128xf32>
      %c10 = arith.constant 10 : index
      %c0_167 = arith.constant 0 : index
      %c0_168 = arith.constant 0 : index
      %157 = vector.load %arg10[%c10, %c0_167, %c0_168] : memref<12x18x128xf32, #tpu.memory_space<vmem>>, vector<2x18x128xf32>
      tpu.vector_store %arg10[%c10, %c0_167, %c0_168], %156 {strides = array<i32>} : memref<12x18x128xf32, #tpu.memory_space<vmem>>, vector<2x18x128xf32>,
    } else {
    }
    %cst_19 = arith.constant 0.000000e+00 : f32
    %22 = vector.broadcast %cst_19 : f32 to vector<160x128xf32>
    %c0_20 = arith.constant 0 : index
    %c0_21 = arith.constant 0 : index
    %c0_22 = arith.constant 0 : index
    %23 = vector.load %arg10[%c0_20, %c0_21, %c0_22] : memref<12x18x128xf32, #tpu.memory_space<vmem>>, vector<10x16x128xf32>
    %24 = vector.shape_cast %23 : vector<10x16x128xf32> to vector<160x128xf32>
    %c0_23 = arith.constant 0 : index
    %c0_24 = arith.constant 0 : index
    %c0_25 = arith.constant 0 : index
    %25 = vector.load %arg5[%c0_23, %c0_24, %c0_25] : memref<9x128x128xf32, #tpu.memory_space<vmem>>, vector<1x128x128xf32>
    %26 = vector.shape_cast %25 : vector<1x128x128xf32> to vector<128x128xf32>
    %cst_26 = arith.constant dense<0.000000e+00> : vector<160x128xf32>
    %27 = tpu.matmul %24, %26, %cst_26 {dimension_numbers = #tpu.dot_dimension_numbers<[1], [0], [0], [1], [0, 0, 1, 1], [], []>} : vector<160x128xf32>, vector<128x128xf32>, vector<160x128xf32> -> vector<160x128xf32>
    %28 = arith.addf %22, %27 : vector<160x128xf32>
    %c0_27 = arith.constant 0 : index
    %c1 = arith.constant 1 : index
    %c0_28 = arith.constant 0 : index
    %29 = vector.load %arg10[%c0_27, %c1, %c0_28] : memref<12x18x128xf32, #tpu.memory_space<vmem>>, vector<10x16x128xf32>
    %30 = vector.shape_cast %29 : vector<10x16x128xf32> to vector<160x128xf32>
    %c1_29 = arith.constant 1 : index
    %c0_30 = arith.constant 0 : index
    %c0_31 = arith.constant 0 : index
    %31 = vector.load %arg5[%c1_29, %c0_30, %c0_31] : memref<9x128x128xf32, #tpu.memory_space<vmem>>, vector<1x128x128xf32>
    %32 = vector.shape_cast %31 : vector<1x128x128xf32> to vector<128x128xf32>
    %cst_32 = arith.constant dense<0.000000e+00> : vector<160x128xf32>
    %33 = tpu.matmul %30, %32, %cst_32 {dimension_numbers = #tpu.dot_dimension_numbers<[1], [0], [0], [1], [0, 0, 1, 1], [], []>} : vector<160x128xf32>, vector<128x128xf32>, vector<160x128xf32> -> vector<160x128xf32>
    %34 = arith.addf %28, %33 : vector<160x128xf32>
    %c0_33 = arith.constant 0 : index
    %c2 = arith.constant 2 : index
    %c0_34 = arith.constant 0 : index
    %35 = vector.load %arg10[%c0_33, %c2, %c0_34] : memref<12x18x128xf32, #tpu.memory_space<vmem>>, vector<10x16x128xf32>
    %36 = vector.shape_cast %35 : vector<10x16x128xf32> to vector<160x128xf32>
    %c2_35 = arith.constant 2 : index
    %c0_36 = arith.constant 0 : index
    %c0_37 = arith.constant 0 : index
    %37 = vector.load %arg5[%c2_35, %c0_36, %c0_37] : memref<9x128x128xf32, #tpu.memory_space<vmem>>, vector<1x128x128xf32>
    %38 = vector.shape_cast %37 : vector<1x128x128xf32> to vector<128x128xf32>
    %cst_38 = arith.constant dense<0.000000e+00> : vector<160x128xf32>
    %39 = tpu.matmul %36, %38, %cst_38 {dimension_numbers = #tpu.dot_dimension_numbers<[1], [0], [0], [1], [0, 0, 1, 1], [], []>} : vector<160x128xf32>, vector<128x128xf32>, vector<160x128xf32> -> vector<160x128xf32>
    %40 = arith.addf %34, %39 : vector<160x128xf32>
    %c1_39 = arith.constant 1 : index
    %c0_40 = arith.constant 0 : index
    %c0_41 = arith.constant 0 : index
    %41 = vector.load %arg10[%c1_39, %c0_40, %c0_41] : memref<12x18x128xf32, #tpu.memory_space<vmem>>, vector<10x16x128xf32>
    %42 = vector.shape_cast %41 : vector<10x16x128xf32> to vector<160x128xf32>
    %c3 = arith.constant 3 : index
    %c0_42 = arith.constant 0 : index
    %c0_43 = arith.constant 0 : index
    %43 = vector.load %arg5[%c3, %c0_42, %c0_43] : memref<9x128x128xf32, #tpu.memory_space<vmem>>, vector<1x128x128xf32>
    %44 = vector.shape_cast %43 : vector<1x128x128xf32> to vector<128x128xf32>
    %cst_44 = arith.constant dense<0.000000e+00> : vector<160x128xf32>
    %45 = tpu.matmul %42, %44, %cst_44 {dimension_numbers = #tpu.dot_dimension_numbers<[1], [0], [0], [1], [0, 0, 1, 1], [], []>} : vector<160x128xf32>, vector<128x128xf32>, vector<160x128xf32> -> vector<160x128xf32>
    %46 = arith.addf %40, %45 : vector<160x128xf32>
    %c1_45 = arith.constant 1 : index
    %c1_46 = arith.constant 1 : index
    %c0_47 = arith.constant 0 : index
    %47 = vector.load %arg10[%c1_45, %c1_46, %c0_47] : memref<12x18x128xf32, #tpu.memory_space<vmem>>, vector<10x16x128xf32>
    %48 = vector.shape_cast %47 : vector<10x16x128xf32> to vector<160x128xf32>
    %c4 = arith.constant 4 : index
    %c0_48 = arith.constant 0 : index
    %c0_49 = arith.constant 0 : index
    %49 = vector.load %arg5[%c4, %c0_48, %c0_49] : memref<9x128x128xf32, #tpu.memory_space<vmem>>, vector<1x128x128xf32>
    %50 = vector.shape_cast %49 : vector<1x128x128xf32> to vector<128x128xf32>
    %cst_50 = arith.constant dense<0.000000e+00> : vector<160x128xf32>
    %51 = tpu.matmul %48, %50, %cst_50 {dimension_numbers = #tpu.dot_dimension_numbers<[1], [0], [0], [1], [0, 0, 1, 1], [], []>} : vector<160x128xf32>, vector<128x128xf32>, vector<160x128xf32> -> vector<160x128xf32>
    %52 = arith.addf %46, %51 : vector<160x128xf32>
    %c1_51 = arith.constant 1 : index
    %c2_52 = arith.constant 2 : index
    %c0_53 = arith.constant 0 : index
    %53 = vector.load %arg10[%c1_51, %c2_52, %c0_53] : memref<12x18x128xf32, #tpu.memory_space<vmem>>, vector<10x16x128xf32>
    %54 = vector.shape_cast %53 : vector<10x16x128xf32> to vector<160x128xf32>
    %c5 = arith.constant 5 : index
    %c0_54 = arith.constant 0 : index
    %c0_55 = arith.constant 0 : index
    %55 = vector.load %arg5[%c5, %c0_54, %c0_55] : memref<9x128x128xf32, #tpu.memory_space<vmem>>, vector<1x128x128xf32>
    %56 = vector.shape_cast %55 : vector<1x128x128xf32> to vector<128x128xf32>
    %cst_56 = arith.constant dense<0.000000e+00> : vector<160x128xf32>
    %57 = tpu.matmul %54, %56, %cst_56 {dimension_numbers = #tpu.dot_dimension_numbers<[1], [0], [0], [1], [0, 0, 1, 1], [], []>} : vector<160x128xf32>, vector<128x128xf32>, vector<160x128xf32> -> vector<160x128xf32>
    %58 = arith.addf %52, %57 : vector<160x128xf32>
    %c2_57 = arith.constant 2 : index
    %c0_58 = arith.constant 0 : index
    %c0_59 = arith.constant 0 : index
    %59 = vector.load %arg10[%c2_57, %c0_58, %c0_59] : memref<12x18x128xf32, #tpu.memory_space<vmem>>, vector<10x16x128xf32>
    %60 = vector.shape_cast %59 : vector<10x16x128xf32> to vector<160x128xf32>
    %c6 = arith.constant 6 : index
    %c0_60 = arith.constant 0 : index
    %c0_61 = arith.constant 0 : index
    %61 = vector.load %arg5[%c6, %c0_60, %c0_61] : memref<9x128x128xf32, #tpu.memory_space<vmem>>, vector<1x128x128xf32>
    %62 = vector.shape_cast %61 : vector<1x128x128xf32> to vector<128x128xf32>
    %cst_62 = arith.constant dense<0.000000e+00> : vector<160x128xf32>
    %63 = tpu.matmul %60, %62, %cst_62 {dimension_numbers = #tpu.dot_dimension_numbers<[1], [0], [0], [1], [0, 0, 1, 1], [], []>} : vector<160x128xf32>, vector<128x128xf32>, vector<160x128xf32> -> vector<160x128xf32>
    %64 = arith.addf %58, %63 : vector<160x128xf32>
    %c2_63 = arith.constant 2 : index
    %c1_64 = arith.constant 1 : index
    %c0_65 = arith.constant 0 : index
    %65 = vector.load %arg10[%c2_63, %c1_64, %c0_65] : memref<12x18x128xf32, #tpu.memory_space<vmem>>, vector<10x16x128xf32>
    %66 = vector.shape_cast %65 : vector<10x16x128xf32> to vector<160x128xf32>
    %c7 = arith.constant 7 : index
    %c0_66 = arith.constant 0 : index
    %c0_67 = arith.constant 0 : index
    %67 = vector.load %arg5[%c7, %c0_66, %c0_67] : memref<9x128x128xf32, #tpu.memory_space<vmem>>, vector<1x128x128xf32>
    %68 = vector.shape_cast %67 : vector<1x128x128xf32> to vector<128x128xf32>
    %cst_68 = arith.constant dense<0.000000e+00> : vector<160x128xf32>
    %69 = tpu.matmul %66, %68, %cst_68 {dimension_numbers = #tpu.dot_dimension_numbers<[1], [0], [0], [1], [0, 0, 1, 1], [], []>} : vector<160x128xf32>, vector<128x128xf32>, vector<160x128xf32> -> vector<160x128xf32>
    %70 = arith.addf %64, %69 : vector<160x128xf32>
    %c2_69 = arith.constant 2 : index
    %c2_70 = arith.constant 2 : index
    %c0_71 = arith.constant 0 : index
    %71 = vector.load %arg10[%c2_69, %c2_70, %c0_71] : memref<12x18x128xf32, #tpu.memory_space<vmem>>, vector<10x16x128xf32>
    %72 = vector.shape_cast %71 : vector<10x16x128xf32> to vector<160x128xf32>
    %c8 = arith.constant 8 : index
    %c0_72 = arith.constant 0 : index
    %c0_73 = arith.constant 0 : index
    %73 = vector.load %arg5[%c8, %c0_72, %c0_73] : memref<9x128x128xf32, #tpu.memory_space<vmem>>, vector<1x128x128xf32>
    %74 = vector.shape_cast %73 : vector<1x128x128xf32> to vector<128x128xf32>
    %cst_74 = arith.constant dense<0.000000e+00> : vector<160x128xf32>
    %75 = tpu.matmul %72, %74, %cst_74 {dimension_numbers = #tpu.dot_dimension_numbers<[1], [0], [0], [1], [0, 0, 1, 1], [], []>} : vector<160x128xf32>, vector<128x128xf32>, vector<160x128xf32> -> vector<160x128xf32>
    %76 = arith.addf %70, %75 : vector<160x128xf32>
    %c0_75 = arith.constant 0 : index
    %c0_76 = arith.constant 0 : index
    %77 = vector.load %arg6[%c0_75, %c0_76] : memref<1x128xf32, #tpu.memory_space<vmem>>, vector<1x128xf32>
    %78 = vector.broadcast %77 : vector<1x128xf32> to vector<160x128xf32>
    %79 = arith.addf %76, %78 : vector<160x128xf32>
    %80 = vector.shape_cast %79 : vector<160x128xf32> to vector<10x16x128xf32>
    %c0_77 = arith.constant 0 : index
    %c1_78 = arith.constant 1 : index
    %c0_79 = arith.constant 0 : index
    %81 = vector.load %arg11[%c0_77, %c1_78, %c0_79] : memref<10x18x128xf32, #tpu.memory_space<vmem>>, vector<10x16x128xf32>
    tpu.vector_store %arg11[%c0_77, %c1_78, %c0_79], %80 {strides = array<i32>} : memref<10x18x128xf32, #tpu.memory_space<vmem>>, vector<10x16x128xf32>,
    %cst_80 = arith.constant 0.000000e+00 : f32
    %82 = vector.broadcast %cst_80 : f32 to vector<10x1x128xf32>
    %c0_81 = arith.constant 0 : index
    %c0_82 = arith.constant 0 : index
    %c0_83 = arith.constant 0 : index
    %83 = vector.load %arg11[%c0_81, %c0_82, %c0_83] : memref<10x18x128xf32, #tpu.memory_space<vmem>>, vector<10x1x128xf32>
    tpu.vector_store %arg11[%c0_81, %c0_82, %c0_83], %82 {strides = array<i32>} : memref<10x18x128xf32, #tpu.memory_space<vmem>>, vector<10x1x128xf32>,
    %c0_84 = arith.constant 0 : index
    %c17_85 = arith.constant 17 : index
    %c0_86 = arith.constant 0 : index
    %84 = vector.load %arg11[%c0_84, %c17_85, %c0_86] : memref<10x18x128xf32, #tpu.memory_space<vmem>>, vector<10x1x128xf32>
    tpu.vector_store %arg11[%c0_84, %c17_85, %c0_86], %82 {strides = array<i32>} : memref<10x18x128xf32, #tpu.memory_space<vmem>>, vector<10x1x128xf32>,
    %c0_i32_87 = arith.constant 0 : i32
    %85 = arith.cmpi eq, %arg1, %c0_i32_87 : i32
    %86 = arith.extui %85 : i1 to i32
    %c0_i32_88 = arith.constant 0 : i32
    %87 = arith.cmpi ne, %86, %c0_i32_88 : i32
    scf.if %87 {
      %cst_166 = arith.constant 0.000000e+00 : f32
      %156 = vector.broadcast %cst_166 : f32 to vector<1x18x128xf32>
      %c0_167 = arith.constant 0 : index
      %c0_168 = arith.constant 0 : index
      %c0_169 = arith.constant 0 : index
      %157 = vector.load %arg11[%c0_167, %c0_168, %c0_169] : memref<10x18x128xf32, #tpu.memory_space<vmem>>, vector<1x18x128xf32>
      tpu.vector_store %arg11[%c0_167, %c0_168, %c0_169], %156 {strides = array<i32>} : memref<10x18x128xf32, #tpu.memory_space<vmem>>, vector<1x18x128xf32>,
    } else {
    }
    %c1_i32_89 = arith.constant 1 : i32
    %88 = arith.cmpi eq, %arg1, %c1_i32_89 : i32
    %89 = arith.extui %88 : i1 to i32
    %c0_i32_90 = arith.constant 0 : i32
    %90 = arith.cmpi ne, %89, %c0_i32_90 : i32
    scf.if %90 {
      %cst_166 = arith.constant 0.000000e+00 : f32
      %156 = vector.broadcast %cst_166 : f32 to vector<1x18x128xf32>
      %c9 = arith.constant 9 : index
      %c0_167 = arith.constant 0 : index
      %c0_168 = arith.constant 0 : index
      %157 = vector.load %arg11[%c9, %c0_167, %c0_168] : memref<10x18x128xf32, #tpu.memory_space<vmem>>, vector<1x18x128xf32>
      tpu.vector_store %arg11[%c9, %c0_167, %c0_168], %156 {strides = array<i32>} : memref<10x18x128xf32, #tpu.memory_space<vmem>>, vector<1x18x128xf32>,
    } else {
    }
    %cst_91 = arith.constant 0.000000e+00 : f32
    %91 = vector.broadcast %cst_91 : f32 to vector<128x128xf32>
    %c0_92 = arith.constant 0 : index
    %c0_93 = arith.constant 0 : index
    %c0_94 = arith.constant 0 : index
    %92 = vector.load %arg11[%c0_92, %c0_93, %c0_94] : memref<10x18x128xf32, #tpu.memory_space<vmem>>, vector<8x16x128xf32>
    %93 = vector.shape_cast %92 : vector<8x16x128xf32> to vector<128x128xf32>
    %c0_95 = arith.constant 0 : index
    %c0_96 = arith.constant 0 : index
    %c0_97 = arith.constant 0 : index
    %94 = vector.load %arg7[%c0_95, %c0_96, %c0_97] : memref<9x128x128xf32, #tpu.memory_space<vmem>>, vector<1x128x128xf32>
    %95 = vector.shape_cast %94 : vector<1x128x128xf32> to vector<128x128xf32>
    %cst_98 = arith.constant dense<0.000000e+00> : vector<128x128xf32>
    %96 = tpu.matmul %93, %95, %cst_98 {dimension_numbers = #tpu.dot_dimension_numbers<[1], [0], [0], [1], [0, 0, 1, 1], [], []>} : vector<128x128xf32>, vector<128x128xf32>, vector<128x128xf32> -> vector<128x128xf32>
    %97 = arith.addf %91, %96 : vector<128x128xf32>
    %c0_99 = arith.constant 0 : index
    %c1_100 = arith.constant 1 : index
    %c0_101 = arith.constant 0 : index
    %98 = vector.load %arg11[%c0_99, %c1_100, %c0_101] : memref<10x18x128xf32, #tpu.memory_space<vmem>>, vector<8x16x128xf32>
    %99 = vector.shape_cast %98 : vector<8x16x128xf32> to vector<128x128xf32>
    %c1_102 = arith.constant 1 : index
    %c0_103 = arith.constant 0 : index
    %c0_104 = arith.constant 0 : index
    %100 = vector.load %arg7[%c1_102, %c0_103, %c0_104] : memref<9x128x128xf32, #tpu.memory_space<vmem>>, vector<1x128x128xf32>
    %101 = vector.shape_cast %100 : vector<1x128x128xf32> to vector<128x128xf32>
    %cst_105 = arith.constant dense<0.000000e+00> : vector<128x128xf32>
    %102 = tpu.matmul %99, %101, %cst_105 {dimension_numbers = #tpu.dot_dimension_numbers<[1], [0], [0], [1], [0, 0, 1, 1], [], []>} : vector<128x128xf32>, vector<128x128xf32>, vector<128x128xf32> -> vector<128x128xf32>
    %103 = arith.addf %97, %102 : vector<128x128xf32>
    %c0_106 = arith.constant 0 : index
    %c2_107 = arith.constant 2 : index
    %c0_108 = arith.constant 0 : index
    %104 = vector.load %arg11[%c0_106, %c2_107, %c0_108] : memref<10x18x128xf32, #tpu.memory_space<vmem>>, vector<8x16x128xf32>
    %105 = vector.shape_cast %104 : vector<8x16x128xf32> to vector<128x128xf32>
    %c2_109 = arith.constant 2 : index
    %c0_110 = arith.constant 0 : index
    %c0_111 = arith.constant 0 : index
    %106 = vector.load %arg7[%c2_109, %c0_110, %c0_111] : memref<9x128x128xf32, #tpu.memory_space<vmem>>, vector<1x128x128xf32>
    %107 = vector.shape_cast %106 : vector<1x128x128xf32> to vector<128x128xf32>
    %cst_112 = arith.constant dense<0.000000e+00> : vector<128x128xf32>
    %108 = tpu.matmul %105, %107, %cst_112 {dimension_numbers = #tpu.dot_dimension_numbers<[1], [0], [0], [1], [0, 0, 1, 1], [], []>} : vector<128x128xf32>, vector<128x128xf32>, vector<128x128xf32> -> vector<128x128xf32>
    %109 = arith.addf %103, %108 : vector<128x128xf32>
    %c1_113 = arith.constant 1 : index
    %c0_114 = arith.constant 0 : index
    %c0_115 = arith.constant 0 : index
    %110 = vector.load %arg11[%c1_113, %c0_114, %c0_115] : memref<10x18x128xf32, #tpu.memory_space<vmem>>, vector<8x16x128xf32>
    %111 = vector.shape_cast %110 : vector<8x16x128xf32> to vector<128x128xf32>
    %c3_116 = arith.constant 3 : index
    %c0_117 = arith.constant 0 : index
    %c0_118 = arith.constant 0 : index
    %112 = vector.load %arg7[%c3_116, %c0_117, %c0_118] : memref<9x128x128xf32, #tpu.memory_space<vmem>>, vector<1x128x128xf32>
    %113 = vector.shape_cast %112 : vector<1x128x128xf32> to vector<128x128xf32>
    %cst_119 = arith.constant dense<0.000000e+00> : vector<128x128xf32>
    %114 = tpu.matmul %111, %113, %cst_119 {dimension_numbers = #tpu.dot_dimension_numbers<[1], [0], [0], [1], [0, 0, 1, 1], [], []>} : vector<128x128xf32>, vector<128x128xf32>, vector<128x128xf32> -> vector<128x128xf32>
    %115 = arith.addf %109, %114 : vector<128x128xf32>
    %c1_120 = arith.constant 1 : index
    %c1_121 = arith.constant 1 : index
    %c0_122 = arith.constant 0 : index
    %116 = vector.load %arg11[%c1_120, %c1_121, %c0_122] : memref<10x18x128xf32, #tpu.memory_space<vmem>>, vector<8x16x128xf32>
    %117 = vector.shape_cast %116 : vector<8x16x128xf32> to vector<128x128xf32>
    %c4_123 = arith.constant 4 : index
    %c0_124 = arith.constant 0 : index
    %c0_125 = arith.constant 0 : index
    %118 = vector.load %arg7[%c4_123, %c0_124, %c0_125] : memref<9x128x128xf32, #tpu.memory_space<vmem>>, vector<1x128x128xf32>
    %119 = vector.shape_cast %118 : vector<1x128x128xf32> to vector<128x128xf32>
    %cst_126 = arith.constant dense<0.000000e+00> : vector<128x128xf32>
    %120 = tpu.matmul %117, %119, %cst_126 {dimension_numbers = #tpu.dot_dimension_numbers<[1], [0], [0], [1], [0, 0, 1, 1], [], []>} : vector<128x128xf32>, vector<128x128xf32>, vector<128x128xf32> -> vector<128x128xf32>
    %121 = arith.addf %115, %120 : vector<128x128xf32>
    %c1_127 = arith.constant 1 : index
    %c2_128 = arith.constant 2 : index
    %c0_129 = arith.constant 0 : index
    %122 = vector.load %arg11[%c1_127, %c2_128, %c0_129] : memref<10x18x128xf32, #tpu.memory_space<vmem>>, vector<8x16x128xf32>
    %123 = vector.shape_cast %122 : vector<8x16x128xf32> to vector<128x128xf32>
    %c5_130 = arith.constant 5 : index
    %c0_131 = arith.constant 0 : index
    %c0_132 = arith.constant 0 : index
    %124 = vector.load %arg7[%c5_130, %c0_131, %c0_132] : memref<9x128x128xf32, #tpu.memory_space<vmem>>, vector<1x128x128xf32>
    %125 = vector.shape_cast %124 : vector<1x128x128xf32> to vector<128x128xf32>
    %cst_133 = arith.constant dense<0.000000e+00> : vector<128x128xf32>
    %126 = tpu.matmul %123, %125, %cst_133 {dimension_numbers = #tpu.dot_dimension_numbers<[1], [0], [0], [1], [0, 0, 1, 1], [], []>} : vector<128x128xf32>, vector<128x128xf32>, vector<128x128xf32> -> vector<128x128xf32>
    %127 = arith.addf %121, %126 : vector<128x128xf32>
    %c2_134 = arith.constant 2 : index
    %c0_135 = arith.constant 0 : index
    %c0_136 = arith.constant 0 : index
    %128 = vector.load %arg11[%c2_134, %c0_135, %c0_136] : memref<10x18x128xf32, #tpu.memory_space<vmem>>, vector<8x16x128xf32>
    %129 = vector.shape_cast %128 : vector<8x16x128xf32> to vector<128x128xf32>
    %c6_137 = arith.constant 6 : index
    %c0_138 = arith.constant 0 : index
    %c0_139 = arith.constant 0 : index
    %130 = vector.load %arg7[%c6_137, %c0_138, %c0_139] : memref<9x128x128xf32, #tpu.memory_space<vmem>>, vector<1x128x128xf32>
    %131 = vector.shape_cast %130 : vector<1x128x128xf32> to vector<128x128xf32>
    %cst_140 = arith.constant dense<0.000000e+00> : vector<128x128xf32>
    %132 = tpu.matmul %129, %131, %cst_140 {dimension_numbers = #tpu.dot_dimension_numbers<[1], [0], [0], [1], [0, 0, 1, 1], [], []>} : vector<128x128xf32>, vector<128x128xf32>, vector<128x128xf32> -> vector<128x128xf32>
    %133 = arith.addf %127, %132 : vector<128x128xf32>
    %c2_141 = arith.constant 2 : index
    %c1_142 = arith.constant 1 : index
    %c0_143 = arith.constant 0 : index
    %134 = vector.load %arg11[%c2_141, %c1_142, %c0_143] : memref<10x18x128xf32, #tpu.memory_space<vmem>>, vector<8x16x128xf32>
    %135 = vector.shape_cast %134 : vector<8x16x128xf32> to vector<128x128xf32>
    %c7_144 = arith.constant 7 : index
    %c0_145 = arith.constant 0 : index
    %c0_146 = arith.constant 0 : index
    %136 = vector.load %arg7[%c7_144, %c0_145, %c0_146] : memref<9x128x128xf32, #tpu.memory_space<vmem>>, vector<1x128x128xf32>
    %137 = vector.shape_cast %136 : vector<1x128x128xf32> to vector<128x128xf32>
    %cst_147 = arith.constant dense<0.000000e+00> : vector<128x128xf32>
    %138 = tpu.matmul %135, %137, %cst_147 {dimension_numbers = #tpu.dot_dimension_numbers<[1], [0], [0], [1], [0, 0, 1, 1], [], []>} : vector<128x128xf32>, vector<128x128xf32>, vector<128x128xf32> -> vector<128x128xf32>
    %139 = arith.addf %133, %138 : vector<128x128xf32>
    %c2_148 = arith.constant 2 : index
    %c2_149 = arith.constant 2 : index
    %c0_150 = arith.constant 0 : index
    %140 = vector.load %arg11[%c2_148, %c2_149, %c0_150] : memref<10x18x128xf32, #tpu.memory_space<vmem>>, vector<8x16x128xf32>
    %141 = vector.shape_cast %140 : vector<8x16x128xf32> to vector<128x128xf32>
    %c8_151 = arith.constant 8 : index
    %c0_152 = arith.constant 0 : index
    %c0_153 = arith.constant 0 : index
    %142 = vector.load %arg7[%c8_151, %c0_152, %c0_153] : memref<9x128x128xf32, #tpu.memory_space<vmem>>, vector<1x128x128xf32>
    %143 = vector.shape_cast %142 : vector<1x128x128xf32> to vector<128x128xf32>
    %cst_154 = arith.constant dense<0.000000e+00> : vector<128x128xf32>
    %144 = tpu.matmul %141, %143, %cst_154 {dimension_numbers = #tpu.dot_dimension_numbers<[1], [0], [0], [1], [0, 0, 1, 1], [], []>} : vector<128x128xf32>, vector<128x128xf32>, vector<128x128xf32> -> vector<128x128xf32>
    %145 = arith.addf %139, %144 : vector<128x128xf32>
    %c0_155 = arith.constant 0 : index
    %c0_156 = arith.constant 0 : index
    %146 = vector.load %arg8[%c0_155, %c0_156] : memref<1x128xf32, #tpu.memory_space<vmem>>, vector<1x128xf32>
    %147 = vector.broadcast %146 : vector<1x128xf32> to vector<128x128xf32>
    %148 = arith.addf %145, %147 : vector<128x128xf32>
    %c0_157 = arith.constant 0 : index
    %c0_158 = arith.constant 0 : index
    %c2_159 = arith.constant 2 : index
    %c1_160 = arith.constant 1 : index
    %c0_161 = arith.constant 0 : index
    %149 = vector.load %arg2[%c0_157, %c0_158, %c2_159, %c1_160, %c0_161] : memref<1x1x12x18x128xf32, #tpu.memory_space<vmem>>, vector<1x1x8x16x128xf32>
    %150 = vector.shape_cast %149 : vector<1x1x8x16x128xf32> to vector<8x16x128xf32>
    %151 = vector.shape_cast %148 : vector<128x128xf32> to vector<8x16x128xf32>
    %152 = arith.addf %150, %151 : vector<8x16x128xf32>
    %c0_162 = arith.constant 0 : index
    %c0_163 = arith.constant 0 : index
    %c0_164 = arith.constant 0 : index
    %c0_165 = arith.constant 0 : index
    %153 = vector.load %arg9[%c0_162, %c0_163, %c0_164, %c0_165] : memref<1x8x16x128xf32, #tpu.memory_space<vmem>>, vector<1x8x16x128xf32>
    %154 = vector.shape_cast %153 : vector<1x8x16x128xf32> to vector<8x16x128xf32>
    %155 = vector.shape_cast %152 : vector<8x16x128xf32> to vector<1x8x16x128xf32>
    tpu.vector_store %arg9[%c0_162, %c0_163, %c0_164, %c0_165], %155 {strides = array<i32>} : memref<1x8x16x128xf32, #tpu.memory_space<vmem>>, vector<1x8x16x128xf32>,
    return
  }
  func.func @transform_0(%arg0: i32, %arg1: i32) -> (i32, i32, i32, i32, i32) {
    %c0_i32 = arith.constant 0 : i32
    %c0_i32_0 = arith.constant 0 : i32
    %c0_i32_1 = arith.constant 0 : i32
    %c0_i32_2 = arith.constant 0 : i32
    return %arg0, %arg1, %c0_i32, %c0_i32_0, %c0_i32_1 : i32, i32, i32, i32, i32
  }
  func.func @transform_1(%arg0: i32, %arg1: i32) -> (i32, i32) {
    %c0_i32 = arith.constant 0 : i32
    %c0_i32_0 = arith.constant 0 : i32
    %c0_i32_1 = arith.constant 0 : i32
    return %c0_i32, %c0_i32_0 : i32, i32
  }
  func.func @transform_2(%arg0: i32, %arg1: i32) -> (i32, i32) {
    %c0_i32 = arith.constant 0 : i32
    %c0_i32_0 = arith.constant 0 : i32
    %c0_i32_1 = arith.constant 0 : i32
    return %c0_i32, %c0_i32_0 : i32, i32
  }
  func.func @transform_3(%arg0: i32, %arg1: i32) -> (i32, i32, i32) {
    %c0_i32 = arith.constant 0 : i32
    %c0_i32_0 = arith.constant 0 : i32
    %c0_i32_1 = arith.constant 0 : i32
    %c0_i32_2 = arith.constant 0 : i32
    return %c0_i32, %c0_i32_0, %c0_i32_1 : i32, i32, i32
  }
  func.func @transform_4(%arg0: i32, %arg1: i32) -> (i32, i32) {
    %c0_i32 = arith.constant 0 : i32
    %c0_i32_0 = arith.constant 0 : i32
    %c0_i32_1 = arith.constant 0 : i32
    return %c0_i32, %c0_i32_0 : i32, i32
  }
  func.func @transform_5(%arg0: i32, %arg1: i32) -> (i32, i32, i32) {
    %c0_i32 = arith.constant 0 : i32
    %c0_i32_0 = arith.constant 0 : i32
    %c0_i32_1 = arith.constant 0 : i32
    %c0_i32_2 = arith.constant 0 : i32
    return %c0_i32, %c0_i32_0, %c0_i32_1 : i32, i32, i32
  }
  func.func @transform_6(%arg0: i32, %arg1: i32) -> (i32, i32) {
    %c0_i32 = arith.constant 0 : i32
    %c0_i32_0 = arith.constant 0 : i32
    %c0_i32_1 = arith.constant 0 : i32
    return %c0_i32, %c0_i32_0 : i32, i32
  }
  func.func @transform_7(%arg0: i32, %arg1: i32) -> (i32, i32, i32, i32) {
    %c0_i32 = arith.constant 0 : i32
    %c0_i32_0 = arith.constant 0 : i32
    %c0_i32_1 = arith.constant 0 : i32
    return %arg0, %arg1, %c0_i32, %c0_i32_0 : i32, i32, i32, i32
  }
}

</mosaic_0001>

<llo_original>
// kernel: tpu_custom_call.1
$region0: #{tpu_custom_call.1}
  #allocation0 [shape = 'u32[]', space=smem, size = 0x4, offset = 0x4, fixed_abs, tag = 'smem constant byte address 0x4 - core index']
  #allocation1 [shape = 'u32[144,128]{1,0:T(1,128)}', space=vmem, size = 0x12000, scoped, tag = 'internal scratch']
  #allocation2 [shape = 'f32[12,18,128]{2,1,0:T(8,128)}', space=vmem, size = 0x24000, scoped, tag = 'scratch operand']
  #allocation3 [shape = 'f32[10,18,128]{2,1,0:T(8,128)}', space=vmem, size = 0x1e000, scoped, tag = 'scratch operand']
  %s0 = inlined_call_operand.vmem [shape: f32[2,2,12,18,128], index: 0, kind: input, shape index: {}]
  %s1 = inlined_call_operand.vmem [shape: f32[1,128], index: 1, kind: input, shape index: {}]
  %s2 = inlined_call_operand.vmem [shape: f32[1,128], index: 2, kind: input, shape index: {}]
  %s3 = inlined_call_operand.vmem [shape: f32[9,128,128], index: 3, kind: input, shape index: {}]
  %s4 = inlined_call_operand.vmem [shape: f32[1,128], index: 4, kind: input, shape index: {}]
  %s5 = inlined_call_operand.hbm [shape: f32[9,128,128], index: 5, kind: input, shape index: {}]
  %s6 = inlined_call_operand.vmem [shape: f32[1,128], index: 6, kind: input, shape index: {}]
  %s7 = inlined_call_operand.hbm [shape: f32[2,16,16,128], index: 7, kind: output, shape index: {}]
  %s8 = sld [smem:[#allocation0]]
  $region81: #{tpu_custom_call.1} parent=0
    _
  %s10 = ssub.s32 1, %s8
  %s11 = scalar_select 0, %s10, %s8
  $region1: #{tpu_custom_call.1} parent=0
    #allocation4 [shape = 'u8[589824]{0}', space=vmem, size = 0x90000, scoped, tag = 'input window, operand 5, single buffered']
    #allocation5 [shape = 's32[2]{0}', space=sflag, size = 0x8, scoped, tag = 'scoped memory for tpu_custom_call.1']
    #allocation6 [shape = 's32[2]{0}', space=sflag, size = 0x8, scoped, tag = 'scoped memory for tpu_custom_call.1']
    #allocation7 [shape = 'u8[131072]{0}', space=vmem, size = 0x20000, scoped, tag = 'output window, operand 0']
    %12 = vsyncpa [#allocation5], 0
    %13 = vsyncpa [#allocation6], 0
    %s14 = scalar_lea.sflag [#allocation6], 1
    %15 = vsyncpa %s14, 0
    loop: start=0, step=1, limit=6
    $region2: #{tpu_custom_call.1} parent=1 // loop_pre_header
      _
    $region3: #{tpu_custom_call.1} parent=1 // loop_header
      %s17 = sphi 0, %s21
      %p18 = scmp.ge.s32.totalorder %s17, 6
      %s24 = sphi 0, %s36
      %s25 = sphi 0, %s32
      %s26 = sphi 0, %s24
      %s27 = sphi 0, %s25
      %s28 = sphi 0, %s26
      %s29 = sphi 0, %s27
      %s41 = sphi 0, %s43
      %s44 = sphi 0, %s41
      %s45 = sphi 0, %s44
      %s61 = sphi 0, %s45
      %s65 = sphi 0, %s65
      %s67 = sphi 0, %s65
      %s68 = sphi 0, %s67
      %s82 = sphi 0, %s68
      %s86 = sphi 0, %s86
      %s88 = sphi 0, %s86
      %s89 = sphi 0, %s88
      %s103 = sphi 0, %s89
      %s107 = sphi 0, %s107
      %s109 = sphi 0, %s107
      %s110 = sphi 0, %s109
      %s124 = sphi 0, %s110
      %s128 = sphi 0, %s128
      %s130 = sphi 0, %s128
      %s131 = sphi 0, %s130
      %s145 = sphi 0, %s131
      %s149 = sphi 0, %s149
      %s151 = sphi 0, %s149
      %s152 = sphi 0, %s151
      %s166 = sphi 0, %s152
      %s170 = sphi 0, %s170
      %s172 = sphi 0, %s170
      %s173 = sphi 0, %s172
      %s187 = sphi 0, %s173
      %s195 = sphi 0, %s197
      %s198 = sphi 0, %s195
      %s199 = sphi 0, %s198
      %s215 = sphi 0, %s199
    $region4: #{tpu_custom_call.1} parent=1 // loop_header_branch
      %20 = sbr.rel (%p18) target = $region8
    $region5: #{tpu_custom_call.1} parent=1 // loop_body
      %s22 = ssub.s32 %s17, 1
      %s23 = ssub.s32 %s17, 2
      %s30 = sadd.s32 1, %s25
      %p31 = scmp.ge.s32.totalorder %s30, 2
      %s32 = scalar_select %p31, 0, %s30
      %s33 = sadd.s32 1, %s24
      %s34 = scalar_select %p31, %s33, %s24
      %p35 = scmp.ge.s32.totalorder %s34, 2
      %s36 = scalar_select %p35, 0, %s34
      %s37 = ssub.s32 %s24, %s36
      %s38 = ssub.s32 %s25, %s32
      %s39 = sor.u32 %s37, %s38
      %p40 = scmp.eq.s32.totalorder %s39, 0
      %s42 = sadd.s32 %s41, 1
      %s43 = scalar_select %p40, %s41, %s42
      %p46 = pneg %p40
      %p47 = scmp.eq.s32.totalorder %s17, 3
      %p48 = por %p46, %p47
      %p49 = scmp.ne.s32.totalorder %s41, %s44
      %p50 = scmp.eq.s32.totalorder %s17, 0
      %p51 = por %p49, %p50
      %p52 = scmp.ne.s32.totalorder %s41, %s44
      %p53 = scmp.eq.s32.totalorder %s22, 3
      %p54 = por %p52, %p53
      %p55 = scmp.ne.s32.totalorder %s44, %s45
      %p56 = scmp.eq.s32.totalorder %s22, 0
      %p57 = por %p55, %p56
      %p58 = scmp.ne.s32.totalorder %s44, %s45
      %p59 = scmp.eq.s32.totalorder %s23, 3
      %p60 = por %p58, %p59
      %p62 = scmp.ne.s32.totalorder %s45, %s61
      %p63 = scmp.eq.s32.totalorder %s23, 0
      %p64 = por %p62, %p63
      %s66 = sadd.s32 %s65, 1
      %p69 = scmp.eq.s32.totalorder %s17, 3
      %p70 = scmp.ne.s32.totalorder %s65, %s67
      %p71 = scmp.eq.s32.totalorder %s17, 0
      %p72 = por %p70, %p71
      %p73 = scmp.ne.s32.totalorder %s65, %s67
      %p74 = scmp.eq.s32.totalorder %s22, 3
      %p75 = por %p73, %p74
      %p76 = scmp.ne.s32.totalorder %s67, %s68
      %p77 = scmp.eq.s32.totalorder %s22, 0
      %p78 = por %p76, %p77
      %p79 = scmp.ne.s32.totalorder %s67, %s68
      %p80 = scmp.eq.s32.totalorder %s23, 3
      %p81 = por %p79, %p80
      %p83 = scmp.ne.s32.totalorder %s68, %s82
      %p84 = scmp.eq.s32.totalorder %s23, 0
      %p85 = por %p83, %p84
      %s87 = sadd.s32 %s86, 1
      %p90 = scmp.eq.s32.totalorder %s17, 3
      %p91 = scmp.ne.s32.totalorder %s86, %s88
      %p92 = scmp.eq.s32.totalorder %s17, 0
      %p93 = por %p91, %p92
      %p94 = scmp.ne.s32.totalorder %s86, %s88
      %p95 = scmp.eq.s32.totalorder %s22, 3
      %p96 = por %p94, %p95
      %p97 = scmp.ne.s32.totalorder %s88, %s89
      %p98 = scmp.eq.s32.totalorder %s22, 0
      %p99 = por %p97, %p98
      %p100 = scmp.ne.s32.totalorder %s88, %s89
      %p101 = scmp.eq.s32.totalorder %s23, 3
      %p102 = por %p100, %p101
      %p104 = scmp.ne.s32.totalorder %s89, %s103
      %p105 = scmp.eq.s32.totalorder %s23, 0
      %p106 = por %p104, %p105
      %s108 = sadd.s32 %s107, 1
      %p111 = scmp.eq.s32.totalorder %s17, 3
      %p112 = scmp.ne.s32.totalorder %s107, %s109
      %p113 = scmp.eq.s32.totalorder %s17, 0
      %p114 = por %p112, %p113
      %p115 = scmp.ne.s32.totalorder %s107, %s109
      %p116 = scmp.eq.s32.totalorder %s22, 3
      %p117 = por %p115, %p116
      %p118 = scmp.ne.s32.totalorder %s109, %s110
      %p119 = scmp.eq.s32.totalorder %s22, 0
      %p120 = por %p118, %p119
      %p121 = scmp.ne.s32.totalorder %s109, %s110
      %p122 = scmp.eq.s32.totalorder %s23, 3
      %p123 = por %p121, %p122
      %p125 = scmp.ne.s32.totalorder %s110, %s124
      %p126 = scmp.eq.s32.totalorder %s23, 0
      %p127 = por %p125, %p126
      %s129 = sadd.s32 %s128, 1
      %p132 = scmp.eq.s32.totalorder %s17, 3
      %p133 = scmp.ne.s32.totalorder %s128, %s130
      %p134 = scmp.eq.s32.totalorder %s17, 0
      %p135 = por %p133, %p134
      %p136 = scmp.ne.s32.totalorder %s128, %s130
      %p137 = scmp.eq.s32.totalorder %s22, 3
      %p138 = por %p136, %p137
      %p139 = scmp.ne.s32.totalorder %s130, %s131
      %p140 = scmp.eq.s32.totalorder %s22, 0
      %p141 = por %p139, %p140
      %p142 = scmp.ne.s32.totalorder %s130, %s131
      %p143 = scmp.eq.s32.totalorder %s23, 3
      %p144 = por %p142, %p143
      %p146 = scmp.ne.s32.totalorder %s131, %s145
      %p147 = scmp.eq.s32.totalorder %s23, 0
      %p148 = por %p146, %p147
      %s150 = sadd.s32 %s149, 1
      %p153 = scmp.eq.s32.totalorder %s17, 3
      %p154 = scmp.ne.s32.totalorder %s149, %s151
      %p155 = scmp.eq.s32.totalorder %s17, 0
      %p156 = por %p154, %p155
      %p157 = scmp.ne.s32.totalorder %s149, %s151
      %p158 = scmp.eq.s32.totalorder %s22, 3
      %p159 = por %p157, %p158
      %p160 = scmp.ne.s32.totalorder %s151, %s152
      %p161 = scmp.eq.s32.totalorder %s22, 0
      %p162 = por %p160, %p161
      %p163 = scmp.ne.s32.totalorder %s151, %s152
      %p164 = scmp.eq.s32.totalorder %s23, 3
      %p165 = por %p163, %p164
      %p167 = scmp.ne.s32.totalorder %s152, %s166
      %p168 = scmp.eq.s32.totalorder %s23, 0
      %p169 = por %p167, %p168
      %s171 = sadd.s32 %s170, 1
      %p174 = scmp.eq.s32.totalorder %s17, 3
      %p175 = scmp.ne.s32.totalorder %s170, %s172
      %p176 = scmp.eq.s32.totalorder %s17, 0
      %p177 = por %p175, %p176
      %p178 = scmp.ne.s32.totalorder %s170, %s172
      %p179 = scmp.eq.s32.totalorder %s22, 3
      %p180 = por %p178, %p179
      %p181 = scmp.ne.s32.totalorder %s172, %s173
      %p182 = scmp.eq.s32.totalorder %s22, 0
      %p183 = por %p181, %p182
      %p184 = scmp.ne.s32.totalorder %s172, %s173
      %p185 = scmp.eq.s32.totalorder %s23, 3
      %p186 = por %p184, %p185
      %p188 = scmp.ne.s32.totalorder %s173, %s187
      %p189 = scmp.eq.s32.totalorder %s23, 0
      %p190 = por %p188, %p189
      %s191 = ssub.s32 %s24, %s36
      %s192 = ssub.s32 %s25, %s32
      %s193 = sor.u32 %s191, %s192
      %p194 = scmp.eq.s32.totalorder %s193, 0
      %s196 = sadd.s32 %s195, 1
      %s197 = scalar_select %p194, %s195, %s196
      %p200 = pneg %p194
      %p201 = scmp.eq.s32.totalorder %s17, 3
      %p202 = por %p200, %p201
      %p203 = scmp.ne.s32.totalorder %s195, %s198
      %p204 = scmp.eq.s32.totalorder %s17, 0
      %p205 = por %p203, %p204
      %p206 = scmp.ne.s32.totalorder %s195, %s198
      %p207 = scmp.eq.s32.totalorder %s22, 3
      %p208 = por %p206, %p207
      %p209 = scmp.ne.s32.totalorder %s198, %s199
      %p210 = scmp.eq.s32.totalorder %s22, 0
      %p211 = por %p209, %p210
      %p212 = scmp.ne.s32.totalorder %s198, %s199
      %p213 = scmp.eq.s32.totalorder %s23, 3
      %p214 = por %p212, %p213
      %p216 = scmp.ne.s32.totalorder %s199, %s215
      %p217 = scmp.eq.s32.totalorder %s23, 0
      %p218 = por %p216, %p217
      %p219 = scmp.le.s32.totalorder 1, %s17
      %p220 = scmp.lt.s32.totalorder %s17, 5
      %p221 = pnand %p219, %p220
      %p222 = pneg %p221
      // Predicated region
      $region9: #{tpu_custom_call.1} parent=5 // pred_check
        _
      $region10: #{tpu_custom_call.1} parent=5 // pred_check_branch
        %224 = sbr.rel (%p221) target = $region12
      $region11: #{tpu_custom_call.1} parent=5 // pred_region
        %s225 = ssub.s32 %s17, 1
        // Predicated region
        $region13: #{tpu_custom_call.1} parent=11 // pred_check
          %p226 = pneg %p78
        $region14: #{tpu_custom_call.1} parent=11 // pred_check_branch
          %228 = sbr.rel (%p226) target = $region16
        $region15: #{tpu_custom_call.1} parent=11 // pred_region
          _
        $region16: #{tpu_custom_call.1} parent=11 // pred_fallthru
          _
        // Predicated region
        $region17: #{tpu_custom_call.1} parent=11 // pred_check
          %p229 = pneg %p99
        $region18: #{tpu_custom_call.1} parent=11 // pred_check_branch
          %231 = sbr.rel (%p229) target = $region20
        $region19: #{tpu_custom_call.1} parent=11 // pred_region
          _
        $region20: #{tpu_custom_call.1} parent=11 // pred_fallthru
          _
        // Predicated region
        $region21: #{tpu_custom_call.1} parent=11 // pred_check
          %p232 = pneg %p120
        $region22: #{tpu_custom_call.1} parent=11 // pred_check_branch
          %234 = sbr.rel (%p232) target = $region24
        $region23: #{tpu_custom_call.1} parent=11 // pred_region
          _
        $region24: #{tpu_custom_call.1} parent=11 // pred_fallthru
          _
        // Predicated region
        $region25: #{tpu_custom_call.1} parent=11 // pred_check
          %p235 = pneg %p141
        $region26: #{tpu_custom_call.1} parent=11 // pred_check_branch
          %237 = sbr.rel (%p235) target = $region28
        $region27: #{tpu_custom_call.1} parent=11 // pred_region
          _
        $region28: #{tpu_custom_call.1} parent=11 // pred_fallthru
          _
        // Predicated region
        $region29: #{tpu_custom_call.1} parent=11 // pred_check
          %p238 = pneg %p162
        $region30: #{tpu_custom_call.1} parent=11 // pred_check_branch
          %240 = sbr.rel (%p238) target = $region32
        $region31: #{tpu_custom_call.1} parent=11 // pred_region
          %s242 = ssub.s32 18432, 18432
          %243 = vsyncadd [#allocation5], %s242
          %s244 = sshll.u32 [#allocation4], 4
          %s245 = int_to_ptr.vmem [resolvable:$true] %s244
          %250 = dma.hbm_to_vmem [thread:$0]  %s5, 18432, %s245, [#allocation5], 128, 128, 8
        $region32: #{tpu_custom_call.1} parent=11 // pred_fallthru
          _
        // Predicated region
        $region33: #{tpu_custom_call.1} parent=11 // pred_check
          %p251 = pneg %p183
        $region34: #{tpu_custom_call.1} parent=11 // pred_check_branch
          %253 = sbr.rel (%p251) target = $region36
        $region35: #{tpu_custom_call.1} parent=11 // pred_region
          _
        $region36: #{tpu_custom_call.1} parent=11 // pred_fallthru
          _
      $region12: #{tpu_custom_call.1} parent=5 // pred_fallthru
        _
      %p254 = scmp.lt.s32.totalorder %s17, 4
      // Predicated region
      $region37: #{tpu_custom_call.1} parent=5 // pred_check
        %p255 = pneg %p254
      $region38: #{tpu_custom_call.1} parent=5 // pred_check_branch
        %257 = sbr.rel (%p255) target = $region40
      $region39: #{tpu_custom_call.1} parent=5 // pred_region
        // Predicated region
        $region41: #{tpu_custom_call.1} parent=39 // pred_check
          %p258 = pneg %p51
        $region42: #{tpu_custom_call.1} parent=39 // pred_check_branch
          %260 = sbr.rel (%p258) target = $region44
        $region43: #{tpu_custom_call.1} parent=39 // pred_region
          %p261 = scmp.lt.s32.totalorder %s24, 1
          %s262 = scalar_select %p261, %s24, 1
          %p263 = scmp.lt.s32.totalorder %s25, 1
          %s264 = scalar_select %p263, %s25, 1
          %s265 = smul.addr %s264, 36
          %s266 = smul.addr %s262, 72
          %s267 = sadd.s32 %s265, %s266
          %s268 = smul.addr %s267, 8
          %s269 = scalar_lea.vmem %s0, %s268
        $region44: #{tpu_custom_call.1} parent=39 // pred_fallthru
          _
      $region40: #{tpu_custom_call.1} parent=5 // pred_fallthru
        _
      %p270 = scmp.le.s32.totalorder 1, %s17
      %p271 = scmp.lt.s32.totalorder %s17, 5
      %p272 = pnand %p270, %p271
      %p273 = pneg %p272
      // Predicated region
      $region45: #{tpu_custom_call.1} parent=5 // pred_check
        _
      $region46: #{tpu_custom_call.1} parent=5 // pred_check_branch
        %275 = sbr.rel (%p272) target = $region48
      $region47: #{tpu_custom_call.1} parent=5 // pred_region
        %s276 = ssub.s32 %s17, 1
        // Predicated region
        $region49: #{tpu_custom_call.1} parent=47 // pred_check
          %p277 = pneg %p162
        $region50: #{tpu_custom_call.1} parent=47 // pred_check_branch
          %279 = sbr.rel (%p277) target = $region52
        $region51: #{tpu_custom_call.1} parent=47 // pred_region
          %280 = dma.done [#allocation5], 18432
        $region52: #{tpu_custom_call.1} parent=47 // pred_fallthru
          _
        %p281 = scmp.lt.s32.totalorder %s26, 1
        %s282 = scalar_select %p281, %s26, 1
        %p283 = scmp.lt.s32.totalorder %s27, 1
        %s284 = scalar_select %p283, %s27, 1
        %s285 = smul.addr %s284, 36
        %s286 = smul.addr %s282, 72
        %s287 = sadd.s32 %s285, %s286
        %s288 = smul.addr %s287, 8
        %s289 = scalar_lea.vmem %s0, %s288
        %p290 = pneg %p57
        %p291 = pneg %p54
        %p292 = pneg %p78
        %p293 = pneg %p75
        %p294 = pneg %p99
        %p295 = pneg %p96
        %p296 = pneg %p120
        %p297 = pneg %p117
        %p298 = pneg %p141
        %p299 = pneg %p138
        %p300 = pneg %p162
        %p301 = pneg %p159
        %p302 = pneg %p183
        %p303 = pneg %p180
        %p304 = pneg %p211
        %p305 = pneg %p208
        %s306 = sand.u32 %s198, 1
        %s307 = scalar_lea.sflag [#allocation6], %s306
        %s308 = sand.u32 %s198, 1
        %s309 = smul.addr %s308, 128
        %s310 = scalar_lea.vmem [#allocation7], %s309
        %p311 = scmp.lt.s32.totalorder %s26, 1
        %s312 = scalar_select %p311, %s26, 1
        %p313 = scmp.lt.s32.totalorder %s27, 1
        %s314 = scalar_select %p313, %s27, 1
        %s315 = smul.addr %s314, 36
        %s316 = smul.addr %s312, 72
        %s317 = sadd.s32 %s315, %s316
        %s318 = smul.addr %s317, 8
        %s319 = scalar_lea.vmem %s0, %s318
        %s320 = smul.u32 8, %s27
        %v321 = vld [vmem:[%s319] sm:$0xff]
        %v322 = vld [vmem:[%s319 + $0x8] sm:$0xff]
        %v323 = vld [vmem:[%s319 + $0x10] sm:$0x3]
        %v324 = vld [vmem:[%s319 + $0x18] sm:$0xff]
        %v325 = vld [vmem:[%s319 + $0x20] sm:$0xff]
        %v326 = vld [vmem:[%s319 + $0x28] sm:$0x3]
        %v327 = vld [vmem:[%s319 + $0x30] sm:$0xff]
        %v328 = vld [vmem:[%s319 + $0x38] sm:$0xff]
        %v329 = vld [vmem:[%s319 + $0x40] sm:$0x3]
        %v330 = vld [vmem:[%s319 + $0x48] sm:$0xff]
        %v331 = vld [vmem:[%s319 + $0x50] sm:$0xff]
        %v332 = vld [vmem:[%s319 + $0x58] sm:$0x3]
        %v333 = vld [vmem:[%s319 + $0x60] sm:$0xff]
        %v334 = vld [vmem:[%s319 + $0x68] sm:$0xff]
        %v335 = vld [vmem:[%s319 + $0x70] sm:$0x3]
        %v336 = vld [vmem:[%s319 + $0x78] sm:$0xff]
        %v337 = vld [vmem:[%s319 + $0x80] sm:$0xff]
        %v338 = vld [vmem:[%s319 + $0x88] sm:$0x3]
        %v339 = vld [vmem:[%s319 + $0x90] sm:$0xff]
        %v340 = vld [vmem:[%s319 + $0x98] sm:$0xff]
        %v341 = vld [vmem:[%s319 + $0xa0] sm:$0x3]
        %v342 = vld [vmem:[%s319 + $0xa8] sm:$0xff]
        %v343 = vld [vmem:[%s319 + $0xb0] sm:$0xff]
        %v344 = vld [vmem:[%s319 + $0xb8] sm:$0x3]
        %v345 = vld [vmem:[%s319 + $0xc0] sm:$0xff]
        %v346 = vld [vmem:[%s319 + $0xc8] sm:$0xff]
        %v347 = vld [vmem:[%s319 + $0xd0] sm:$0x3]
        %v348 = vld [vmem:[%s319 + $0xd8] sm:$0xff]
        %v349 = vld [vmem:[%s319 + $0xe0] sm:$0xff]
        %v350 = vld [vmem:[%s319 + $0xe8] sm:$0x3]
        %v351 = vld [vmem:[%s319 + $0xf0] sm:$0xff]
        %v352 = vld [vmem:[%s319 + $0xf8] sm:$0xff]
        %v353 = vld [vmem:[%s319 + $0x100] sm:$0x3]
        %v354 = vld [vmem:[%s319 + $0x108] sm:$0xff]
        %v355 = vld [vmem:[%s319 + $0x110] sm:$0xff]
        %v356 = vld [vmem:[%s319 + $0x118] sm:$0x3]
        %v357 = vld [vmem:[%s1] sm:$0x1]
        %v358 = vld [vmem:[%s2] sm:$0x1]
        %v360 = vlaneseq
        %v361 = vshrl.u32 %v360, 7
        %v362 = vsub.s32 0, %v361
        %v363 = vrot.slane %v357, %v362
        %v365 = vmul.f32 %v321, %v363
        %v366 = vmul.f32 %v322, %v363
        %v367 = vmul.f32 %v323, %v363
        %v368 = vmul.f32 %v324, %v363
        %v369 = vmul.f32 %v325, %v363
        %v370 = vmul.f32 %v326, %v363
        %v371 = vmul.f32 %v327, %v363
        %v372 = vmul.f32 %v328, %v363
        %v373 = vmul.f32 %v329, %v363
        %v374 = vmul.f32 %v330, %v363
        %v375 = vmul.f32 %v331, %v363
        %v376 = vmul.f32 %v332, %v363
        %v377 = vmul.f32 %v333, %v363
        %v378 = vmul.f32 %v334, %v363
        %v379 = vmul.f32 %v335, %v363
        %v380 = vmul.f32 %v336, %v363
        %v381 = vmul.f32 %v337, %v363
        %v382 = vmul.f32 %v338, %v363
        %v383 = vmul.f32 %v339, %v363
        %v384 = vmul.f32 %v340, %v363
        %v385 = vmul.f32 %v341, %v363
        %v386 = vmul.f32 %v342, %v363
        %v387 = vmul.f32 %v343, %v363
        %v388 = vmul.f32 %v344, %v363
        %v389 = vmul.f32 %v345, %v363
        %v390 = vmul.f32 %v346, %v363
        %v391 = vmul.f32 %v347, %v363
        %v392 = vmul.f32 %v348, %v363
        %v393 = vmul.f32 %v349, %v363
        %v394 = vmul.f32 %v350, %v363
        %v395 = vmul.f32 %v351, %v363
        %v396 = vmul.f32 %v352, %v363
        %v397 = vmul.f32 %v353, %v363
        %v398 = vmul.f32 %v354, %v363
        %v399 = vmul.f32 %v355, %v363
        %v400 = vmul.f32 %v356, %v363
        %v402 = vlaneseq
        %v403 = vshrl.u32 %v402, 7
        %v404 = vsub.s32 0, %v403
        %v405 = vrot.slane %v358, %v404
        %v407 = vadd.f32 %v365, %v405
        %v408 = vadd.f32 %v366, %v405
        %v409 = vadd.f32 %v367, %v405
        %v410 = vadd.f32 %v368, %v405
        %v411 = vadd.f32 %v369, %v405
        %v412 = vadd.f32 %v370, %v405
        %v413 = vadd.f32 %v371, %v405
        %v414 = vadd.f32 %v372, %v405
        %v415 = vadd.f32 %v373, %v405
        %v416 = vadd.f32 %v374, %v405
        %v417 = vadd.f32 %v375, %v405
        %v418 = vadd.f32 %v376, %v405
        %v419 = vadd.f32 %v377, %v405
        %v420 = vadd.f32 %v378, %v405
        %v421 = vadd.f32 %v379, %v405
        %v422 = vadd.f32 %v380, %v405
        %v423 = vadd.f32 %v381, %v405
        %v424 = vadd.f32 %v382, %v405
        %v425 = vadd.f32 %v383, %v405
        %v426 = vadd.f32 %v384, %v405
        %v427 = vadd.f32 %v385, %v405
        %v428 = vadd.f32 %v386, %v405
        %v429 = vadd.f32 %v387, %v405
        %v430 = vadd.f32 %v388, %v405
        %v431 = vadd.f32 %v389, %v405
        %v432 = vadd.f32 %v390, %v405
        %v433 = vadd.f32 %v391, %v405
        %v434 = vadd.f32 %v392, %v405
        %v435 = vadd.f32 %v393, %v405
        %v436 = vadd.f32 %v394, %v405
        %v437 = vadd.f32 %v395, %v405
        %v438 = vadd.f32 %v396, %v405
        %v439 = vadd.f32 %v397, %v405
        %v440 = vadd.f32 %v398, %v405
        %v441 = vadd.f32 %v399, %v405
        %v442 = vadd.f32 %v400, %v405
        %v443 = vmax.f32 %v407, 0.0
        %v444 = vmax.f32 %v408, 0.0
        %v445 = vmax.f32 %v409, 0.0
        %v446 = vmax.f32 %v410, 0.0
        %v447 = vmax.f32 %v411, 0.0
        %v448 = vmax.f32 %v412, 0.0
        %v449 = vmax.f32 %v413, 0.0
        %v450 = vmax.f32 %v414, 0.0
        %v451 = vmax.f32 %v415, 0.0
        %v452 = vmax.f32 %v416, 0.0
        %v453 = vmax.f32 %v417, 0.0
        %v454 = vmax.f32 %v418, 0.0
        %v455 = vmax.f32 %v419, 0.0
        %v456 = vmax.f32 %v420, 0.0
        %v457 = vmax.f32 %v421, 0.0
        %v458 = vmax.f32 %v422, 0.0
        %v459 = vmax.f32 %v423, 0.0
        %v460 = vmax.f32 %v424, 0.0
        %v461 = vmax.f32 %v425, 0.0
        %v462 = vmax.f32 %v426, 0.0
        %v463 = vmax.f32 %v427, 0.0
        %v464 = vmax.f32 %v428, 0.0
        %v465 = vmax.f32 %v429, 0.0
        %v466 = vmax.f32 %v430, 0.0
        %v467 = vmax.f32 %v431, 0.0
        %v468 = vmax.f32 %v432, 0.0
        %v469 = vmax.f32 %v433, 0.0
        %v470 = vmax.f32 %v434, 0.0
        %v471 = vmax.f32 %v435, 0.0
        %v472 = vmax.f32 %v436, 0.0
        %v473 = vmax.f32 %v437, 0.0
        %v474 = vmax.f32 %v438, 0.0
        %v475 = vmax.f32 %v439, 0.0
        %v476 = vmax.f32 %v440, 0.0
        %v477 = vmax.f32 %v441, 0.0
        %v478 = vmax.f32 %v442, 0.0
        %479 = vst [vmem:[#allocation2] sm:$0xff] %v443
        %480 = vst [vmem:[#allocation2 + $0x8] sm:$0xff] %v444
        %481 = vst [vmem:[#allocation2 + $0x10] sm:$0x3] %v445
        %482 = vst [vmem:[#allocation2 + $0x18] sm:$0xff] %v446
        %483 = vst [vmem:[#allocation2 + $0x20] sm:$0xff] %v447
        %484 = vst [vmem:[#allocation2 + $0x28] sm:$0x3] %v448
        %485 = vst [vmem:[#allocation2 + $0x30] sm:$0xff] %v449
        %486 = vst [vmem:[#allocation2 + $0x38] sm:$0xff] %v450
        %487 = vst [vmem:[#allocation2 + $0x40] sm:$0x3] %v451
        %488 = vst [vmem:[#allocation2 + $0x48] sm:$0xff] %v452
        %489 = vst [vmem:[#allocation2 + $0x50] sm:$0xff] %v453
        %490 = vst [vmem:[#allocation2 + $0x58] sm:$0x3] %v454
        %491 = vst [vmem:[#allocation2 + $0x60] sm:$0xff] %v455
        %492 = vst [vmem:[#allocation2 + $0x68] sm:$0xff] %v456
        %493 = vst [vmem:[#allocation2 + $0x70] sm:$0x3] %v457
        %494 = vst [vmem:[#allocation2 + $0x78] sm:$0xff] %v458
        %495 = vst [vmem:[#allocation2 + $0x80] sm:$0xff] %v459
        %496 = vst [vmem:[#allocation2 + $0x88] sm:$0x3] %v460
        %497 = vst [vmem:[#allocation2 + $0x90] sm:$0xff] %v461
        %498 = vst [vmem:[#allocation2 + $0x98] sm:$0xff] %v462
        %499 = vst [vmem:[#allocation2 + $0xa0] sm:$0x3] %v463
        %500 = vst [vmem:[#allocation2 + $0xa8] sm:$0xff] %v464
        %501 = vst [vmem:[#allocation2 + $0xb0] sm:$0xff] %v465
        %502 = vst [vmem:[#allocation2 + $0xb8] sm:$0x3] %v466
        %503 = vst [vmem:[#allocation2 + $0xc0] sm:$0xff] %v467
        %504 = vst [vmem:[#allocation2 + $0xc8] sm:$0xff] %v468
        %505 = vst [vmem:[#allocation2 + $0xd0] sm:$0x3] %v469
        %506 = vst [vmem:[#allocation2 + $0xd8] sm:$0xff] %v470
        %507 = vst [vmem:[#allocation2 + $0xe0] sm:$0xff] %v471
        %508 = vst [vmem:[#allocation2 + $0xe8] sm:$0x3] %v472
        %509 = vst [vmem:[#allocation2 + $0xf0] sm:$0xff] %v473
        %510 = vst [vmem:[#allocation2 + $0xf8] sm:$0xff] %v474
        %511 = vst [vmem:[#allocation2 + $0x100] sm:$0x3] %v475
        %512 = vst [vmem:[#allocation2 + $0x108] sm:$0xff] %v476
        %513 = vst [vmem:[#allocation2 + $0x110] sm:$0xff] %v477
        %514 = vst [vmem:[#allocation2 + $0x118] sm:$0x3] %v478
        %515 = vst [vmem:[#allocation2] sm:$0x1] 0.0
        %516 = vst [vmem:[#allocation2 + $0x18] sm:$0x1] 0.0
        %517 = vst [vmem:[#allocation2 + $0x30] sm:$0x1] 0.0
        %518 = vst [vmem:[#allocation2 + $0x48] sm:$0x1] 0.0
        %519 = vst [vmem:[#allocation2 + $0x60] sm:$0x1] 0.0
        %520 = vst [vmem:[#allocation2 + $0x78] sm:$0x1] 0.0
        %521 = vst [vmem:[#allocation2 + $0x90] sm:$0x1] 0.0
        %522 = vst [vmem:[#allocation2 + $0xa8] sm:$0x1] 0.0
        %523 = vst [vmem:[#allocation2 + $0xc0] sm:$0x1] 0.0
        %524 = vst [vmem:[#allocation2 + $0xd8] sm:$0x1] 0.0
        %525 = vst [vmem:[#allocation2 + $0xf0] sm:$0x1] 0.0
        %526 = vst [vmem:[#allocation2 + $0x108] sm:$0x1] 0.0
        %527 = vst [vmem:[#allocation2 + $0x11] sm:$0x1] 0.0
        %528 = vst [vmem:[#allocation2 + $0x29] sm:$0x1] 0.0
        %529 = vst [vmem:[#allocation2 + $0x41] sm:$0x1] 0.0
        %530 = vst [vmem:[#allocation2 + $0x59] sm:$0x1] 0.0
        %531 = vst [vmem:[#allocation2 + $0x71] sm:$0x1] 0.0
        %532 = vst [vmem:[#allocation2 + $0x89] sm:$0x1] 0.0
        %533 = vst [vmem:[#allocation2 + $0xa1] sm:$0x1] 0.0
        %534 = vst [vmem:[#allocation2 + $0xb9] sm:$0x1] 0.0
        %535 = vst [vmem:[#allocation2 + $0xd1] sm:$0x1] 0.0
        %536 = vst [vmem:[#allocation2 + $0xe9] sm:$0x1] 0.0
        %537 = vst [vmem:[#allocation2 + $0x101] sm:$0x1] 0.0
        %538 = vst [vmem:[#allocation2 + $0x119] sm:$0x1] 0.0
        %p539 = scmp.eq.s32.totalorder %s27, 0
        // Predicated region
        $region53: #{tpu_custom_call.1} parent=47 // pred_check
          %p540 = pneg %p539
        $region54: #{tpu_custom_call.1} parent=47 // pred_check_branch
          %542 = sbr.rel (%p540) target = $region56
        $region55: #{tpu_custom_call.1} parent=47 // pred_region
          %543 = vst [vmem:[#allocation2] sm:$0xff] 0.0
          %544 = vst [vmem:[#allocation2 + $0x8] sm:$0xff] 0.0
          %545 = vst [vmem:[#allocation2 + $0x10] sm:$0x3] 0.0
          %546 = vst [vmem:[#allocation2 + $0x18] sm:$0xff] 0.0
          %547 = vst [vmem:[#allocation2 + $0x20] sm:$0xff] 0.0
          %548 = vst [vmem:[#allocation2 + $0x28] sm:$0x3] 0.0
        $region56: #{tpu_custom_call.1} parent=47 // pred_fallthru
          _
        %p549 = scmp.eq.s32.totalorder %s27, 1
        // Predicated region
        $region57: #{tpu_custom_call.1} parent=47 // pred_check
          %p550 = pneg %p549
        $region58: #{tpu_custom_call.1} parent=47 // pred_check_branch
          %552 = sbr.rel (%p550) target = $region60
        $region59: #{tpu_custom_call.1} parent=47 // pred_region
          %s553 = scalar_lea.vmem [#allocation2], 240
          %554 = vst [vmem:[%s553] sm:$0xff] 0.0
          %555 = vst [vmem:[%s553 + $0x8] sm:$0xff] 0.0
          %556 = vst [vmem:[%s553 + $0x10] sm:$0x3] 0.0
          %557 = vst [vmem:[%s553 + $0x18] sm:$0xff] 0.0
          %558 = vst [vmem:[%s553 + $0x20] sm:$0xff] 0.0
          %559 = vst [vmem:[%s553 + $0x28] sm:$0x3] 0.0
        $region60: #{tpu_custom_call.1} parent=47 // pred_fallthru
          _
        %v560 = vld [vmem:[#allocation2] sm:$0xff]
        %v561 = vld [vmem:[#allocation2 + $0x8] sm:$0xff]
        %v562 = vld [vmem:[#allocation2 + $0x18] sm:$0xff]
        %v563 = vld [vmem:[#allocation2 + $0x20] sm:$0xff]
        %v564 = vld [vmem:[#allocation2 + $0x30] sm:$0xff]
        %v565 = vld [vmem:[#allocation2 + $0x38] sm:$0xff]
        %v566 = vld [vmem:[#allocation2 + $0x48] sm:$0xff]
        %v567 = vld [vmem:[#allocation2 + $0x50] sm:$0xff]
        %v568 = vld [vmem:[#allocation2 + $0x60] sm:$0xff]
        %v569 = vld [vmem:[#allocation2 + $0x68] sm:$0xff]
        %v570 = vld [vmem:[#allocation2 + $0x78] sm:$0xff]
        %v571 = vld [vmem:[#allocation2 + $0x80] sm:$0xff]
        %v572 = vld [vmem:[#allocation2 + $0x90] sm:$0xff]
        %v573 = vld [vmem:[#allocation2 + $0x98] sm:$0xff]
        %v574 = vld [vmem:[#allocation2 + $0xa8] sm:$0xff]
        %v575 = vld [vmem:[#allocation2 + $0xb0] sm:$0xff]
        %v576 = vld [vmem:[#allocation2 + $0xc0] sm:$0xff]
        %v577 = vld [vmem:[#allocation2 + $0xc8] sm:$0xff]
        %v578 = vld [vmem:[#allocation2 + $0xd8] sm:$0xff]
        %v579 = vld [vmem:[#allocation2 + $0xe0] sm:$0xff]
        %v580 = vld [vmem:[%s3] sm:$0xff]
        %v581 = vld [vmem:[%s3 + $0x8] sm:$0xff]
        %v582 = vld [vmem:[%s3 + $0x10] sm:$0xff]
        %v583 = vld [vmem:[%s3 + $0x18] sm:$0xff]
        %v584 = vld [vmem:[%s3 + $0x20] sm:$0xff]
        %v585 = vld [vmem:[%s3 + $0x28] sm:$0xff]
        %v586 = vld [vmem:[%s3 + $0x30] sm:$0xff]
        %v587 = vld [vmem:[%s3 + $0x38] sm:$0xff]
        %v588 = vld [vmem:[%s3 + $0x40] sm:$0xff]
        %v589 = vld [vmem:[%s3 + $0x48] sm:$0xff]
        %v590 = vld [vmem:[%s3 + $0x50] sm:$0xff]
        %v591 = vld [vmem:[%s3 + $0x58] sm:$0xff]
        %v592 = vld [vmem:[%s3 + $0x60] sm:$0xff]
        %v593 = vld [vmem:[%s3 + $0x68] sm:$0xff]
        %v594 = vld [vmem:[%s3 + $0x70] sm:$0xff]
        %v595 = vld [vmem:[%s3 + $0x78] sm:$0xff]
        %v596 = vld [vmem:[#allocation2 + $0x1] sm:$0xff]
        %v597 = vld [vmem:[#allocation2 + $0x9] sm:$0xff]
        %v598 = vld [vmem:[#allocation2 + $0x19] sm:$0xff]
        %v599 = vld [vmem:[#allocation2 + $0x21] sm:$0xff]
        %v600 = vld [vmem:[#allocation2 + $0x31] sm:$0xff]
        %v601 = vld [vmem:[#allocation2 + $0x39] sm:$0xff]
        %v602 = vld [vmem:[#allocation2 + $0x49] sm:$0xff]
        %v603 = vld [vmem:[#allocation2 + $0x51] sm:$0xff]
        %v604 = vld [vmem:[#allocation2 + $0x61] sm:$0xff]
        %v605 = vld [vmem:[#allocation2 + $0x69] sm:$0xff]
        %v606 = vld [vmem:[#allocation2 + $0x79] sm:$0xff]
        %v607 = vld [vmem:[#allocation2 + $0x81] sm:$0xff]
        %v608 = vld [vmem:[#allocation2 + $0x91] sm:$0xff]
        %v609 = vld [vmem:[#allocation2 + $0x99] sm:$0xff]
        %v610 = vld [vmem:[#allocation2 + $0xa9] sm:$0xff]
        %v611 = vld [vmem:[#allocation2 + $0xb1] sm:$0xff]
        %v612 = vld [vmem:[#allocation2 + $0xc1] sm:$0xff]
        %v613 = vld [vmem:[#allocation2 + $0xc9] sm:$0xff]
        %v614 = vld [vmem:[#allocation2 + $0xd9] sm:$0xff]
        %v615 = vld [vmem:[#allocation2 + $0xe1] sm:$0xff]
        %s616 = scalar_lea.vmem %s3, 128
        %v617 = vld [vmem:[%s616] sm:$0xff]
        %v618 = vld [vmem:[%s616 + $0x8] sm:$0xff]
        %v619 = vld [vmem:[%s616 + $0x10] sm:$0xff]
        %v620 = vld [vmem:[%s616 + $0x18] sm:$0xff]
        %v621 = vld [vmem:[%s616 + $0x20] sm:$0xff]
        %v622 = vld [vmem:[%s616 + $0x28] sm:$0xff]
        %v623 = vld [vmem:[%s616 + $0x30] sm:$0xff]
        %v624 = vld [vmem:[%s616 + $0x38] sm:$0xff]
        %v625 = vld [vmem:[%s616 + $0x40] sm:$0xff]
        %v626 = vld [vmem:[%s616 + $0x48] sm:$0xff]
        %v627 = vld [vmem:[%s616 + $0x50] sm:$0xff]
        %v628 = vld [vmem:[%s616 + $0x58] sm:$0xff]
        %v629 = vld [vmem:[%s616 + $0x60] sm:$0xff]
        %v630 = vld [vmem:[%s616 + $0x68] sm:$0xff]
        %v631 = vld [vmem:[%s616 + $0x70] sm:$0xff]
        %v632 = vld [vmem:[%s616 + $0x78] sm:$0xff]
        %633 = vmatprep.subr.mxu0 0.0
        %634 = vmatpush1.msra.mxu0 %v617
        %635 = vmatprep.subr.mxu0 0.0
        %636 = vmatpush1.msra.mxu0 %v618
        %637 = vmatprep.subr.mxu0 0.0
        %638 = vmatpush1.msra.mxu0 %v619
        %639 = vmatprep.subr.mxu0 0.0
        %640 = vmatpush1.msra.mxu0 %v620
        %641 = vmatprep.subr.mxu0 0.0
        %642 = vmatpush1.msra.mxu0 %v621
        %643 = vmatprep.subr.mxu0 0.0
        %644 = vmatpush1.msra.mxu0 %v622
        %645 = vmatprep.subr.mxu0 0.0
        %646 = vmatpush1.msra.mxu0 %v623
        %647 = vmatprep.subr.mxu0 0.0
        %648 = vmatpush1.msra.mxu0 %v624
        %649 = vmatprep.subr.mxu0 0.0
        %650 = vmatpush1.msra.mxu0 %v625
        %651 = vmatprep.subr.mxu0 0.0
        %652 = vmatpush1.msra.mxu0 %v626
        %653 = vmatprep.subr.mxu0 0.0
        %654 = vmatpush1.msra.mxu0 %v627
        %655 = vmatprep.subr.mxu0 0.0
        %656 = vmatpush1.msra.mxu0 %v628
        %657 = vmatprep.subr.mxu0 0.0
        %658 = vmatpush1.msra.mxu0 %v629
        %659 = vmatprep.subr.mxu0 0.0
        %660 = vmatpush1.msra.mxu0 %v630
        %661 = vmatprep.subr.mxu0 0.0
        %662 = vmatpush1.msra.mxu0 %v631
        %663 = vmatprep.subr.mxu0 0.0
        %664 = vmatpush1.msra.mxu0 %v632
        %665 = vmatprep.subr.mxu0 0.0
        %666 = vmatpush1.msra.mxu0 0.0
        %667 = vmatprep.subr.mxu0 0.0
        %668 = vmatpush1.msra.mxu0 0.0
        %669 = vmatprep.subr.mxu0 0.0
        %670 = vmatpush1.msra.mxu0 0.0
        %671 = vmatprep.subr.mxu0 0.0
        %672 = vmatpush1.msra.mxu0 0.0
        %673 = vmatprep.subr.mxu0 0.0
        %674 = vmatpush1.msra.mxu0 0.0
        %675 = vmatprep.subr.mxu0 0.0
        %676 = vmatpush1.msra.mxu0 0.0
        %677 = vmatprep.subr.mxu0 0.0
        %678 = vmatpush1.msra.mxu0 0.0
        %679 = vmatprep.subr.mxu0 0.0
        %680 = vmatpush1.msra.mxu0 0.0
        %681 = vmatprep.subr.mxu0 0.0
        %682 = vmatpush1.msra.mxu0 0.0
        %683 = vmatprep.subr.mxu0 0.0
        %684 = vmatpush1.msra.mxu0 0.0
        %685 = vmatprep.subr.mxu0 0.0
        %686 = vmatpush1.msra.mxu0 0.0
        %687 = vmatprep.subr.mxu0 0.0
        %688 = vmatpush1.msra.mxu0 0.0
        %689 = vmatprep.subr.mxu0 0.0
        %690 = vmatpush1.msra.mxu0 0.0
        %691 = vmatprep.subr.mxu0 0.0
        %692 = vmatpush1.msra.mxu0 0.0
        %693 = vmatprep.subr.mxu0 0.0
        %694 = vmatpush1.msra.mxu0 0.0
        %695 = vmatprep.subr.mxu0 0.0
        %696 = vmatpush1.msra.mxu0 0.0
        %697 = vmatprep.mubr.f32.mxu0 0.0
        %698 = vmatmul.mubr.f32.gmra.mrb[0].mxu0 %v596
        %v699 = vpop.f32.mrb[0].mxu0
        %v700 = vadd.f32 0.0, %v699
        %v701 = vpop.f32.mrb[0].mxu0
        %702 = vmatprep.mubr.f32.mxu0 0.0
        %703 = vmatmul.mubr.f32.gmra.mrb[0].mxu0 %v597
        %v704 = vpop.f32.mrb[0].mxu0
        %v705 = vadd.f32 0.0, %v704
        %v706 = vpop.f32.mrb[0].mxu0
        %707 = vmatprep.mubr.f32.mxu0 0.0
        %708 = vmatmul.mubr.f32.gmra.mrb[0].mxu0 %v598
        %v709 = vpop.f32.mrb[0].mxu0
        %v710 = vadd.f32 0.0, %v709
        %v711 = vpop.f32.mrb[0].mxu0
        %712 = vmatprep.mubr.f32.mxu0 0.0
        %713 = vmatmul.mubr.f32.gmra.mrb[0].mxu0 %v599
        %v714 = vpop.f32.mrb[0].mxu0
        %v715 = vadd.f32 0.0, %v714
        %v716 = vpop.f32.mrb[0].mxu0
        %717 = vmatprep.mubr.f32.mxu0 0.0
        %718 = vmatmul.mubr.f32.gmra.mrb[0].mxu0 %v600
        %v719 = vpop.f32.mrb[0].mxu0
        %v720 = vadd.f32 0.0, %v719
        %v721 = vpop.f32.mrb[0].mxu0
        %722 = vmatprep.mubr.f32.mxu0 0.0
        %723 = vmatmul.mubr.f32.gmra.mrb[0].mxu0 %v601
        %v724 = vpop.f32.mrb[0].mxu0
        %v725 = vadd.f32 0.0, %v724
        %v726 = vpop.f32.mrb[0].mxu0
        %727 = vmatprep.mubr.f32.mxu0 0.0
        %728 = vmatmul.mubr.f32.gmra.mrb[0].mxu0 %v602
        %v729 = vpop.f32.mrb[0].mxu0
        %v730 = vadd.f32 0.0, %v729
        %v731 = vpop.f32.mrb[0].mxu0
        %732 = vmatprep.mubr.f32.mxu0 0.0
        %733 = vmatmul.mubr.f32.gmra.mrb[0].mxu0 %v603
        %v734 = vpop.f32.mrb[0].mxu0
        %v735 = vadd.f32 0.0, %v734
        %v736 = vpop.f32.mrb[0].mxu0
        %737 = vmatprep.mubr.f32.mxu0 0.0
        %738 = vmatmul.mubr.f32.gmra.mrb[0].mxu0 %v604
        %v739 = vpop.f32.mrb[0].mxu0
        %v740 = vadd.f32 0.0, %v739
        %v741 = vpop.f32.mrb[0].mxu0
        %742 = vmatprep.mubr.f32.mxu0 0.0
        %743 = vmatmul.mubr.f32.gmra.mrb[0].mxu0 %v605
        %v744 = vpop.f32.mrb[0].mxu0
        %v745 = vadd.f32 0.0, %v744
        %v746 = vpop.f32.mrb[0].mxu0
        %747 = vmatprep.mubr.f32.mxu0 0.0
        %748 = vmatmul.mubr.f32.gmra.mrb[0].mxu0 %v606
        %v749 = vpop.f32.mrb[0].mxu0
        %v750 = vadd.f32 0.0, %v749
        %v751 = vpop.f32.mrb[0].mxu0
        %752 = vmatprep.mubr.f32.mxu0 0.0
        %753 = vmatmul.mubr.f32.gmra.mrb[0].mxu0 %v607
        %v754 = vpop.f32.mrb[0].mxu0
        %v755 = vadd.f32 0.0, %v754
        %v756 = vpop.f32.mrb[0].mxu0
        %757 = vmatprep.mubr.f32.mxu0 0.0
        %758 = vmatmul.mubr.f32.gmra.mrb[0].mxu0 %v608
        %v759 = vpop.f32.mrb[0].mxu0
        %v760 = vadd.f32 0.0, %v759
        %v761 = vpop.f32.mrb[0].mxu0
        %762 = vmatprep.mubr.f32.mxu0 0.0
        %763 = vmatmul.mubr.f32.gmra.mrb[0].mxu0 %v609
        %v764 = vpop.f32.mrb[0].mxu0
        %v765 = vadd.f32 0.0, %v764
        %v766 = vpop.f32.mrb[0].mxu0
        %767 = vmatprep.mubr.f32.mxu0 0.0
        %768 = vmatmul.mubr.f32.gmra.mrb[0].mxu0 %v610
        %v769 = vpop.f32.mrb[0].mxu0
        %v770 = vadd.f32 0.0, %v769
        %v771 = vpop.f32.mrb[0].mxu0
        %772 = vmatprep.mubr.f32.mxu0 0.0
        %773 = vmatmul.mubr.f32.gmra.mrb[0].mxu0 %v611
        %v774 = vpop.f32.mrb[0].mxu0
        %v775 = vadd.f32 0.0, %v774
        %v776 = vpop.f32.mrb[0].mxu0
        %777 = vmatprep.mubr.f32.mxu0 0.0
        %778 = vmatmul.mubr.f32.gmra.mrb[0].mxu0 %v612
        %v779 = vpop.f32.mrb[0].mxu0
        %v780 = vadd.f32 0.0, %v779
        %v781 = vpop.f32.mrb[0].mxu0
        %782 = vmatprep.mubr.f32.mxu0 0.0
        %783 = vmatmul.mubr.f32.gmra.mrb[0].mxu0 %v613
        %v784 = vpop.f32.mrb[0].mxu0
        %v785 = vadd.f32 0.0, %v784
        %v786 = vpop.f32.mrb[0].mxu0
        %787 = vmatprep.mubr.f32.mxu0 0.0
        %788 = vmatmul.mubr.f32.gmra.mrb[0].mxu0 %v614
        %v789 = vpop.f32.mrb[0].mxu0
        %v790 = vadd.f32 0.0, %v789
        %v791 = vpop.f32.mrb[0].mxu0
        %792 = vmatprep.mubr.f32.mxu0 0.0
        %793 = vmatmul.mubr.f32.gmra.mrb[0].mxu0 %v615
        %v794 = vpop.f32.mrb[0].mxu0
        %v795 = vadd.f32 0.0, %v794
        %v796 = vpop.f32.mrb[0].mxu0
        %797 = vdwg.mxu0
        %798 = vmatprep.subr.mxu0 0.0
        %799 = vmatpush1.msra.mxu0 %v580
        %800 = vmatprep.subr.mxu0 0.0
        %801 = vmatpush1.msra.mxu0 %v581
        %802 = vmatprep.subr.mxu0 0.0
        %803 = vmatpush1.msra.mxu0 %v582
        %804 = vmatprep.subr.mxu0 0.0
        %805 = vmatpush1.msra.mxu0 %v583
        %806 = vmatprep.subr.mxu0 0.0
        %807 = vmatpush1.msra.mxu0 %v584
        %808 = vmatprep.subr.mxu0 0.0
        %809 = vmatpush1.msra.mxu0 %v585
        %810 = vmatprep.subr.mxu0 0.0
        %811 = vmatpush1.msra.mxu0 %v586
        %812 = vmatprep.subr.mxu0 0.0
        %813 = vmatpush1.msra.mxu0 %v587
        %814 = vmatprep.subr.mxu0 0.0
        %815 = vmatpush1.msra.mxu0 %v588
        %816 = vmatprep.subr.mxu0 0.0
        %817 = vmatpush1.msra.mxu0 %v589
        %818 = vmatprep.subr.mxu0 0.0
        %819 = vmatpush1.msra.mxu0 %v590
        %820 = vmatprep.subr.mxu0 0.0
        %821 = vmatpush1.msra.mxu0 %v591
        %822 = vmatprep.subr.mxu0 0.0
        %823 = vmatpush1.msra.mxu0 %v592
        %824 = vmatprep.subr.mxu0 0.0
        %825 = vmatpush1.msra.mxu0 %v593
        %826 = vmatprep.subr.mxu0 0.0
        %827 = vmatpush1.msra.mxu0 %v594
        %828 = vmatprep.subr.mxu0 0.0
        %829 = vmatpush1.msra.mxu0 %v595
        %830 = vmatprep.subr.mxu0 0.0
        %831 = vmatpush1.msra.mxu0 0.0
        %832 = vmatprep.subr.mxu0 0.0
        %833 = vmatpush1.msra.mxu0 0.0
        %834 = vmatprep.subr.mxu0 0.0
        %835 = vmatpush1.msra.mxu0 0.0
        %836 = vmatprep.subr.mxu0 0.0
        %837 = vmatpush1.msra.mxu0 0.0
        %838 = vmatprep.subr.mxu0 0.0
        %839 = vmatpush1.msra.mxu0 0.0
        %840 = vmatprep.subr.mxu0 0.0
        %841 = vmatpush1.msra.mxu0 0.0
        %842 = vmatprep.subr.mxu0 0.0
        %843 = vmatpush1.msra.mxu0 0.0
        %844 = vmatprep.subr.mxu0 0.0
        %845 = vmatpush1.msra.mxu0 0.0
        %846 = vmatprep.subr.mxu0 0.0
        %847 = vmatpush1.msra.mxu0 0.0
        %848 = vmatprep.subr.mxu0 0.0
        %849 = vmatpush1.msra.mxu0 0.0
        %850 = vmatprep.subr.mxu0 0.0
        %851 = vmatpush1.msra.mxu0 0.0
        %852 = vmatprep.subr.mxu0 0.0
        %853 = vmatpush1.msra.mxu0 0.0
        %854 = vmatprep.subr.mxu0 0.0
        %855 = vmatpush1.msra.mxu0 0.0
        %856 = vmatprep.subr.mxu0 0.0
        %857 = vmatpush1.msra.mxu0 0.0
        %858 = vmatprep.subr.mxu0 0.0
        %859 = vmatpush1.msra.mxu0 0.0
        %860 = vmatprep.subr.mxu0 0.0
        %861 = vmatpush1.msra.mxu0 0.0
        %862 = vmatprep.mubr.f32.mxu0 0.0
        %863 = vmatmul.mubr.f32.gmra.mrb[0].mxu0 %v560
        %v864 = vpop.f32.mrb[0].mxu0
        %v865 = vadd.f32 %v700, %v864
        %v866 = vpop.f32.mrb[0].mxu0
        %867 = vmatprep.mubr.f32.mxu0 0.0
        %868 = vmatmul.mubr.f32.gmra.mrb[0].mxu0 %v561
        %v869 = vpop.f32.mrb[0].mxu0
        %v870 = vadd.f32 %v705, %v869
        %v871 = vpop.f32.mrb[0].mxu0
        %872 = vmatprep.mubr.f32.mxu0 0.0
        %873 = vmatmul.mubr.f32.gmra.mrb[0].mxu0 %v562
        %v874 = vpop.f32.mrb[0].mxu0
        %v875 = vadd.f32 %v710, %v874
        %v876 = vpop.f32.mrb[0].mxu0
        %877 = vmatprep.mubr.f32.mxu0 0.0
        %878 = vmatmul.mubr.f32.gmra.mrb[0].mxu0 %v563
        %v879 = vpop.f32.mrb[0].mxu0
        %v880 = vadd.f32 %v715, %v879
        %v881 = vpop.f32.mrb[0].mxu0
        %882 = vmatprep.mubr.f32.mxu0 0.0
        %883 = vmatmul.mubr.f32.gmra.mrb[0].mxu0 %v564
        %v884 = vpop.f32.mrb[0].mxu0
        %v885 = vadd.f32 %v720, %v884
        %v886 = vpop.f32.mrb[0].mxu0
        %887 = vmatprep.mubr.f32.mxu0 0.0
        %888 = vmatmul.mubr.f32.gmra.mrb[0].mxu0 %v565
        %v889 = vpop.f32.mrb[0].mxu0
        %v890 = vadd.f32 %v725, %v889
        %v891 = vpop.f32.mrb[0].mxu0
        %892 = vmatprep.mubr.f32.mxu0 0.0
        %893 = vmatmul.mubr.f32.gmra.mrb[0].mxu0 %v566
        %v894 = vpop.f32.mrb[0].mxu0
        %v895 = vadd.f32 %v730, %v894
        %v896 = vpop.f32.mrb[0].mxu0
        %897 = vmatprep.mubr.f32.mxu0 0.0
        %898 = vmatmul.mubr.f32.gmra.mrb[0].mxu0 %v567
        %v899 = vpop.f32.mrb[0].mxu0
        %v900 = vadd.f32 %v735, %v899
        %v901 = vpop.f32.mrb[0].mxu0
        %902 = vmatprep.mubr.f32.mxu0 0.0
        %903 = vmatmul.mubr.f32.gmra.mrb[0].mxu0 %v568
        %v904 = vpop.f32.mrb[0].mxu0
        %v905 = vadd.f32 %v740, %v904
        %v906 = vpop.f32.mrb[0].mxu0
        %907 = vmatprep.mubr.f32.mxu0 0.0
        %908 = vmatmul.mubr.f32.gmra.mrb[0].mxu0 %v569
        %v909 = vpop.f32.mrb[0].mxu0
        %v910 = vadd.f32 %v745, %v909
        %v911 = vpop.f32.mrb[0].mxu0
        %912 = vmatprep.mubr.f32.mxu0 0.0
        %913 = vmatmul.mubr.f32.gmra.mrb[0].mxu0 %v570
        %v914 = vpop.f32.mrb[0].mxu0
        %v915 = vadd.f32 %v750, %v914
        %v916 = vpop.f32.mrb[0].mxu0
        %917 = vmatprep.mubr.f32.mxu0 0.0
        %918 = vmatmul.mubr.f32.gmra.mrb[0].mxu0 %v571
        %v919 = vpop.f32.mrb[0].mxu0
        %v920 = vadd.f32 %v755, %v919
        %v921 = vpop.f32.mrb[0].mxu0
        %922 = vmatprep.mubr.f32.mxu0 0.0
        %923 = vmatmul.mubr.f32.gmra.mrb[0].mxu0 %v572
        %v924 = vpop.f32.mrb[0].mxu0
        %v925 = vadd.f32 %v760, %v924
        %v926 = vpop.f32.mrb[0].mxu0
        %927 = vmatprep.mubr.f32.mxu0 0.0
        %928 = vmatmul.mubr.f32.gmra.mrb[0].mxu0 %v573
        %v929 = vpop.f32.mrb[0].mxu0
        %v930 = vadd.f32 %v765, %v929
        %v931 = vpop.f32.mrb[0].mxu0
        %932 = vmatprep.mubr.f32.mxu0 0.0
        %933 = vmatmul.mubr.f32.gmra.mrb[0].mxu0 %v574
        %v934 = vpop.f32.mrb[0].mxu0
        %v935 = vadd.f32 %v770, %v934
        %v936 = vpop.f32.mrb[0].mxu0
        %937 = vmatprep.mubr.f32.mxu0 0.0
        %938 = vmatmul.mubr.f32.gmra.mrb[0].mxu0 %v575
        %v939 = vpop.f32.mrb[0].mxu0
        %v940 = vadd.f32 %v775, %v939
        %v941 = vpop.f32.mrb[0].mxu0
        %942 = vmatprep.mubr.f32.mxu0 0.0
        %943 = vmatmul.mubr.f32.gmra.mrb[0].mxu0 %v576
        %v944 = vpop.f32.mrb[0].mxu0
        %v945 = vadd.f32 %v780, %v944
        %v946 = vpop.f32.mrb[0].mxu0
        %947 = vmatprep.mubr.f32.mxu0 0.0
        %948 = vmatmul.mubr.f32.gmra.mrb[0].mxu0 %v577
        %v949 = vpop.f32.mrb[0].mxu0
        %v950 = vadd.f32 %v785, %v949
        %v951 = vpop.f32.mrb[0].mxu0
        %952 = vmatprep.mubr.f32.mxu0 0.0
        %953 = vmatmul.mubr.f32.gmra.mrb[0].mxu0 %v578
        %v954 = vpop.f32.mrb[0].mxu0
        %v955 = vadd.f32 %v790, %v954
        %v956 = vpop.f32.mrb[0].mxu0
        %957 = vmatprep.mubr.f32.mxu0 0.0
        %958 = vmatmul.mubr.f32.gmra.mrb[0].mxu0 %v579
        %v959 = vpop.f32.mrb[0].mxu0
        %v960 = vadd.f32 %v795, %v959
        %v961 = vpop.f32.mrb[0].mxu0
        %962 = vdwg.mxu0
        %v963 = vld [vmem:[#allocation2 + $0x2] sm:$0xff]
        %v964 = vld [vmem:[#allocation2 + $0xa] sm:$0xff]
        %v965 = vld [vmem:[#allocation2 + $0x1a] sm:$0xff]
        %v966 = vld [vmem:[#allocation2 + $0x22] sm:$0xff]
        %v967 = vld [vmem:[#allocation2 + $0x32] sm:$0xff]
        %v968 = vld [vmem:[#allocation2 + $0x3a] sm:$0xff]
        %v969 = vld [vmem:[#allocation2 + $0x4a] sm:$0xff]
        %v970 = vld [vmem:[#allocation2 + $0x52] sm:$0xff]
        %v971 = vld [vmem:[#allocation2 + $0x62] sm:$0xff]
        %v972 = vld [vmem:[#allocation2 + $0x6a] sm:$0xff]
        %v973 = vld [vmem:[#allocation2 + $0x7a] sm:$0xff]
        %v974 = vld [vmem:[#allocation2 + $0x82] sm:$0xff]
        %v975 = vld [vmem:[#allocation2 + $0x92] sm:$0xff]
        %v976 = vld [vmem:[#allocation2 + $0x9a] sm:$0xff]
        %v977 = vld [vmem:[#allocation2 + $0xaa] sm:$0xff]
        %v978 = vld [vmem:[#allocation2 + $0xb2] sm:$0xff]
        %v979 = vld [vmem:[#allocation2 + $0xc2] sm:$0xff]
        %v980 = vld [vmem:[#allocation2 + $0xca] sm:$0xff]
        %v981 = vld [vmem:[#allocation2 + $0xda] sm:$0xff]
        %v982 = vld [vmem:[#allocation2 + $0xe2] sm:$0xff]
        %s983 = scalar_lea.vmem %s3, 256
        %v984 = vld [vmem:[%s983] sm:$0xff]
        %v985 = vld [vmem:[%s983 + $0x8] sm:$0xff]
        %v986 = vld [vmem:[%s983 + $0x10] sm:$0xff]
        %v987 = vld [vmem:[%s983 + $0x18] sm:$0xff]
        %v988 = vld [vmem:[%s983 + $0x20] sm:$0xff]
        %v989 = vld [vmem:[%s983 + $0x28] sm:$0xff]
        %v990 = vld [vmem:[%s983 + $0x30] sm:$0xff]
        %v991 = vld [vmem:[%s983 + $0x38] sm:$0xff]
        %v992 = vld [vmem:[%s983 + $0x40] sm:$0xff]
        %v993 = vld [vmem:[%s983 + $0x48] sm:$0xff]
        %v994 = vld [vmem:[%s983 + $0x50] sm:$0xff]
        %v995 = vld [vmem:[%s983 + $0x58] sm:$0xff]
        %v996 = vld [vmem:[%s983 + $0x60] sm:$0xff]
        %v997 = vld [vmem:[%s983 + $0x68] sm:$0xff]
        %v998 = vld [vmem:[%s983 + $0x70] sm:$0xff]
        %v999 = vld [vmem:[%s983 + $0x78] sm:$0xff]
        %1000 = vmatprep.subr.mxu0 0.0
        %1001 = vmatpush1.msra.mxu0 %v984
        %1002 = vmatprep.subr.mxu0 0.0
        %1003 = vmatpush1.msra.mxu0 %v985
        %1004 = vmatprep.subr.mxu0 0.0
        %1005 = vmatpush1.msra.mxu0 %v986
        %1006 = vmatprep.subr.mxu0 0.0
        %1007 = vmatpush1.msra.mxu0 %v987
        %1008 = vmatprep.subr.mxu0 0.0
        %1009 = vmatpush1.msra.mxu0 %v988
        %1010 = vmatprep.subr.mxu0 0.0
        %1011 = vmatpush1.msra.mxu0 %v989
        %1012 = vmatprep.subr.mxu0 0.0
        %1013 = vmatpush1.msra.mxu0 %v990
        %1014 = vmatprep.subr.mxu0 0.0
        %1015 = vmatpush1.msra.mxu0 %v991
        %1016 = vmatprep.subr.mxu0 0.0
        %1017 = vmatpush1.msra.mxu0 %v992
        %1018 = vmatprep.subr.mxu0 0.0
        %1019 = vmatpush1.msra.mxu0 %v993
        %1020 = vmatprep.subr.mxu0 0.0
        %1021 = vmatpush1.msra.mxu0 %v994
        %1022 = vmatprep.subr.mxu0 0.0
        %1023 = vmatpush1.msra.mxu0 %v995
        %1024 = vmatprep.subr.mxu0 0.0
        %1025 = vmatpush1.msra.mxu0 %v996
        %1026 = vmatprep.subr.mxu0 0.0
        %1027 = vmatpush1.msra.mxu0 %v997
        %1028 = vmatprep.subr.mxu0 0.0
        %1029 = vmatpush1.msra.mxu0 %v998
        %1030 = vmatprep.subr.mxu0 0.0
        %1031 = vmatpush1.msra.mxu0 %v999
        %1032 = vmatprep.subr.mxu0 0.0
        %1033 = vmatpush1.msra.mxu0 0.0
        %1034 = vmatprep.subr.mxu0 0.0
        %1035 = vmatpush1.msra.mxu0 0.0
        %1036 = vmatprep.subr.mxu0 0.0
        %1037 = vmatpush1.msra.mxu0 0.0
        %1038 = vmatprep.subr.mxu0 0.0
        %1039 = vmatpush1.msra.mxu0 0.0
        %1040 = vmatprep.subr.mxu0 0.0
        %1041 = vmatpush1.msra.mxu0 0.0
        %1042 = vmatprep.subr.mxu0 0.0
        %1043 = vmatpush1.msra.mxu0 0.0
        %1044 = vmatprep.subr.mxu0 0.0
        %1045 = vmatpush1.msra.mxu0 0.0
        %1046 = vmatprep.subr.mxu0 0.0
        %1047 = vmatpush1.msra.mxu0 0.0
        %1048 = vmatprep.subr.mxu0 0.0
        %1049 = vmatpush1.msra.mxu0 0.0
        %1050 = vmatprep.subr.mxu0 0.0
        %1051 = vmatpush1.msra.mxu0 0.0
        %1052 = vmatprep.subr.mxu0 0.0
        %1053 = vmatpush1.msra.mxu0 0.0
        %1054 = vmatprep.subr.mxu0 0.0
        %1055 = vmatpush1.msra.mxu0 0.0
        %1056 = vmatprep.subr.mxu0 0.0
        %1057 = vmatpush1.msra.mxu0 0.0
        %1058 = vmatprep.subr.mxu0 0.0
        %1059 = vmatpush1.msra.mxu0 0.0
        %1060 = vmatprep.subr.mxu0 0.0
        %1061 = vmatpush1.msra.mxu0 0.0
        %1062 = vmatprep.subr.mxu0 0.0
        %1063 = vmatpush1.msra.mxu0 0.0
        %1064 = vmatprep.mubr.f32.mxu0 0.0
        %1065 = vmatmul.mubr.f32.gmra.mrb[0].mxu0 %v963
        %v1066 = vpop.f32.mrb[0].mxu0
        %v1067 = vadd.f32 0.0, %v1066
        %v1068 = vpop.f32.mrb[0].mxu0
        %1069 = vmatprep.mubr.f32.mxu0 0.0
        %1070 = vmatmul.mubr.f32.gmra.mrb[0].mxu0 %v964
        %v1071 = vpop.f32.mrb[0].mxu0
        %v1072 = vadd.f32 0.0, %v1071
        %v1073 = vpop.f32.mrb[0].mxu0
        %1074 = vmatprep.mubr.f32.mxu0 0.0
        %1075 = vmatmul.mubr.f32.gmra.mrb[0].mxu0 %v965
        %v1076 = vpop.f32.mrb[0].mxu0
        %v1077 = vadd.f32 0.0, %v1076
        %v1078 = vpop.f32.mrb[0].mxu0
        %1079 = vmatprep.mubr.f32.mxu0 0.0
        %1080 = vmatmul.mubr.f32.gmra.mrb[0].mxu0 %v966
        %v1081 = vpop.f32.mrb[0].mxu0
        %v1082 = vadd.f32 0.0, %v1081
        %v1083 = vpop.f32.mrb[0].mxu0
        %1084 = vmatprep.mubr.f32.mxu0 0.0
        %1085 = vmatmul.mubr.f32.gmra.mrb[0].mxu0 %v967
        %v1086 = vpop.f32.mrb[0].mxu0
        %v1087 = vadd.f32 0.0, %v1086
        %v1088 = vpop.f32.mrb[0].mxu0
        %1089 = vmatprep.mubr.f32.mxu0 0.0
        %1090 = vmatmul.mubr.f32.gmra.mrb[0].mxu0 %v968
        %v1091 = vpop.f32.mrb[0].mxu0
        %v1092 = vadd.f32 0.0, %v1091
        %v1093 = vpop.f32.mrb[0].mxu0
        %1094 = vmatprep.mubr.f32.mxu0 0.0
        %1095 = vmatmul.mubr.f32.gmra.mrb[0].mxu0 %v969
        %v1096 = vpop.f32.mrb[0].mxu0
        %v1097 = vadd.f32 0.0, %v1096
        %v1098 = vpop.f32.mrb[0].mxu0
        %1099 = vmatprep.mubr.f32.mxu0 0.0
        %1100 = vmatmul.mubr.f32.gmra.mrb[0].mxu0 %v970
        %v1101 = vpop.f32.mrb[0].mxu0
        %v1102 = vadd.f32 0.0, %v1101
        %v1103 = vpop.f32.mrb[0].mxu0
        %1104 = vmatprep.mubr.f32.mxu0 0.0
        %1105 = vmatmul.mubr.f32.gmra.mrb[0].mxu0 %v971
        %v1106 = vpop.f32.mrb[0].mxu0
        %v1107 = vadd.f32 0.0, %v1106
        %v1108 = vpop.f32.mrb[0].mxu0
        %1109 = vmatprep.mubr.f32.mxu0 0.0
        %1110 = vmatmul.mubr.f32.gmra.mrb[0].mxu0 %v972
        %v1111 = vpop.f32.mrb[0].mxu0
        %v1112 = vadd.f32 0.0, %v1111
        %v1113 = vpop.f32.mrb[0].mxu0
        %1114 = vmatprep.mubr.f32.mxu0 0.0
        %1115 = vmatmul.mubr.f32.gmra.mrb[0].mxu0 %v973
        %v1116 = vpop.f32.mrb[0].mxu0
        %v1117 = vadd.f32 0.0, %v1116
        %v1118 = vpop.f32.mrb[0].mxu0
        %1119 = vmatprep.mubr.f32.mxu0 0.0
        %1120 = vmatmul.mubr.f32.gmra.mrb[0].mxu0 %v974
        %v1121 = vpop.f32.mrb[0].mxu0
        %v1122 = vadd.f32 0.0, %v1121
        %v1123 = vpop.f32.mrb[0].mxu0
        %1124 = vmatprep.mubr.f32.mxu0 0.0
        %1125 = vmatmul.mubr.f32.gmra.mrb[0].mxu0 %v975
        %v1126 = vpop.f32.mrb[0].mxu0
        %v1127 = vadd.f32 0.0, %v1126
        %v1128 = vpop.f32.mrb[0].mxu0
        %1129 = vmatprep.mubr.f32.mxu0 0.0
        %1130 = vmatmul.mubr.f32.gmra.mrb[0].mxu0 %v976
        %v1131 = vpop.f32.mrb[0].mxu0
        %v1132 = vadd.f32 0.0, %v1131
        %v1133 = vpop.f32.mrb[0].mxu0
        %1134 = vmatprep.mubr.f32.mxu0 0.0
        %1135 = vmatmul.mubr.f32.gmra.mrb[0].mxu0 %v977
        %v1136 = vpop.f32.mrb[0].mxu0
        %v1137 = vadd.f32 0.0, %v1136
        %v1138 = vpop.f32.mrb[0].mxu0
        %1139 = vmatprep.mubr.f32.mxu0 0.0
        %1140 = vmatmul.mubr.f32.gmra.mrb[0].mxu0 %v978
        %v1141 = vpop.f32.mrb[0].mxu0
        %v1142 = vadd.f32 0.0, %v1141
        %v1143 = vpop.f32.mrb[0].mxu0
        %1144 = vmatprep.mubr.f32.mxu0 0.0
        %1145 = vmatmul.mubr.f32.gmra.mrb[0].mxu0 %v979
        %v1146 = vpop.f32.mrb[0].mxu0
        %v1147 = vadd.f32 0.0, %v1146
        %v1148 = vpop.f32.mrb[0].mxu0
        %1149 = vmatprep.mubr.f32.mxu0 0.0
        %1150 = vmatmul.mubr.f32.gmra.mrb[0].mxu0 %v980
        %v1151 = vpop.f32.mrb[0].mxu0
        %v1152 = vadd.f32 0.0, %v1151
        %v1153 = vpop.f32.mrb[0].mxu0
        %1154 = vmatprep.mubr.f32.mxu0 0.0
        %1155 = vmatmul.mubr.f32.gmra.mrb[0].mxu0 %v981
        %v1156 = vpop.f32.mrb[0].mxu0
        %v1157 = vadd.f32 0.0, %v1156
        %v1158 = vpop.f32.mrb[0].mxu0
        %1159 = vmatprep.mubr.f32.mxu0 0.0
        %1160 = vmatmul.mubr.f32.gmra.mrb[0].mxu0 %v982
        %v1161 = vpop.f32.mrb[0].mxu0
        %v1162 = vadd.f32 0.0, %v1161
        %v1163 = vpop.f32.mrb[0].mxu0
        %1164 = vdwg.mxu0
        %v1165 = vadd.f32 %v865, %v1067
        %v1166 = vadd.f32 %v870, %v1072
        %v1167 = vadd.f32 %v875, %v1077
        %v1168 = vadd.f32 %v880, %v1082
        %v1169 = vadd.f32 %v885, %v1087
        %v1170 = vadd.f32 %v890, %v1092
        %v1171 = vadd.f32 %v895, %v1097
        %v1172 = vadd.f32 %v900, %v1102
        %v1173 = vadd.f32 %v905, %v1107
        %v1174 = vadd.f32 %v910, %v1112
        %v1175 = vadd.f32 %v915, %v1117
        %v1176 = vadd.f32 %v920, %v1122
        %v1177 = vadd.f32 %v925, %v1127
        %v1178 = vadd.f32 %v930, %v1132
        %v1179 = vadd.f32 %v935, %v1137
        %v1180 = vadd.f32 %v940, %v1142
        %v1181 = vadd.f32 %v945, %v1147
        %v1182 = vadd.f32 %v950, %v1152
        %v1183 = vadd.f32 %v955, %v1157
        %v1184 = vadd.f32 %v960, %v1162
        %s1185 = scalar_lea.vmem [#allocation2], 24
        %v1186 = vld [vmem:[%s1185] sm:$0xff]
        %v1187 = vld [vmem:[%s1185 + $0x8] sm:$0xff]
        %v1188 = vld [vmem:[%s1185 + $0x18] sm:$0xff]
        %v1189 = vld [vmem:[%s1185 + $0x20] sm:$0xff]
        %v1190 = vld [vmem:[%s1185 + $0x30] sm:$0xff]
        %v1191 = vld [vmem:[%s1185 + $0x38] sm:$0xff]
        %v1192 = vld [vmem:[%s1185 + $0x48] sm:$0xff]
        %v1193 = vld [vmem:[%s1185 + $0x50] sm:$0xff]
        %v1194 = vld [vmem:[%s1185 + $0x60] sm:$0xff]
        %v1195 = vld [vmem:[%s1185 + $0x68] sm:$0xff]
        %v1196 = vld [vmem:[%s1185 + $0x78] sm:$0xff]
        %v1197 = vld [vmem:[%s1185 + $0x80] sm:$0xff]
        %v1198 = vld [vmem:[%s1185 + $0x90] sm:$0xff]
        %v1199 = vld [vmem:[%s1185 + $0x98] sm:$0xff]
        %v1200 = vld [vmem:[%s1185 + $0xa8] sm:$0xff]
        %v1201 = vld [vmem:[%s1185 + $0xb0] sm:$0xff]
        %v1202 = vld [vmem:[%s1185 + $0xc0] sm:$0xff]
        %v1203 = vld [vmem:[%s1185 + $0xc8] sm:$0xff]
        %v1204 = vld [vmem:[%s1185 + $0xd8] sm:$0xff]
        %v1205 = vld [vmem:[%s1185 + $0xe0] sm:$0xff]
        %s1206 = scalar_lea.vmem %s3, 384
        %v1207 = vld [vmem:[%s1206] sm:$0xff]
        %v1208 = vld [vmem:[%s1206 + $0x8] sm:$0xff]
        %v1209 = vld [vmem:[%s1206 + $0x10] sm:$0xff]
        %v1210 = vld [vmem:[%s1206 + $0x18] sm:$0xff]
        %v1211 = vld [vmem:[%s1206 + $0x20] sm:$0xff]
        %v1212 = vld [vmem:[%s1206 + $0x28] sm:$0xff]
        %v1213 = vld [vmem:[%s1206 + $0x30] sm:$0xff]
        %v1214 = vld [vmem:[%s1206 + $0x38] sm:$0xff]
        %v1215 = vld [vmem:[%s1206 + $0x40] sm:$0xff]
        %v1216 = vld [vmem:[%s1206 + $0x48] sm:$0xff]
        %v1217 = vld [vmem:[%s1206 + $0x50] sm:$0xff]
        %v1218 = vld [vmem:[%s1206 + $0x58] sm:$0xff]
        %v1219 = vld [vmem:[%s1206 + $0x60] sm:$0xff]
        %v1220 = vld [vmem:[%s1206 + $0x68] sm:$0xff]
        %v1221 = vld [vmem:[%s1206 + $0x70] sm:$0xff]
        %v1222 = vld [vmem:[%s1206 + $0x78] sm:$0xff]
        %1223 = vmatprep.subr.mxu0 0.0
        %1224 = vmatpush1.msra.mxu0 %v1207
        %1225 = vmatprep.subr.mxu0 0.0
        %1226 = vmatpush1.msra.mxu0 %v1208
        %1227 = vmatprep.subr.mxu0 0.0
        %1228 = vmatpush1.msra.mxu0 %v1209
        %1229 = vmatprep.subr.mxu0 0.0
        %1230 = vmatpush1.msra.mxu0 %v1210
        %1231 = vmatprep.subr.mxu0 0.0
        %1232 = vmatpush1.msra.mxu0 %v1211
        %1233 = vmatprep.subr.mxu0 0.0
        %1234 = vmatpush1.msra.mxu0 %v1212
        %1235 = vmatprep.subr.mxu0 0.0
        %1236 = vmatpush1.msra.mxu0 %v1213
        %1237 = vmatprep.subr.mxu0 0.0
        %1238 = vmatpush1.msra.mxu0 %v1214
        %1239 = vmatprep.subr.mxu0 0.0
        %1240 = vmatpush1.msra.mxu0 %v1215
        %1241 = vmatprep.subr.mxu0 0.0
        %1242 = vmatpush1.msra.mxu0 %v1216
        %1243 = vmatprep.subr.mxu0 0.0
        %1244 = vmatpush1.msra.mxu0 %v1217
        %1245 = vmatprep.subr.mxu0 0.0
        %1246 = vmatpush1.msra.mxu0 %v1218
        %1247 = vmatprep.subr.mxu0 0.0
        %1248 = vmatpush1.msra.mxu0 %v1219
        %1249 = vmatprep.subr.mxu0 0.0
        %1250 = vmatpush1.msra.mxu0 %v1220
        %1251 = vmatprep.subr.mxu0 0.0
        %1252 = vmatpush1.msra.mxu0 %v1221
        %1253 = vmatprep.subr.mxu0 0.0
        %1254 = vmatpush1.msra.mxu0 %v1222
        %1255 = vmatprep.subr.mxu0 0.0
        %1256 = vmatpush1.msra.mxu0 0.0
        %1257 = vmatprep.subr.mxu0 0.0
        %1258 = vmatpush1.msra.mxu0 0.0
        %1259 = vmatprep.subr.mxu0 0.0
        %1260 = vmatpush1.msra.mxu0 0.0
        %1261 = vmatprep.subr.mxu0 0.0
        %1262 = vmatpush1.msra.mxu0 0.0
        %1263 = vmatprep.subr.mxu0 0.0
        %1264 = vmatpush1.msra.mxu0 0.0
        %1265 = vmatprep.subr.mxu0 0.0
        %1266 = vmatpush1.msra.mxu0 0.0
        %1267 = vmatprep.subr.mxu0 0.0
        %1268 = vmatpush1.msra.mxu0 0.0
        %1269 = vmatprep.subr.mxu0 0.0
        %1270 = vmatpush1.msra.mxu0 0.0
        %1271 = vmatprep.subr.mxu0 0.0
        %1272 = vmatpush1.msra.mxu0 0.0
        %1273 = vmatprep.subr.mxu0 0.0
        %1274 = vmatpush1.msra.mxu0 0.0
        %1275 = vmatprep.subr.mxu0 0.0
        %1276 = vmatpush1.msra.mxu0 0.0
        %1277 = vmatprep.subr.mxu0 0.0
        %1278 = vmatpush1.msra.mxu0 0.0
        %1279 = vmatprep.subr.mxu0 0.0
        %1280 = vmatpush1.msra.mxu0 0.0
        %1281 = vmatprep.subr.mxu0 0.0
        %1282 = vmatpush1.msra.mxu0 0.0
        %1283 = vmatprep.subr.mxu0 0.0
        %1284 = vmatpush1.msra.mxu0 0.0
        %1285 = vmatprep.subr.mxu0 0.0
        %1286 = vmatpush1.msra.mxu0 0.0
        %1287 = vmatprep.mubr.f32.mxu0 0.0
        %1288 = vmatmul.mubr.f32.gmra.mrb[0].mxu0 %v1186
        %v1289 = vpop.f32.mrb[0].mxu0
        %v1290 = vadd.f32 0.0, %v1289
        %v1291 = vpop.f32.mrb[0].mxu0
        %1292 = vmatprep.mubr.f32.mxu0 0.0
        %1293 = vmatmul.mubr.f32.gmra.mrb[0].mxu0 %v1187
        %v1294 = vpop.f32.mrb[0].mxu0
        %v1295 = vadd.f32 0.0, %v1294
        %v1296 = vpop.f32.mrb[0].mxu0
        %1297 = vmatprep.mubr.f32.mxu0 0.0
        %1298 = vmatmul.mubr.f32.gmra.mrb[0].mxu0 %v1188
        %v1299 = vpop.f32.mrb[0].mxu0
        %v1300 = vadd.f32 0.0, %v1299
        %v1301 = vpop.f32.mrb[0].mxu0
        %1302 = vmatprep.mubr.f32.mxu0 0.0
        %1303 = vmatmul.mubr.f32.gmra.mrb[0].mxu0 %v1189
        %v1304 = vpop.f32.mrb[0].mxu0
        %v1305 = vadd.f32 0.0, %v1304
        %v1306 = vpop.f32.mrb[0].mxu0
        %1307 = vmatprep.mubr.f32.mxu0 0.0
        %1308 = vmatmul.mubr.f32.gmra.mrb[0].mxu0 %v1190
        %v1309 = vpop.f32.mrb[0].mxu0
        %v1310 = vadd.f32 0.0, %v1309
        %v1311 = vpop.f32.mrb[0].mxu0
        %1312 = vmatprep.mubr.f32.mxu0 0.0
        %1313 = vmatmul.mubr.f32.gmra.mrb[0].mxu0 %v1191
        %v1314 = vpop.f32.mrb[0].mxu0
        %v1315 = vadd.f32 0.0, %v1314
        %v1316 = vpop.f32.mrb[0].mxu0
        %1317 = vmatprep.mubr.f32.mxu0 0.0
        %1318 = vmatmul.mubr.f32.gmra.mrb[0].mxu0 %v1192
        %v1319 = vpop.f32.mrb[0].mxu0
        %v1320 = vadd.f32 0.0, %v1319
        %v1321 = vpop.f32.mrb[0].mxu0
        %1322 = vmatprep.mubr.f32.mxu0 0.0
        %1323 = vmatmul.mubr.f32.gmra.mrb[0].mxu0 %v1193
        %v1324 = vpop.f32.mrb[0].mxu0
        %v1325 = vadd.f32 0.0, %v1324
        %v1326 = vpop.f32.mrb[0].mxu0
        %1327 = vmatprep.mubr.f32.mxu0 0.0
        %1328 = vmatmul.mubr.f32.gmra.mrb[0].mxu0 %v1194
        %v1329 = vpop.f32.mrb[0].mxu0
        %v1330 = vadd.f32 0.0, %v1329
        %v1331 = vpop.f32.mrb[0].mxu0
        %1332 = vmatprep.mubr.f32.mxu0 0.0
        %1333 = vmatmul.mubr.f32.gmra.mrb[0].mxu0 %v1195
        %v1334 = vpop.f32.mrb[0].mxu0
        %v1335 = vadd.f32 0.0, %v1334
        %v1336 = vpop.f32.mrb[0].mxu0
        %1337 = vmatprep.mubr.f32.mxu0 0.0
        %1338 = vmatmul.mubr.f32.gmra.mrb[0].mxu0 %v1196
        %v1339 = vpop.f32.mrb[0].mxu0
        %v1340 = vadd.f32 0.0, %v1339
        %v1341 = vpop.f32.mrb[0].mxu0
        %1342 = vmatprep.mubr.f32.mxu0 0.0
        %1343 = vmatmul.mubr.f32.gmra.mrb[0].mxu0 %v1197
        %v1344 = vpop.f32.mrb[0].mxu0
        %v1345 = vadd.f32 0.0, %v1344
        %v1346 = vpop.f32.mrb[0].mxu0
        %1347 = vmatprep.mubr.f32.mxu0 0.0
        %1348 = vmatmul.mubr.f32.gmra.mrb[0].mxu0 %v1198
        %v1349 = vpop.f32.mrb[0].mxu0
        %v1350 = vadd.f32 0.0, %v1349
        %v1351 = vpop.f32.mrb[0].mxu0
        %1352 = vmatprep.mubr.f32.mxu0 0.0
        %1353 = vmatmul.mubr.f32.gmra.mrb[0].mxu0 %v1199
        %v1354 = vpop.f32.mrb[0].mxu0
        %v1355 = vadd.f32 0.0, %v1354
        %v1356 = vpop.f32.mrb[0].mxu0
        %1357 = vmatprep.mubr.f32.mxu0 0.0
        %1358 = vmatmul.mubr.f32.gmra.mrb[0].mxu0 %v1200
        %v1359 = vpop.f32.mrb[0].mxu0
        %v1360 = vadd.f32 0.0, %v1359
        %v1361 = vpop.f32.mrb[0].mxu0
        %1362 = vmatprep.mubr.f32.mxu0 0.0
        %1363 = vmatmul.mubr.f32.gmra.mrb[0].mxu0 %v1201
        %v1364 = vpop.f32.mrb[0].mxu0
        %v1365 = vadd.f32 0.0, %v1364
        %v1366 = vpop.f32.mrb[0].mxu0
        %1367 = vmatprep.mubr.f32.mxu0 0.0
        %1368 = vmatmul.mubr.f32.gmra.mrb[0].mxu0 %v1202
        %v1369 = vpop.f32.mrb[0].mxu0
        %v1370 = vadd.f32 0.0, %v1369
        %v1371 = vpop.f32.mrb[0].mxu0
        %1372 = vmatprep.mubr.f32.mxu0 0.0
        %1373 = vmatmul.mubr.f32.gmra.mrb[0].mxu0 %v1203
        %v1374 = vpop.f32.mrb[0].mxu0
        %v1375 = vadd.f32 0.0, %v1374
        %v1376 = vpop.f32.mrb[0].mxu0
        %1377 = vmatprep.mubr.f32.mxu0 0.0
        %1378 = vmatmul.mubr.f32.gmra.mrb[0].mxu0 %v1204
        %v1379 = vpop.f32.mrb[0].mxu0
        %v1380 = vadd.f32 0.0, %v1379
        %v1381 = vpop.f32.mrb[0].mxu0
        %1382 = vmatprep.mubr.f32.mxu0 0.0
        %1383 = vmatmul.mubr.f32.gmra.mrb[0].mxu0 %v1205
        %v1384 = vpop.f32.mrb[0].mxu0
        %v1385 = vadd.f32 0.0, %v1384
        %v1386 = vpop.f32.mrb[0].mxu0
        %1387 = vdwg.mxu0
        %v1388 = vadd.f32 %v1165, %v1290
        %v1389 = vadd.f32 %v1166, %v1295
        %v1390 = vadd.f32 %v1167, %v1300
        %v1391 = vadd.f32 %v1168, %v1305
        %v1392 = vadd.f32 %v1169, %v1310
        %v1393 = vadd.f32 %v1170, %v1315
        %v1394 = vadd.f32 %v1171, %v1320
        %v1395 = vadd.f32 %v1172, %v1325
        %v1396 = vadd.f32 %v1173, %v1330
        %v1397 = vadd.f32 %v1174, %v1335
        %v1398 = vadd.f32 %v1175, %v1340
        %v1399 = vadd.f32 %v1176, %v1345
        %v1400 = vadd.f32 %v1177, %v1350
        %v1401 = vadd.f32 %v1178, %v1355
        %v1402 = vadd.f32 %v1179, %v1360
        %v1403 = vadd.f32 %v1180, %v1365
        %v1404 = vadd.f32 %v1181, %v1370
        %v1405 = vadd.f32 %v1182, %v1375
        %v1406 = vadd.f32 %v1183, %v1380
        %v1407 = vadd.f32 %v1184, %v1385
        %v1408 = vld [vmem:[%s1185 + $0x1] sm:$0xff]
        %v1409 = vld [vmem:[%s1185 + $0x9] sm:$0xff]
        %v1410 = vld [vmem:[%s1185 + $0x19] sm:$0xff]
        %v1411 = vld [vmem:[%s1185 + $0x21] sm:$0xff]
        %v1412 = vld [vmem:[%s1185 + $0x31] sm:$0xff]
        %v1413 = vld [vmem:[%s1185 + $0x39] sm:$0xff]
        %v1414 = vld [vmem:[%s1185 + $0x49] sm:$0xff]
        %v1415 = vld [vmem:[%s1185 + $0x51] sm:$0xff]
        %v1416 = vld [vmem:[%s1185 + $0x61] sm:$0xff]
        %v1417 = vld [vmem:[%s1185 + $0x69] sm:$0xff]
        %v1418 = vld [vmem:[%s1185 + $0x79] sm:$0xff]
        %v1419 = vld [vmem:[%s1185 + $0x81] sm:$0xff]
        %v1420 = vld [vmem:[%s1185 + $0x91] sm:$0xff]
        %v1421 = vld [vmem:[%s1185 + $0x99] sm:$0xff]
        %v1422 = vld [vmem:[%s1185 + $0xa9] sm:$0xff]
        %v1423 = vld [vmem:[%s1185 + $0xb1] sm:$0xff]
        %v1424 = vld [vmem:[%s1185 + $0xc1] sm:$0xff]
        %v1425 = vld [vmem:[%s1185 + $0xc9] sm:$0xff]
        %v1426 = vld [vmem:[%s1185 + $0xd9] sm:$0xff]
        %v1427 = vld [vmem:[%s1185 + $0xe1] sm:$0xff]
        %s1428 = scalar_lea.vmem %s3, 512
        %v1429 = vld [vmem:[%s1428] sm:$0xff]
        %v1430 = vld [vmem:[%s1428 + $0x8] sm:$0xff]
        %v1431 = vld [vmem:[%s1428 + $0x10] sm:$0xff]
        %v1432 = vld [vmem:[%s1428 + $0x18] sm:$0xff]
        %v1433 = vld [vmem:[%s1428 + $0x20] sm:$0xff]
        %v1434 = vld [vmem:[%s1428 + $0x28] sm:$0xff]
        %v1435 = vld [vmem:[%s1428 + $0x30] sm:$0xff]
        %v1436 = vld [vmem:[%s1428 + $0x38] sm:$0xff]
        %v1437 = vld [vmem:[%s1428 + $0x40] sm:$0xff]
        %v1438 = vld [vmem:[%s1428 + $0x48] sm:$0xff]
        %v1439 = vld [vmem:[%s1428 + $0x50] sm:$0xff]
        %v1440 = vld [vmem:[%s1428 + $0x58] sm:$0xff]
        %v1441 = vld [vmem:[%s1428 + $0x60] sm:$0xff]
        %v1442 = vld [vmem:[%s1428 + $0x68] sm:$0xff]
        %v1443 = vld [vmem:[%s1428 + $0x70] sm:$0xff]
        %v1444 = vld [vmem:[%s1428 + $0x78] sm:$0xff]
        %1445 = vmatprep.subr.mxu0 0.0
        %1446 = vmatpush1.msra.mxu0 %v1429
        %1447 = vmatprep.subr.mxu0 0.0
        %1448 = vmatpush1.msra.mxu0 %v1430
        %1449 = vmatprep.subr.mxu0 0.0
        %1450 = vmatpush1.msra.mxu0 %v1431
        %1451 = vmatprep.subr.mxu0 0.0
        %1452 = vmatpush1.msra.mxu0 %v1432
        %1453 = vmatprep.subr.mxu0 0.0
        %1454 = vmatpush1.msra.mxu0 %v1433
        %1455 = vmatprep.subr.mxu0 0.0
        %1456 = vmatpush1.msra.mxu0 %v1434
        %1457 = vmatprep.subr.mxu0 0.0
        %1458 = vmatpush1.msra.mxu0 %v1435
        %1459 = vmatprep.subr.mxu0 0.0
        %1460 = vmatpush1.msra.mxu0 %v1436
        %1461 = vmatprep.subr.mxu0 0.0
        %1462 = vmatpush1.msra.mxu0 %v1437
        %1463 = vmatprep.subr.mxu0 0.0
        %1464 = vmatpush1.msra.mxu0 %v1438
        %1465 = vmatprep.subr.mxu0 0.0
        %1466 = vmatpush1.msra.mxu0 %v1439
        %1467 = vmatprep.subr.mxu0 0.0
        %1468 = vmatpush1.msra.mxu0 %v1440
        %1469 = vmatprep.subr.mxu0 0.0
        %1470 = vmatpush1.msra.mxu0 %v1441
        %1471 = vmatprep.subr.mxu0 0.0
        %1472 = vmatpush1.msra.mxu0 %v1442
        %1473 = vmatprep.subr.mxu0 0.0
        %1474 = vmatpush1.msra.mxu0 %v1443
        %1475 = vmatprep.subr.mxu0 0.0
        %1476 = vmatpush1.msra.mxu0 %v1444
        %1477 = vmatprep.subr.mxu0 0.0
        %1478 = vmatpush1.msra.mxu0 0.0
        %1479 = vmatprep.subr.mxu0 0.0
        %1480 = vmatpush1.msra.mxu0 0.0
        %1481 = vmatprep.subr.mxu0 0.0
        %1482 = vmatpush1.msra.mxu0 0.0
        %1483 = vmatprep.subr.mxu0 0.0
        %1484 = vmatpush1.msra.mxu0 0.0
        %1485 = vmatprep.subr.mxu0 0.0
        %1486 = vmatpush1.msra.mxu0 0.0
        %1487 = vmatprep.subr.mxu0 0.0
        %1488 = vmatpush1.msra.mxu0 0.0
        %1489 = vmatprep.subr.mxu0 0.0
        %1490 = vmatpush1.msra.mxu0 0.0
        %1491 = vmatprep.subr.mxu0 0.0
        %1492 = vmatpush1.msra.mxu0 0.0
        %1493 = vmatprep.subr.mxu0 0.0
        %1494 = vmatpush1.msra.mxu0 0.0
        %1495 = vmatprep.subr.mxu0 0.0
        %1496 = vmatpush1.msra.mxu0 0.0
        %1497 = vmatprep.subr.mxu0 0.0
        %1498 = vmatpush1.msra.mxu0 0.0
        %1499 = vmatprep.subr.mxu0 0.0
        %1500 = vmatpush1.msra.mxu0 0.0
        %1501 = vmatprep.subr.mxu0 0.0
        %1502 = vmatpush1.msra.mxu0 0.0
        %1503 = vmatprep.subr.mxu0 0.0
        %1504 = vmatpush1.msra.mxu0 0.0
        %1505 = vmatprep.subr.mxu0 0.0
        %1506 = vmatpush1.msra.mxu0 0.0
        %1507 = vmatprep.subr.mxu0 0.0
        %1508 = vmatpush1.msra.mxu0 0.0
        %1509 = vmatprep.mubr.f32.mxu0 0.0
        %1510 = vmatmul.mubr.f32.gmra.mrb[0].mxu0 %v1408
        %v1511 = vpop.f32.mrb[0].mxu0
        %v1512 = vadd.f32 0.0, %v1511
        %v1513 = vpop.f32.mrb[0].mxu0
        %1514 = vmatprep.mubr.f32.mxu0 0.0
        %1515 = vmatmul.mubr.f32.gmra.mrb[0].mxu0 %v1409
        %v1516 = vpop.f32.mrb[0].mxu0
        %v1517 = vadd.f32 0.0, %v1516
        %v1518 = vpop.f32.mrb[0].mxu0
        %1519 = vmatprep.mubr.f32.mxu0 0.0
        %1520 = vmatmul.mubr.f32.gmra.mrb[0].mxu0 %v1410
        %v1521 = vpop.f32.mrb[0].mxu0
        %v1522 = vadd.f32 0.0, %v1521
        %v1523 = vpop.f32.mrb[0].mxu0
        %1524 = vmatprep.mubr.f32.mxu0 0.0
        %1525 = vmatmul.mubr.f32.gmra.mrb[0].mxu0 %v1411
        %v1526 = vpop.f32.mrb[0].mxu0
        %v1527 = vadd.f32 0.0, %v1526
        %v1528 = vpop.f32.mrb[0].mxu0
        %1529 = vmatprep.mubr.f32.mxu0 0.0
        %1530 = vmatmul.mubr.f32.gmra.mrb[0].mxu0 %v1412
        %v1531 = vpop.f32.mrb[0].mxu0
        %v1532 = vadd.f32 0.0, %v1531
        %v1533 = vpop.f32.mrb[0].mxu0
        %1534 = vmatprep.mubr.f32.mxu0 0.0
        %1535 = vmatmul.mubr.f32.gmra.mrb[0].mxu0 %v1413
        %v1536 = vpop.f32.mrb[0].mxu0
        %v1537 = vadd.f32 0.0, %v1536
        %v1538 = vpop.f32.mrb[0].mxu0
        %1539 = vmatprep.mubr.f32.mxu0 0.0
        %1540 = vmatmul.mubr.f32.gmra.mrb[0].mxu0 %v1414
        %v1541 = vpop.f32.mrb[0].mxu0
        %v1542 = vadd.f32 0.0, %v1541
        %v1543 = vpop.f32.mrb[0].mxu0
        %1544 = vmatprep.mubr.f32.mxu0 0.0
        %1545 = vmatmul.mubr.f32.gmra.mrb[0].mxu0 %v1415
        %v1546 = vpop.f32.mrb[0].mxu0
        %v1547 = vadd.f32 0.0, %v1546
        %v1548 = vpop.f32.mrb[0].mxu0
        %1549 = vmatprep.mubr.f32.mxu0 0.0
        %1550 = vmatmul.mubr.f32.gmra.mrb[0].mxu0 %v1416
        %v1551 = vpop.f32.mrb[0].mxu0
        %v1552 = vadd.f32 0.0, %v1551
        %v1553 = vpop.f32.mrb[0].mxu0
        %1554 = vmatprep.mubr.f32.mxu0 0.0
        %1555 = vmatmul.mubr.f32.gmra.mrb[0].mxu0 %v1417
        %v1556 = vpop.f32.mrb[0].mxu0
        %v1557 = vadd.f32 0.0, %v1556
        %v1558 = vpop.f32.mrb[0].mxu0
        %1559 = vmatprep.mubr.f32.mxu0 0.0
        %1560 = vmatmul.mubr.f32.gmra.mrb[0].mxu0 %v1418
        %v1561 = vpop.f32.mrb[0].mxu0
        %v1562 = vadd.f32 0.0, %v1561
        %v1563 = vpop.f32.mrb[0].mxu0
        %1564 = vmatprep.mubr.f32.mxu0 0.0
        %1565 = vmatmul.mubr.f32.gmra.mrb[0].mxu0 %v1419
        %v1566 = vpop.f32.mrb[0].mxu0
        %v1567 = vadd.f32 0.0, %v1566
        %v1568 = vpop.f32.mrb[0].mxu0
        %1569 = vmatprep.mubr.f32.mxu0 0.0
        %1570 = vmatmul.mubr.f32.gmra.mrb[0].mxu0 %v1420
        %v1571 = vpop.f32.mrb[0].mxu0
        %v1572 = vadd.f32 0.0, %v1571
        %v1573 = vpop.f32.mrb[0].mxu0
        %1574 = vmatprep.mubr.f32.mxu0 0.0
        %1575 = vmatmul.mubr.f32.gmra.mrb[0].mxu0 %v1421
        %v1576 = vpop.f32.mrb[0].mxu0
        %v1577 = vadd.f32 0.0, %v1576
        %v1578 = vpop.f32.mrb[0].mxu0
        %1579 = vmatprep.mubr.f32.mxu0 0.0
        %1580 = vmatmul.mubr.f32.gmra.mrb[0].mxu0 %v1422
        %v1581 = vpop.f32.mrb[0].mxu0
        %v1582 = vadd.f32 0.0, %v1581
        %v1583 = vpop.f32.mrb[0].mxu0
        %1584 = vmatprep.mubr.f32.mxu0 0.0
        %1585 = vmatmul.mubr.f32.gmra.mrb[0].mxu0 %v1423
        %v1586 = vpop.f32.mrb[0].mxu0
        %v1587 = vadd.f32 0.0, %v1586
        %v1588 = vpop.f32.mrb[0].mxu0
        %1589 = vmatprep.mubr.f32.mxu0 0.0
        %1590 = vmatmul.mubr.f32.gmra.mrb[0].mxu0 %v1424
        %v1591 = vpop.f32.mrb[0].mxu0
        %v1592 = vadd.f32 0.0, %v1591
        %v1593 = vpop.f32.mrb[0].mxu0
        %1594 = vmatprep.mubr.f32.mxu0 0.0
        %1595 = vmatmul.mubr.f32.gmra.mrb[0].mxu0 %v1425
        %v1596 = vpop.f32.mrb[0].mxu0
        %v1597 = vadd.f32 0.0, %v1596
        %v1598 = vpop.f32.mrb[0].mxu0
        %1599 = vmatprep.mubr.f32.mxu0 0.0
        %1600 = vmatmul.mubr.f32.gmra.mrb[0].mxu0 %v1426
        %v1601 = vpop.f32.mrb[0].mxu0
        %v1602 = vadd.f32 0.0, %v1601
        %v1603 = vpop.f32.mrb[0].mxu0
        %1604 = vmatprep.mubr.f32.mxu0 0.0
        %1605 = vmatmul.mubr.f32.gmra.mrb[0].mxu0 %v1427
        %v1606 = vpop.f32.mrb[0].mxu0
        %v1607 = vadd.f32 0.0, %v1606
        %v1608 = vpop.f32.mrb[0].mxu0
        %1609 = vdwg.mxu0
        %v1610 = vadd.f32 %v1388, %v1512
        %v1611 = vadd.f32 %v1389, %v1517
        %v1612 = vadd.f32 %v1390, %v1522
        %v1613 = vadd.f32 %v1391, %v1527
        %v1614 = vadd.f32 %v1392, %v1532
        %v1615 = vadd.f32 %v1393, %v1537
        %v1616 = vadd.f32 %v1394, %v1542
        %v1617 = vadd.f32 %v1395, %v1547
        %v1618 = vadd.f32 %v1396, %v1552
        %v1619 = vadd.f32 %v1397, %v1557
        %v1620 = vadd.f32 %v1398, %v1562
        %v1621 = vadd.f32 %v1399, %v1567
        %v1622 = vadd.f32 %v1400, %v1572
        %v1623 = vadd.f32 %v1401, %v1577
        %v1624 = vadd.f32 %v1402, %v1582
        %v1625 = vadd.f32 %v1403, %v1587
        %v1626 = vadd.f32 %v1404, %v1592
        %v1627 = vadd.f32 %v1405, %v1597
        %v1628 = vadd.f32 %v1406, %v1602
        %v1629 = vadd.f32 %v1407, %v1607
        %v1630 = vld [vmem:[%s1185 + $0x2] sm:$0xff]
        %v1631 = vld [vmem:[%s1185 + $0xa] sm:$0xff]
        %v1632 = vld [vmem:[%s1185 + $0x1a] sm:$0xff]
        %v1633 = vld [vmem:[%s1185 + $0x22] sm:$0xff]
        %v1634 = vld [vmem:[%s1185 + $0x32] sm:$0xff]
        %v1635 = vld [vmem:[%s1185 + $0x3a] sm:$0xff]
        %v1636 = vld [vmem:[%s1185 + $0x4a] sm:$0xff]
        %v1637 = vld [vmem:[%s1185 + $0x52] sm:$0xff]
        %v1638 = vld [vmem:[%s1185 + $0x62] sm:$0xff]
        %v1639 = vld [vmem:[%s1185 + $0x6a] sm:$0xff]
        %v1640 = vld [vmem:[%s1185 + $0x7a] sm:$0xff]
        %v1641 = vld [vmem:[%s1185 + $0x82] sm:$0xff]
        %v1642 = vld [vmem:[%s1185 + $0x92] sm:$0xff]
        %v1643 = vld [vmem:[%s1185 + $0x9a] sm:$0xff]
        %v1644 = vld [vmem:[%s1185 + $0xaa] sm:$0xff]
        %v1645 = vld [vmem:[%s1185 + $0xb2] sm:$0xff]
        %v1646 = vld [vmem:[%s1185 + $0xc2] sm:$0xff]
        %v1647 = vld [vmem:[%s1185 + $0xca] sm:$0xff]
        %v1648 = vld [vmem:[%s1185 + $0xda] sm:$0xff]
        %v1649 = vld [vmem:[%s1185 + $0xe2] sm:$0xff]
        %s1650 = scalar_lea.vmem %s3, 640
        %v1651 = vld [vmem:[%s1650] sm:$0xff]
        %v1652 = vld [vmem:[%s1650 + $0x8] sm:$0xff]
        %v1653 = vld [vmem:[%s1650 + $0x10] sm:$0xff]
        %v1654 = vld [vmem:[%s1650 + $0x18] sm:$0xff]
        %v1655 = vld [vmem:[%s1650 + $0x20] sm:$0xff]
        %v1656 = vld [vmem:[%s1650 + $0x28] sm:$0xff]
        %v1657 = vld [vmem:[%s1650 + $0x30] sm:$0xff]
        %v1658 = vld [vmem:[%s1650 + $0x38] sm:$0xff]
        %v1659 = vld [vmem:[%s1650 + $0x40] sm:$0xff]
        %v1660 = vld [vmem:[%s1650 + $0x48] sm:$0xff]
        %v1661 = vld [vmem:[%s1650 + $0x50] sm:$0xff]
        %v1662 = vld [vmem:[%s1650 + $0x58] sm:$0xff]
        %v1663 = vld [vmem:[%s1650 + $0x60] sm:$0xff]
        %v1664 = vld [vmem:[%s1650 + $0x68] sm:$0xff]
        %v1665 = vld [vmem:[%s1650 + $0x70] sm:$0xff]
        %v1666 = vld [vmem:[%s1650 + $0x78] sm:$0xff]
        %1667 = vmatprep.subr.mxu0 0.0
        %1668 = vmatpush1.msra.mxu0 %v1651
        %1669 = vmatprep.subr.mxu0 0.0
        %1670 = vmatpush1.msra.mxu0 %v1652
        %1671 = vmatprep.subr.mxu0 0.0
        %1672 = vmatpush1.msra.mxu0 %v1653
        %1673 = vmatprep.subr.mxu0 0.0
        %1674 = vmatpush1.msra.mxu0 %v1654
        %1675 = vmatprep.subr.mxu0 0.0
        %1676 = vmatpush1.msra.mxu0 %v1655
        %1677 = vmatprep.subr.mxu0 0.0
        %1678 = vmatpush1.msra.mxu0 %v1656
        %1679 = vmatprep.subr.mxu0 0.0
        %1680 = vmatpush1.msra.mxu0 %v1657
        %1681 = vmatprep.subr.mxu0 0.0
        %1682 = vmatpush1.msra.mxu0 %v1658
        %1683 = vmatprep.subr.mxu0 0.0
        %1684 = vmatpush1.msra.mxu0 %v1659
        %1685 = vmatprep.subr.mxu0 0.0
        %1686 = vmatpush1.msra.mxu0 %v1660
        %1687 = vmatprep.subr.mxu0 0.0
        %1688 = vmatpush1.msra.mxu0 %v1661
        %1689 = vmatprep.subr.mxu0 0.0
        %1690 = vmatpush1.msra.mxu0 %v1662
        %1691 = vmatprep.subr.mxu0 0.0
        %1692 = vmatpush1.msra.mxu0 %v1663
        %1693 = vmatprep.subr.mxu0 0.0
        %1694 = vmatpush1.msra.mxu0 %v1664
        %1695 = vmatprep.subr.mxu0 0.0
        %1696 = vmatpush1.msra.mxu0 %v1665
        %1697 = vmatprep.subr.mxu0 0.0
        %1698 = vmatpush1.msra.mxu0 %v1666
        %1699 = vmatprep.subr.mxu0 0.0
        %1700 = vmatpush1.msra.mxu0 0.0
        %1701 = vmatprep.subr.mxu0 0.0
        %1702 = vmatpush1.msra.mxu0 0.0
        %1703 = vmatprep.subr.mxu0 0.0
        %1704 = vmatpush1.msra.mxu0 0.0
        %1705 = vmatprep.subr.mxu0 0.0
        %1706 = vmatpush1.msra.mxu0 0.0
        %1707 = vmatprep.subr.mxu0 0.0
        %1708 = vmatpush1.msra.mxu0 0.0
        %1709 = vmatprep.subr.mxu0 0.0
        %1710 = vmatpush1.msra.mxu0 0.0
        %1711 = vmatprep.subr.mxu0 0.0
        %1712 = vmatpush1.msra.mxu0 0.0
        %1713 = vmatprep.subr.mxu0 0.0
        %1714 = vmatpush1.msra.mxu0 0.0
        %1715 = vmatprep.subr.mxu0 0.0
        %1716 = vmatpush1.msra.mxu0 0.0
        %1717 = vmatprep.subr.mxu0 0.0
        %1718 = vmatpush1.msra.mxu0 0.0
        %1719 = vmatprep.subr.mxu0 0.0
        %1720 = vmatpush1.msra.mxu0 0.0
        %1721 = vmatprep.subr.mxu0 0.0
        %1722 = vmatpush1.msra.mxu0 0.0
        %1723 = vmatprep.subr.mxu0 0.0
        %1724 = vmatpush1.msra.mxu0 0.0
        %1725 = vmatprep.subr.mxu0 0.0
        %1726 = vmatpush1.msra.mxu0 0.0
        %1727 = vmatprep.subr.mxu0 0.0
        %1728 = vmatpush1.msra.mxu0 0.0
        %1729 = vmatprep.subr.mxu0 0.0
        %1730 = vmatpush1.msra.mxu0 0.0
        %1731 = vmatprep.mubr.f32.mxu0 0.0
        %1732 = vmatmul.mubr.f32.gmra.mrb[0].mxu0 %v1630
        %v1733 = vpop.f32.mrb[0].mxu0
        %v1734 = vadd.f32 0.0, %v1733
        %v1735 = vpop.f32.mrb[0].mxu0
        %1736 = vmatprep.mubr.f32.mxu0 0.0
        %1737 = vmatmul.mubr.f32.gmra.mrb[0].mxu0 %v1631
        %v1738 = vpop.f32.mrb[0].mxu0
        %v1739 = vadd.f32 0.0, %v1738
        %v1740 = vpop.f32.mrb[0].mxu0
        %1741 = vmatprep.mubr.f32.mxu0 0.0
        %1742 = vmatmul.mubr.f32.gmra.mrb[0].mxu0 %v1632
        %v1743 = vpop.f32.mrb[0].mxu0
        %v1744 = vadd.f32 0.0, %v1743
        %v1745 = vpop.f32.mrb[0].mxu0
        %1746 = vmatprep.mubr.f32.mxu0 0.0
        %1747 = vmatmul.mubr.f32.gmra.mrb[0].mxu0 %v1633
        %v1748 = vpop.f32.mrb[0].mxu0
        %v1749 = vadd.f32 0.0, %v1748
        %v1750 = vpop.f32.mrb[0].mxu0
        %1751 = vmatprep.mubr.f32.mxu0 0.0
        %1752 = vmatmul.mubr.f32.gmra.mrb[0].mxu0 %v1634
        %v1753 = vpop.f32.mrb[0].mxu0
        %v1754 = vadd.f32 0.0, %v1753
        %v1755 = vpop.f32.mrb[0].mxu0
        %1756 = vmatprep.mubr.f32.mxu0 0.0
        %1757 = vmatmul.mubr.f32.gmra.mrb[0].mxu0 %v1635
        %v1758 = vpop.f32.mrb[0].mxu0
        %v1759 = vadd.f32 0.0, %v1758
        %v1760 = vpop.f32.mrb[0].mxu0
        %1761 = vmatprep.mubr.f32.mxu0 0.0
        %1762 = vmatmul.mubr.f32.gmra.mrb[0].mxu0 %v1636
        %v1763 = vpop.f32.mrb[0].mxu0
        %v1764 = vadd.f32 0.0, %v1763
        %v1765 = vpop.f32.mrb[0].mxu0
        %1766 = vmatprep.mubr.f32.mxu0 0.0
        %1767 = vmatmul.mubr.f32.gmra.mrb[0].mxu0 %v1637
        %v1768 = vpop.f32.mrb[0].mxu0
        %v1769 = vadd.f32 0.0, %v1768
        %v1770 = vpop.f32.mrb[0].mxu0
        %1771 = vmatprep.mubr.f32.mxu0 0.0
        %1772 = vmatmul.mubr.f32.gmra.mrb[0].mxu0 %v1638
        %v1773 = vpop.f32.mrb[0].mxu0
        %v1774 = vadd.f32 0.0, %v1773
        %v1775 = vpop.f32.mrb[0].mxu0
        %1776 = vmatprep.mubr.f32.mxu0 0.0
        %1777 = vmatmul.mubr.f32.gmra.mrb[0].mxu0 %v1639
        %v1778 = vpop.f32.mrb[0].mxu0
        %v1779 = vadd.f32 0.0, %v1778
        %v1780 = vpop.f32.mrb[0].mxu0
        %1781 = vmatprep.mubr.f32.mxu0 0.0
        %1782 = vmatmul.mubr.f32.gmra.mrb[0].mxu0 %v1640
        %v1783 = vpop.f32.mrb[0].mxu0
        %v1784 = vadd.f32 0.0, %v1783
        %v1785 = vpop.f32.mrb[0].mxu0
        %1786 = vmatprep.mubr.f32.mxu0 0.0
        %1787 = vmatmul.mubr.f32.gmra.mrb[0].mxu0 %v1641
        %v1788 = vpop.f32.mrb[0].mxu0
        %v1789 = vadd.f32 0.0, %v1788
        %v1790 = vpop.f32.mrb[0].mxu0
        %1791 = vmatprep.mubr.f32.mxu0 0.0
        %1792 = vmatmul.mubr.f32.gmra.mrb[0].mxu0 %v1642
        %v1793 = vpop.f32.mrb[0].mxu0
        %v1794 = vadd.f32 0.0, %v1793
        %v1795 = vpop.f32.mrb[0].mxu0
        %1796 = vmatprep.mubr.f32.mxu0 0.0
        %1797 = vmatmul.mubr.f32.gmra.mrb[0].mxu0 %v1643
        %v1798 = vpop.f32.mrb[0].mxu0
        %v1799 = vadd.f32 0.0, %v1798
        %v1800 = vpop.f32.mrb[0].mxu0
        %1801 = vmatprep.mubr.f32.mxu0 0.0
        %1802 = vmatmul.mubr.f32.gmra.mrb[0].mxu0 %v1644
        %v1803 = vpop.f32.mrb[0].mxu0
        %v1804 = vadd.f32 0.0, %v1803
        %v1805 = vpop.f32.mrb[0].mxu0
        %1806 = vmatprep.mubr.f32.mxu0 0.0
        %1807 = vmatmul.mubr.f32.gmra.mrb[0].mxu0 %v1645
        %v1808 = vpop.f32.mrb[0].mxu0
        %v1809 = vadd.f32 0.0, %v1808
        %v1810 = vpop.f32.mrb[0].mxu0
        %1811 = vmatprep.mubr.f32.mxu0 0.0
        %1812 = vmatmul.mubr.f32.gmra.mrb[0].mxu0 %v1646
        %v1813 = vpop.f32.mrb[0].mxu0
        %v1814 = vadd.f32 0.0, %v1813
        %v1815 = vpop.f32.mrb[0].mxu0
        %1816 = vmatprep.mubr.f32.mxu0 0.0
        %1817 = vmatmul.mubr.f32.gmra.mrb[0].mxu0 %v1647
        %v1818 = vpop.f32.mrb[0].mxu0
        %v1819 = vadd.f32 0.0, %v1818
        %v1820 = vpop.f32.mrb[0].mxu0
        %1821 = vmatprep.mubr.f32.mxu0 0.0
        %1822 = vmatmul.mubr.f32.gmra.mrb[0].mxu0 %v1648
        %v1823 = vpop.f32.mrb[0].mxu0
        %v1824 = vadd.f32 0.0, %v1823
        %v1825 = vpop.f32.mrb[0].mxu0
        %1826 = vmatprep.mubr.f32.mxu0 0.0
        %1827 = vmatmul.mubr.f32.gmra.mrb[0].mxu0 %v1649
        %v1828 = vpop.f32.mrb[0].mxu0
        %v1829 = vadd.f32 0.0, %v1828
        %v1830 = vpop.f32.mrb[0].mxu0
        %1831 = vdwg.mxu0
        %v1832 = vadd.f32 %v1610, %v1734
        %v1833 = vadd.f32 %v1611, %v1739
        %v1834 = vadd.f32 %v1612, %v1744
        %v1835 = vadd.f32 %v1613, %v1749
        %v1836 = vadd.f32 %v1614, %v1754
        %v1837 = vadd.f32 %v1615, %v1759
        %v1838 = vadd.f32 %v1616, %v1764
        %v1839 = vadd.f32 %v1617, %v1769
        %v1840 = vadd.f32 %v1618, %v1774
        %v1841 = vadd.f32 %v1619, %v1779
        %v1842 = vadd.f32 %v1620, %v1784
        %v1843 = vadd.f32 %v1621, %v1789
        %v1844 = vadd.f32 %v1622, %v1794
        %v1845 = vadd.f32 %v1623, %v1799
        %v1846 = vadd.f32 %v1624, %v1804
        %v1847 = vadd.f32 %v1625, %v1809
        %v1848 = vadd.f32 %v1626, %v1814
        %v1849 = vadd.f32 %v1627, %v1819
        %v1850 = vadd.f32 %v1628, %v1824
        %v1851 = vadd.f32 %v1629, %v1829
        %s1852 = scalar_lea.vmem [#allocation2], 48
        %v1853 = vld [vmem:[%s1852] sm:$0xff]
        %v1854 = vld [vmem:[%s1852 + $0x8] sm:$0xff]
        %v1855 = vld [vmem:[%s1852 + $0x18] sm:$0xff]
        %v1856 = vld [vmem:[%s1852 + $0x20] sm:$0xff]
        %v1857 = vld [vmem:[%s1852 + $0x30] sm:$0xff]
        %v1858 = vld [vmem:[%s1852 + $0x38] sm:$0xff]
        %v1859 = vld [vmem:[%s1852 + $0x48] sm:$0xff]
        %v1860 = vld [vmem:[%s1852 + $0x50] sm:$0xff]
        %v1861 = vld [vmem:[%s1852 + $0x60] sm:$0xff]
        %v1862 = vld [vmem:[%s1852 + $0x68] sm:$0xff]
        %v1863 = vld [vmem:[%s1852 + $0x78] sm:$0xff]
        %v1864 = vld [vmem:[%s1852 + $0x80] sm:$0xff]
        %v1865 = vld [vmem:[%s1852 + $0x90] sm:$0xff]
        %v1866 = vld [vmem:[%s1852 + $0x98] sm:$0xff]
        %v1867 = vld [vmem:[%s1852 + $0xa8] sm:$0xff]
        %v1868 = vld [vmem:[%s1852 + $0xb0] sm:$0xff]
        %v1869 = vld [vmem:[%s1852 + $0xc0] sm:$0xff]
        %v1870 = vld [vmem:[%s1852 + $0xc8] sm:$0xff]
        %v1871 = vld [vmem:[%s1852 + $0xd8] sm:$0xff]
        %v1872 = vld [vmem:[%s1852 + $0xe0] sm:$0xff]
        %s1873 = scalar_lea.vmem %s3, 768
        %v1874 = vld [vmem:[%s1873] sm:$0xff]
        %v1875 = vld [vmem:[%s1873 + $0x8] sm:$0xff]
        %v1876 = vld [vmem:[%s1873 + $0x10] sm:$0xff]
        %v1877 = vld [vmem:[%s1873 + $0x18] sm:$0xff]
        %v1878 = vld [vmem:[%s1873 + $0x20] sm:$0xff]
        %v1879 = vld [vmem:[%s1873 + $0x28] sm:$0xff]
        %v1880 = vld [vmem:[%s1873 + $0x30] sm:$0xff]
        %v1881 = vld [vmem:[%s1873 + $0x38] sm:$0xff]
        %v1882 = vld [vmem:[%s1873 + $0x40] sm:$0xff]
        %v1883 = vld [vmem:[%s1873 + $0x48] sm:$0xff]
        %v1884 = vld [vmem:[%s1873 + $0x50] sm:$0xff]
        %v1885 = vld [vmem:[%s1873 + $0x58] sm:$0xff]
        %v1886 = vld [vmem:[%s1873 + $0x60] sm:$0xff]
        %v1887 = vld [vmem:[%s1873 + $0x68] sm:$0xff]
        %v1888 = vld [vmem:[%s1873 + $0x70] sm:$0xff]
        %v1889 = vld [vmem:[%s1873 + $0x78] sm:$0xff]
        %1890 = vmatprep.subr.mxu0 0.0
        %1891 = vmatpush1.msra.mxu0 %v1874
        %1892 = vmatprep.subr.mxu0 0.0
        %1893 = vmatpush1.msra.mxu0 %v1875
        %1894 = vmatprep.subr.mxu0 0.0
        %1895 = vmatpush1.msra.mxu0 %v1876
        %1896 = vmatprep.subr.mxu0 0.0
        %1897 = vmatpush1.msra.mxu0 %v1877
        %1898 = vmatprep.subr.mxu0 0.0
        %1899 = vmatpush1.msra.mxu0 %v1878
        %1900 = vmatprep.subr.mxu0 0.0
        %1901 = vmatpush1.msra.mxu0 %v1879
        %1902 = vmatprep.subr.mxu0 0.0
        %1903 = vmatpush1.msra.mxu0 %v1880
        %1904 = vmatprep.subr.mxu0 0.0
        %1905 = vmatpush1.msra.mxu0 %v1881
        %1906 = vmatprep.subr.mxu0 0.0
        %1907 = vmatpush1.msra.mxu0 %v1882
        %1908 = vmatprep.subr.mxu0 0.0
        %1909 = vmatpush1.msra.mxu0 %v1883
        %1910 = vmatprep.subr.mxu0 0.0
        %1911 = vmatpush1.msra.mxu0 %v1884
        %1912 = vmatprep.subr.mxu0 0.0
        %1913 = vmatpush1.msra.mxu0 %v1885
        %1914 = vmatprep.subr.mxu0 0.0
        %1915 = vmatpush1.msra.mxu0 %v1886
        %1916 = vmatprep.subr.mxu0 0.0
        %1917 = vmatpush1.msra.mxu0 %v1887
        %1918 = vmatprep.subr.mxu0 0.0
        %1919 = vmatpush1.msra.mxu0 %v1888
        %1920 = vmatprep.subr.mxu0 0.0
        %1921 = vmatpush1.msra.mxu0 %v1889
        %1922 = vmatprep.subr.mxu0 0.0
        %1923 = vmatpush1.msra.mxu0 0.0
        %1924 = vmatprep.subr.mxu0 0.0
        %1925 = vmatpush1.msra.mxu0 0.0
        %1926 = vmatprep.subr.mxu0 0.0
        %1927 = vmatpush1.msra.mxu0 0.0
        %1928 = vmatprep.subr.mxu0 0.0
        %1929 = vmatpush1.msra.mxu0 0.0
        %1930 = vmatprep.subr.mxu0 0.0
        %1931 = vmatpush1.msra.mxu0 0.0
        %1932 = vmatprep.subr.mxu0 0.0
        %1933 = vmatpush1.msra.mxu0 0.0
        %1934 = vmatprep.subr.mxu0 0.0
        %1935 = vmatpush1.msra.mxu0 0.0
        %1936 = vmatprep.subr.mxu0 0.0
        %1937 = vmatpush1.msra.mxu0 0.0
        %1938 = vmatprep.subr.mxu0 0.0
        %1939 = vmatpush1.msra.mxu0 0.0
        %1940 = vmatprep.subr.mxu0 0.0
        %1941 = vmatpush1.msra.mxu0 0.0
        %1942 = vmatprep.subr.mxu0 0.0
        %1943 = vmatpush1.msra.mxu0 0.0
        %1944 = vmatprep.subr.mxu0 0.0
        %1945 = vmatpush1.msra.mxu0 0.0
        %1946 = vmatprep.subr.mxu0 0.0
        %1947 = vmatpush1.msra.mxu0 0.0
        %1948 = vmatprep.subr.mxu0 0.0
        %1949 = vmatpush1.msra.mxu0 0.0
        %1950 = vmatprep.subr.mxu0 0.0
        %1951 = vmatpush1.msra.mxu0 0.0
        %1952 = vmatprep.subr.mxu0 0.0
        %1953 = vmatpush1.msra.mxu0 0.0
        %1954 = vmatprep.mubr.f32.mxu0 0.0
        %1955 = vmatmul.mubr.f32.gmra.mrb[0].mxu0 %v1853
        %v1956 = vpop.f32.mrb[0].mxu0
        %v1957 = vadd.f32 0.0, %v1956
        %v1958 = vpop.f32.mrb[0].mxu0
        %1959 = vmatprep.mubr.f32.mxu0 0.0
        %1960 = vmatmul.mubr.f32.gmra.mrb[0].mxu0 %v1854
        %v1961 = vpop.f32.mrb[0].mxu0
        %v1962 = vadd.f32 0.0, %v1961
        %v1963 = vpop.f32.mrb[0].mxu0
        %1964 = vmatprep.mubr.f32.mxu0 0.0
        %1965 = vmatmul.mubr.f32.gmra.mrb[0].mxu0 %v1855
        %v1966 = vpop.f32.mrb[0].mxu0
        %v1967 = vadd.f32 0.0, %v1966
        %v1968 = vpop.f32.mrb[0].mxu0
        %1969 = vmatprep.mubr.f32.mxu0 0.0
        %1970 = vmatmul.mubr.f32.gmra.mrb[0].mxu0 %v1856
        %v1971 = vpop.f32.mrb[0].mxu0
        %v1972 = vadd.f32 0.0, %v1971
        %v1973 = vpop.f32.mrb[0].mxu0
        %1974 = vmatprep.mubr.f32.mxu0 0.0
        %1975 = vmatmul.mubr.f32.gmra.mrb[0].mxu0 %v1857
        %v1976 = vpop.f32.mrb[0].mxu0
        %v1977 = vadd.f32 0.0, %v1976
        %v1978 = vpop.f32.mrb[0].mxu0
        %1979 = vmatprep.mubr.f32.mxu0 0.0
        %1980 = vmatmul.mubr.f32.gmra.mrb[0].mxu0 %v1858
        %v1981 = vpop.f32.mrb[0].mxu0
        %v1982 = vadd.f32 0.0, %v1981
        %v1983 = vpop.f32.mrb[0].mxu0
        %1984 = vmatprep.mubr.f32.mxu0 0.0
        %1985 = vmatmul.mubr.f32.gmra.mrb[0].mxu0 %v1859
        %v1986 = vpop.f32.mrb[0].mxu0
        %v1987 = vadd.f32 0.0, %v1986
        %v1988 = vpop.f32.mrb[0].mxu0
        %1989 = vmatprep.mubr.f32.mxu0 0.0
        %1990 = vmatmul.mubr.f32.gmra.mrb[0].mxu0 %v1860
        %v1991 = vpop.f32.mrb[0].mxu0
        %v1992 = vadd.f32 0.0, %v1991
        %v1993 = vpop.f32.mrb[0].mxu0
        %1994 = vmatprep.mubr.f32.mxu0 0.0
        %1995 = vmatmul.mubr.f32.gmra.mrb[0].mxu0 %v1861
        %v1996 = vpop.f32.mrb[0].mxu0
        %v1997 = vadd.f32 0.0, %v1996
        %v1998 = vpop.f32.mrb[0].mxu0
        %1999 = vmatprep.mubr.f32.mxu0 0.0
        %2000 = vmatmul.mubr.f32.gmra.mrb[0].mxu0 %v1862
        %v2001 = vpop.f32.mrb[0].mxu0
        %v2002 = vadd.f32 0.0, %v2001
        %v2003 = vpop.f32.mrb[0].mxu0
        %2004 = vmatprep.mubr.f32.mxu0 0.0
        %2005 = vmatmul.mubr.f32.gmra.mrb[0].mxu0 %v1863
        %v2006 = vpop.f32.mrb[0].mxu0
        %v2007 = vadd.f32 0.0, %v2006
        %v2008 = vpop.f32.mrb[0].mxu0
        %2009 = vmatprep.mubr.f32.mxu0 0.0
        %2010 = vmatmul.mubr.f32.gmra.mrb[0].mxu0 %v1864
        %v2011 = vpop.f32.mrb[0].mxu0
        %v2012 = vadd.f32 0.0, %v2011
        %v2013 = vpop.f32.mrb[0].mxu0
        %2014 = vmatprep.mubr.f32.mxu0 0.0
        %2015 = vmatmul.mubr.f32.gmra.mrb[0].mxu0 %v1865
        %v2016 = vpop.f32.mrb[0].mxu0
        %v2017 = vadd.f32 0.0, %v2016
        %v2018 = vpop.f32.mrb[0].mxu0
        %2019 = vmatprep.mubr.f32.mxu0 0.0
        %2020 = vmatmul.mubr.f32.gmra.mrb[0].mxu0 %v1866
        %v2021 = vpop.f32.mrb[0].mxu0
        %v2022 = vadd.f32 0.0, %v2021
        %v2023 = vpop.f32.mrb[0].mxu0
        %2024 = vmatprep.mubr.f32.mxu0 0.0
        %2025 = vmatmul.mubr.f32.gmra.mrb[0].mxu0 %v1867
        %v2026 = vpop.f32.mrb[0].mxu0
        %v2027 = vadd.f32 0.0, %v2026
        %v2028 = vpop.f32.mrb[0].mxu0
        %2029 = vmatprep.mubr.f32.mxu0 0.0
        %2030 = vmatmul.mubr.f32.gmra.mrb[0].mxu0 %v1868
        %v2031 = vpop.f32.mrb[0].mxu0
        %v2032 = vadd.f32 0.0, %v2031
        %v2033 = vpop.f32.mrb[0].mxu0
        %2034 = vmatprep.mubr.f32.mxu0 0.0
        %2035 = vmatmul.mubr.f32.gmra.mrb[0].mxu0 %v1869
        %v2036 = vpop.f32.mrb[0].mxu0
        %v2037 = vadd.f32 0.0, %v2036
        %v2038 = vpop.f32.mrb[0].mxu0
        %2039 = vmatprep.mubr.f32.mxu0 0.0
        %2040 = vmatmul.mubr.f32.gmra.mrb[0].mxu0 %v1870
        %v2041 = vpop.f32.mrb[0].mxu0
        %v2042 = vadd.f32 0.0, %v2041
        %v2043 = vpop.f32.mrb[0].mxu0
        %2044 = vmatprep.mubr.f32.mxu0 0.0
        %2045 = vmatmul.mubr.f32.gmra.mrb[0].mxu0 %v1871
        %v2046 = vpop.f32.mrb[0].mxu0
        %v2047 = vadd.f32 0.0, %v2046
        %v2048 = vpop.f32.mrb[0].mxu0
        %2049 = vmatprep.mubr.f32.mxu0 0.0
        %2050 = vmatmul.mubr.f32.gmra.mrb[0].mxu0 %v1872
        %v2051 = vpop.f32.mrb[0].mxu0
        %v2052 = vadd.f32 0.0, %v2051
        %v2053 = vpop.f32.mrb[0].mxu0
        %2054 = vdwg.mxu0
        %v2055 = vadd.f32 %v1832, %v1957
        %v2056 = vadd.f32 %v1833, %v1962
        %v2057 = vadd.f32 %v1834, %v1967
        %v2058 = vadd.f32 %v1835, %v1972
        %v2059 = vadd.f32 %v1836, %v1977
        %v2060 = vadd.f32 %v1837, %v1982
        %v2061 = vadd.f32 %v1838, %v1987
        %v2062 = vadd.f32 %v1839, %v1992
        %v2063 = vadd.f32 %v1840, %v1997
        %v2064 = vadd.f32 %v1841, %v2002
        %v2065 = vadd.f32 %v1842, %v2007
        %v2066 = vadd.f32 %v1843, %v2012
        %v2067 = vadd.f32 %v1844, %v2017
        %v2068 = vadd.f32 %v1845, %v2022
        %v2069 = vadd.f32 %v1846, %v2027
        %v2070 = vadd.f32 %v1847, %v2032
        %v2071 = vadd.f32 %v1848, %v2037
        %v2072 = vadd.f32 %v1849, %v2042
        %v2073 = vadd.f32 %v1850, %v2047
        %v2074 = vadd.f32 %v1851, %v2052
        %v2075 = vld [vmem:[%s1852 + $0x1] sm:$0xff]
        %v2076 = vld [vmem:[%s1852 + $0x9] sm:$0xff]
        %v2077 = vld [vmem:[%s1852 + $0x19] sm:$0xff]
        %v2078 = vld [vmem:[%s1852 + $0x21] sm:$0xff]
        %v2079 = vld [vmem:[%s1852 + $0x31] sm:$0xff]
        %v2080 = vld [vmem:[%s1852 + $0x39] sm:$0xff]
        %v2081 = vld [vmem:[%s1852 + $0x49] sm:$0xff]
        %v2082 = vld [vmem:[%s1852 + $0x51] sm:$0xff]
        %v2083 = vld [vmem:[%s1852 + $0x61] sm:$0xff]
        %v2084 = vld [vmem:[%s1852 + $0x69] sm:$0xff]
        %v2085 = vld [vmem:[%s1852 + $0x79] sm:$0xff]
        %v2086 = vld [vmem:[%s1852 + $0x81] sm:$0xff]
        %v2087 = vld [vmem:[%s1852 + $0x91] sm:$0xff]
        %v2088 = vld [vmem:[%s1852 + $0x99] sm:$0xff]
        %v2089 = vld [vmem:[%s1852 + $0xa9] sm:$0xff]
        %v2090 = vld [vmem:[%s1852 + $0xb1] sm:$0xff]
        %v2091 = vld [vmem:[%s1852 + $0xc1] sm:$0xff]
        %v2092 = vld [vmem:[%s1852 + $0xc9] sm:$0xff]
        %v2093 = vld [vmem:[%s1852 + $0xd9] sm:$0xff]
        %v2094 = vld [vmem:[%s1852 + $0xe1] sm:$0xff]
        %s2095 = scalar_lea.vmem %s3, 896
        %v2096 = vld [vmem:[%s2095] sm:$0xff]
        %v2097 = vld [vmem:[%s2095 + $0x8] sm:$0xff]
        %v2098 = vld [vmem:[%s2095 + $0x10] sm:$0xff]
        %v2099 = vld [vmem:[%s2095 + $0x18] sm:$0xff]
        %v2100 = vld [vmem:[%s2095 + $0x20] sm:$0xff]
        %v2101 = vld [vmem:[%s2095 + $0x28] sm:$0xff]
        %v2102 = vld [vmem:[%s2095 + $0x30] sm:$0xff]
        %v2103 = vld [vmem:[%s2095 + $0x38] sm:$0xff]
        %v2104 = vld [vmem:[%s2095 + $0x40] sm:$0xff]
        %v2105 = vld [vmem:[%s2095 + $0x48] sm:$0xff]
        %v2106 = vld [vmem:[%s2095 + $0x50] sm:$0xff]
        %v2107 = vld [vmem:[%s2095 + $0x58] sm:$0xff]
        %v2108 = vld [vmem:[%s2095 + $0x60] sm:$0xff]
        %v2109 = vld [vmem:[%s2095 + $0x68] sm:$0xff]
        %v2110 = vld [vmem:[%s2095 + $0x70] sm:$0xff]
        %v2111 = vld [vmem:[%s2095 + $0x78] sm:$0xff]
        %2112 = vmatprep.subr.mxu0 0.0
        %2113 = vmatpush1.msra.mxu0 %v2096
        %2114 = vmatprep.subr.mxu0 0.0
        %2115 = vmatpush1.msra.mxu0 %v2097
        %2116 = vmatprep.subr.mxu0 0.0
        %2117 = vmatpush1.msra.mxu0 %v2098
        %2118 = vmatprep.subr.mxu0 0.0
        %2119 = vmatpush1.msra.mxu0 %v2099
        %2120 = vmatprep.subr.mxu0 0.0
        %2121 = vmatpush1.msra.mxu0 %v2100
        %2122 = vmatprep.subr.mxu0 0.0
        %2123 = vmatpush1.msra.mxu0 %v2101
        %2124 = vmatprep.subr.mxu0 0.0
        %2125 = vmatpush1.msra.mxu0 %v2102
        %2126 = vmatprep.subr.mxu0 0.0
        %2127 = vmatpush1.msra.mxu0 %v2103
        %2128 = vmatprep.subr.mxu0 0.0
        %2129 = vmatpush1.msra.mxu0 %v2104
        %2130 = vmatprep.subr.mxu0 0.0
        %2131 = vmatpush1.msra.mxu0 %v2105
        %2132 = vmatprep.subr.mxu0 0.0
        %2133 = vmatpush1.msra.mxu0 %v2106
        %2134 = vmatprep.subr.mxu0 0.0
        %2135 = vmatpush1.msra.mxu0 %v2107
        %2136 = vmatprep.subr.mxu0 0.0
        %2137 = vmatpush1.msra.mxu0 %v2108
        %2138 = vmatprep.subr.mxu0 0.0
        %2139 = vmatpush1.msra.mxu0 %v2109
        %2140 = vmatprep.subr.mxu0 0.0
        %2141 = vmatpush1.msra.mxu0 %v2110
        %2142 = vmatprep.subr.mxu0 0.0
        %2143 = vmatpush1.msra.mxu0 %v2111
        %2144 = vmatprep.subr.mxu0 0.0
        %2145 = vmatpush1.msra.mxu0 0.0
        %2146 = vmatprep.subr.mxu0 0.0
        %2147 = vmatpush1.msra.mxu0 0.0
        %2148 = vmatprep.subr.mxu0 0.0
        %2149 = vmatpush1.msra.mxu0 0.0
        %2150 = vmatprep.subr.mxu0 0.0
        %2151 = vmatpush1.msra.mxu0 0.0
        %2152 = vmatprep.subr.mxu0 0.0
        %2153 = vmatpush1.msra.mxu0 0.0
        %2154 = vmatprep.subr.mxu0 0.0
        %2155 = vmatpush1.msra.mxu0 0.0
        %2156 = vmatprep.subr.mxu0 0.0
        %2157 = vmatpush1.msra.mxu0 0.0
        %2158 = vmatprep.subr.mxu0 0.0
        %2159 = vmatpush1.msra.mxu0 0.0
        %2160 = vmatprep.subr.mxu0 0.0
        %2161 = vmatpush1.msra.mxu0 0.0
        %2162 = vmatprep.subr.mxu0 0.0
        %2163 = vmatpush1.msra.mxu0 0.0
        %2164 = vmatprep.subr.mxu0 0.0
        %2165 = vmatpush1.msra.mxu0 0.0
        %2166 = vmatprep.subr.mxu0 0.0
        %2167 = vmatpush1.msra.mxu0 0.0
        %2168 = vmatprep.subr.mxu0 0.0
        %2169 = vmatpush1.msra.mxu0 0.0
        %2170 = vmatprep.subr.mxu0 0.0
        %2171 = vmatpush1.msra.mxu0 0.0
        %2172 = vmatprep.subr.mxu0 0.0
        %2173 = vmatpush1.msra.mxu0 0.0
        %2174 = vmatprep.subr.mxu0 0.0
        %2175 = vmatpush1.msra.mxu0 0.0
        %2176 = vmatprep.mubr.f32.mxu0 0.0
        %2177 = vmatmul.mubr.f32.gmra.mrb[0].mxu0 %v2075
        %v2178 = vpop.f32.mrb[0].mxu0
        %v2179 = vadd.f32 0.0, %v2178
        %v2180 = vpop.f32.mrb[0].mxu0
        %2181 = vmatprep.mubr.f32.mxu0 0.0
        %2182 = vmatmul.mubr.f32.gmra.mrb[0].mxu0 %v2076
        %v2183 = vpop.f32.mrb[0].mxu0
        %v2184 = vadd.f32 0.0, %v2183
        %v2185 = vpop.f32.mrb[0].mxu0
        %2186 = vmatprep.mubr.f32.mxu0 0.0
        %2187 = vmatmul.mubr.f32.gmra.mrb[0].mxu0 %v2077
        %v2188 = vpop.f32.mrb[0].mxu0
        %v2189 = vadd.f32 0.0, %v2188
        %v2190 = vpop.f32.mrb[0].mxu0
        %2191 = vmatprep.mubr.f32.mxu0 0.0
        %2192 = vmatmul.mubr.f32.gmra.mrb[0].mxu0 %v2078
        %v2193 = vpop.f32.mrb[0].mxu0
        %v2194 = vadd.f32 0.0, %v2193
        %v2195 = vpop.f32.mrb[0].mxu0
        %2196 = vmatprep.mubr.f32.mxu0 0.0
        %2197 = vmatmul.mubr.f32.gmra.mrb[0].mxu0 %v2079
        %v2198 = vpop.f32.mrb[0].mxu0
        %v2199 = vadd.f32 0.0, %v2198
        %v2200 = vpop.f32.mrb[0].mxu0
        %2201 = vmatprep.mubr.f32.mxu0 0.0
        %2202 = vmatmul.mubr.f32.gmra.mrb[0].mxu0 %v2080
        %v2203 = vpop.f32.mrb[0].mxu0
        %v2204 = vadd.f32 0.0, %v2203
        %v2205 = vpop.f32.mrb[0].mxu0
        %2206 = vmatprep.mubr.f32.mxu0 0.0
        %2207 = vmatmul.mubr.f32.gmra.mrb[0].mxu0 %v2081
        %v2208 = vpop.f32.mrb[0].mxu0
        %v2209 = vadd.f32 0.0, %v2208
        %v2210 = vpop.f32.mrb[0].mxu0
        %2211 = vmatprep.mubr.f32.mxu0 0.0
        %2212 = vmatmul.mubr.f32.gmra.mrb[0].mxu0 %v2082
        %v2213 = vpop.f32.mrb[0].mxu0
        %v2214 = vadd.f32 0.0, %v2213
        %v2215 = vpop.f32.mrb[0].mxu0
        %2216 = vmatprep.mubr.f32.mxu0 0.0
        %2217 = vmatmul.mubr.f32.gmra.mrb[0].mxu0 %v2083
        %v2218 = vpop.f32.mrb[0].mxu0
        %v2219 = vadd.f32 0.0, %v2218
        %v2220 = vpop.f32.mrb[0].mxu0
        %2221 = vmatprep.mubr.f32.mxu0 0.0
        %2222 = vmatmul.mubr.f32.gmra.mrb[0].mxu0 %v2084
        %v2223 = vpop.f32.mrb[0].mxu0
        %v2224 = vadd.f32 0.0, %v2223
        %v2225 = vpop.f32.mrb[0].mxu0
        %2226 = vmatprep.mubr.f32.mxu0 0.0
        %2227 = vmatmul.mubr.f32.gmra.mrb[0].mxu0 %v2085
        %v2228 = vpop.f32.mrb[0].mxu0
        %v2229 = vadd.f32 0.0, %v2228
        %v2230 = vpop.f32.mrb[0].mxu0
        %2231 = vmatprep.mubr.f32.mxu0 0.0
        %2232 = vmatmul.mubr.f32.gmra.mrb[0].mxu0 %v2086
        %v2233 = vpop.f32.mrb[0].mxu0
        %v2234 = vadd.f32 0.0, %v2233
        %v2235 = vpop.f32.mrb[0].mxu0
        %2236 = vmatprep.mubr.f32.mxu0 0.0
        %2237 = vmatmul.mubr.f32.gmra.mrb[0].mxu0 %v2087
        %v2238 = vpop.f32.mrb[0].mxu0
        %v2239 = vadd.f32 0.0, %v2238
        %v2240 = vpop.f32.mrb[0].mxu0
        %2241 = vmatprep.mubr.f32.mxu0 0.0
        %2242 = vmatmul.mubr.f32.gmra.mrb[0].mxu0 %v2088
        %v2243 = vpop.f32.mrb[0].mxu0
        %v2244 = vadd.f32 0.0, %v2243
        %v2245 = vpop.f32.mrb[0].mxu0
        %2246 = vmatprep.mubr.f32.mxu0 0.0
        %2247 = vmatmul.mubr.f32.gmra.mrb[0].mxu0 %v2089
        %v2248 = vpop.f32.mrb[0].mxu0
        %v2249 = vadd.f32 0.0, %v2248
        %v2250 = vpop.f32.mrb[0].mxu0
        %2251 = vmatprep.mubr.f32.mxu0 0.0
        %2252 = vmatmul.mubr.f32.gmra.mrb[0].mxu0 %v2090
        %v2253 = vpop.f32.mrb[0].mxu0
        %v2254 = vadd.f32 0.0, %v2253
        %v2255 = vpop.f32.mrb[0].mxu0
        %2256 = vmatprep.mubr.f32.mxu0 0.0
        %2257 = vmatmul.mubr.f32.gmra.mrb[0].mxu0 %v2091
        %v2258 = vpop.f32.mrb[0].mxu0
        %v2259 = vadd.f32 0.0, %v2258
        %v2260 = vpop.f32.mrb[0].mxu0
        %2261 = vmatprep.mubr.f32.mxu0 0.0
        %2262 = vmatmul.mubr.f32.gmra.mrb[0].mxu0 %v2092
        %v2263 = vpop.f32.mrb[0].mxu0
        %v2264 = vadd.f32 0.0, %v2263
        %v2265 = vpop.f32.mrb[0].mxu0
        %2266 = vmatprep.mubr.f32.mxu0 0.0
        %2267 = vmatmul.mubr.f32.gmra.mrb[0].mxu0 %v2093
        %v2268 = vpop.f32.mrb[0].mxu0
        %v2269 = vadd.f32 0.0, %v2268
        %v2270 = vpop.f32.mrb[0].mxu0
        %2271 = vmatprep.mubr.f32.mxu0 0.0
        %2272 = vmatmul.mubr.f32.gmra.mrb[0].mxu0 %v2094
        %v2273 = vpop.f32.mrb[0].mxu0
        %v2274 = vadd.f32 0.0, %v2273
        %v2275 = vpop.f32.mrb[0].mxu0
        %2276 = vdwg.mxu0
        %v2277 = vadd.f32 %v2055, %v2179
        %v2278 = vadd.f32 %v2056, %v2184
        %v2279 = vadd.f32 %v2057, %v2189
        %v2280 = vadd.f32 %v2058, %v2194
        %v2281 = vadd.f32 %v2059, %v2199
        %v2282 = vadd.f32 %v2060, %v2204
        %v2283 = vadd.f32 %v2061, %v2209
        %v2284 = vadd.f32 %v2062, %v2214
        %v2285 = vadd.f32 %v2063, %v2219
        %v2286 = vadd.f32 %v2064, %v2224
        %v2287 = vadd.f32 %v2065, %v2229
        %v2288 = vadd.f32 %v2066, %v2234
        %v2289 = vadd.f32 %v2067, %v2239
        %v2290 = vadd.f32 %v2068, %v2244
        %v2291 = vadd.f32 %v2069, %v2249
        %v2292 = vadd.f32 %v2070, %v2254
        %v2293 = vadd.f32 %v2071, %v2259
        %v2294 = vadd.f32 %v2072, %v2264
        %v2295 = vadd.f32 %v2073, %v2269
        %v2296 = vadd.f32 %v2074, %v2274
        %v2297 = vld [vmem:[%s1852 + $0x2] sm:$0xff]
        %v2298 = vld [vmem:[%s1852 + $0xa] sm:$0xff]
        %v2299 = vld [vmem:[%s1852 + $0x1a] sm:$0xff]
        %v2300 = vld [vmem:[%s1852 + $0x22] sm:$0xff]
        %v2301 = vld [vmem:[%s1852 + $0x32] sm:$0xff]
        %v2302 = vld [vmem:[%s1852 + $0x3a] sm:$0xff]
        %v2303 = vld [vmem:[%s1852 + $0x4a] sm:$0xff]
        %v2304 = vld [vmem:[%s1852 + $0x52] sm:$0xff]
        %v2305 = vld [vmem:[%s1852 + $0x62] sm:$0xff]
        %v2306 = vld [vmem:[%s1852 + $0x6a] sm:$0xff]
        %v2307 = vld [vmem:[%s1852 + $0x7a] sm:$0xff]
        %v2308 = vld [vmem:[%s1852 + $0x82] sm:$0xff]
        %v2309 = vld [vmem:[%s1852 + $0x92] sm:$0xff]
        %v2310 = vld [vmem:[%s1852 + $0x9a] sm:$0xff]
        %v2311 = vld [vmem:[%s1852 + $0xaa] sm:$0xff]
        %v2312 = vld [vmem:[%s1852 + $0xb2] sm:$0xff]
        %v2313 = vld [vmem:[%s1852 + $0xc2] sm:$0xff]
        %v2314 = vld [vmem:[%s1852 + $0xca] sm:$0xff]
        %v2315 = vld [vmem:[%s1852 + $0xda] sm:$0xff]
        %v2316 = vld [vmem:[%s1852 + $0xe2] sm:$0xff]
        %s2317 = scalar_lea.vmem %s3, 1024
        %v2318 = vld [vmem:[%s2317] sm:$0xff]
        %v2319 = vld [vmem:[%s2317 + $0x8] sm:$0xff]
        %v2320 = vld [vmem:[%s2317 + $0x10] sm:$0xff]
        %v2321 = vld [vmem:[%s2317 + $0x18] sm:$0xff]
        %v2322 = vld [vmem:[%s2317 + $0x20] sm:$0xff]
        %v2323 = vld [vmem:[%s2317 + $0x28] sm:$0xff]
        %v2324 = vld [vmem:[%s2317 + $0x30] sm:$0xff]
        %v2325 = vld [vmem:[%s2317 + $0x38] sm:$0xff]
        %v2326 = vld [vmem:[%s2317 + $0x40] sm:$0xff]
        %v2327 = vld [vmem:[%s2317 + $0x48] sm:$0xff]
        %v2328 = vld [vmem:[%s2317 + $0x50] sm:$0xff]
        %v2329 = vld [vmem:[%s2317 + $0x58] sm:$0xff]
        %v2330 = vld [vmem:[%s2317 + $0x60] sm:$0xff]
        %v2331 = vld [vmem:[%s2317 + $0x68] sm:$0xff]
        %v2332 = vld [vmem:[%s2317 + $0x70] sm:$0xff]
        %v2333 = vld [vmem:[%s2317 + $0x78] sm:$0xff]
        %2334 = vmatprep.subr.mxu0 0.0
        %2335 = vmatpush1.msra.mxu0 %v2318
        %2336 = vmatprep.subr.mxu0 0.0
        %2337 = vmatpush1.msra.mxu0 %v2319
        %2338 = vmatprep.subr.mxu0 0.0
        %2339 = vmatpush1.msra.mxu0 %v2320
        %2340 = vmatprep.subr.mxu0 0.0
        %2341 = vmatpush1.msra.mxu0 %v2321
        %2342 = vmatprep.subr.mxu0 0.0
        %2343 = vmatpush1.msra.mxu0 %v2322
        %2344 = vmatprep.subr.mxu0 0.0
        %2345 = vmatpush1.msra.mxu0 %v2323
        %2346 = vmatprep.subr.mxu0 0.0
        %2347 = vmatpush1.msra.mxu0 %v2324
        %2348 = vmatprep.subr.mxu0 0.0
        %2349 = vmatpush1.msra.mxu0 %v2325
        %2350 = vmatprep.subr.mxu0 0.0
        %2351 = vmatpush1.msra.mxu0 %v2326
        %2352 = vmatprep.subr.mxu0 0.0
        %2353 = vmatpush1.msra.mxu0 %v2327
        %2354 = vmatprep.subr.mxu0 0.0
        %2355 = vmatpush1.msra.mxu0 %v2328
        %2356 = vmatprep.subr.mxu0 0.0
        %2357 = vmatpush1.msra.mxu0 %v2329
        %2358 = vmatprep.subr.mxu0 0.0
        %2359 = vmatpush1.msra.mxu0 %v2330
        %2360 = vmatprep.subr.mxu0 0.0
        %2361 = vmatpush1.msra.mxu0 %v2331
        %2362 = vmatprep.subr.mxu0 0.0
        %2363 = vmatpush1.msra.mxu0 %v2332
        %2364 = vmatprep.subr.mxu0 0.0
        %2365 = vmatpush1.msra.mxu0 %v2333
        %2366 = vmatprep.subr.mxu0 0.0
        %2367 = vmatpush1.msra.mxu0 0.0
        %2368 = vmatprep.subr.mxu0 0.0
        %2369 = vmatpush1.msra.mxu0 0.0
        %2370 = vmatprep.subr.mxu0 0.0
        %2371 = vmatpush1.msra.mxu0 0.0
        %2372 = vmatprep.subr.mxu0 0.0
        %2373 = vmatpush1.msra.mxu0 0.0
        %2374 = vmatprep.subr.mxu0 0.0
        %2375 = vmatpush1.msra.mxu0 0.0
        %2376 = vmatprep.subr.mxu0 0.0
        %2377 = vmatpush1.msra.mxu0 0.0
        %2378 = vmatprep.subr.mxu0 0.0
        %2379 = vmatpush1.msra.mxu0 0.0
        %2380 = vmatprep.subr.mxu0 0.0
        %2381 = vmatpush1.msra.mxu0 0.0
        %2382 = vmatprep.subr.mxu0 0.0
        %2383 = vmatpush1.msra.mxu0 0.0
        %2384 = vmatprep.subr.mxu0 0.0
        %2385 = vmatpush1.msra.mxu0 0.0
        %2386 = vmatprep.subr.mxu0 0.0
        %2387 = vmatpush1.msra.mxu0 0.0
        %2388 = vmatprep.subr.mxu0 0.0
        %2389 = vmatpush1.msra.mxu0 0.0
        %2390 = vmatprep.subr.mxu0 0.0
        %2391 = vmatpush1.msra.mxu0 0.0
        %2392 = vmatprep.subr.mxu0 0.0
        %2393 = vmatpush1.msra.mxu0 0.0
        %2394 = vmatprep.subr.mxu0 0.0
        %2395 = vmatpush1.msra.mxu0 0.0
        %2396 = vmatprep.subr.mxu0 0.0
        %2397 = vmatpush1.msra.mxu0 0.0
        %2398 = vmatprep.mubr.f32.mxu0 0.0
        %2399 = vmatmul.mubr.f32.gmra.mrb[0].mxu0 %v2297
        %v2400 = vpop.f32.mrb[0].mxu0
        %v2401 = vadd.f32 0.0, %v2400
        %v2402 = vpop.f32.mrb[0].mxu0
        %2403 = vmatprep.mubr.f32.mxu0 0.0
        %2404 = vmatmul.mubr.f32.gmra.mrb[0].mxu0 %v2298
        %v2405 = vpop.f32.mrb[0].mxu0
        %v2406 = vadd.f32 0.0, %v2405
        %v2407 = vpop.f32.mrb[0].mxu0
        %2408 = vmatprep.mubr.f32.mxu0 0.0
        %2409 = vmatmul.mubr.f32.gmra.mrb[0].mxu0 %v2299
        %v2410 = vpop.f32.mrb[0].mxu0
        %v2411 = vadd.f32 0.0, %v2410
        %v2412 = vpop.f32.mrb[0].mxu0
        %2413 = vmatprep.mubr.f32.mxu0 0.0
        %2414 = vmatmul.mubr.f32.gmra.mrb[0].mxu0 %v2300
        %v2415 = vpop.f32.mrb[0].mxu0
        %v2416 = vadd.f32 0.0, %v2415
        %v2417 = vpop.f32.mrb[0].mxu0
        %2418 = vmatprep.mubr.f32.mxu0 0.0
        %2419 = vmatmul.mubr.f32.gmra.mrb[0].mxu0 %v2301
        %v2420 = vpop.f32.mrb[0].mxu0
        %v2421 = vadd.f32 0.0, %v2420
        %v2422 = vpop.f32.mrb[0].mxu0
        %2423 = vmatprep.mubr.f32.mxu0 0.0
        %2424 = vmatmul.mubr.f32.gmra.mrb[0].mxu0 %v2302
        %v2425 = vpop.f32.mrb[0].mxu0
        %v2426 = vadd.f32 0.0, %v2425
        %v2427 = vpop.f32.mrb[0].mxu0
        %2428 = vmatprep.mubr.f32.mxu0 0.0
        %2429 = vmatmul.mubr.f32.gmra.mrb[0].mxu0 %v2303
        %v2430 = vpop.f32.mrb[0].mxu0
        %v2431 = vadd.f32 0.0, %v2430
        %v2432 = vpop.f32.mrb[0].mxu0
        %2433 = vmatprep.mubr.f32.mxu0 0.0
        %2434 = vmatmul.mubr.f32.gmra.mrb[0].mxu0 %v2304
        %v2435 = vpop.f32.mrb[0].mxu0
        %v2436 = vadd.f32 0.0, %v2435
        %v2437 = vpop.f32.mrb[0].mxu0
        %2438 = vmatprep.mubr.f32.mxu0 0.0
        %2439 = vmatmul.mubr.f32.gmra.mrb[0].mxu0 %v2305
        %v2440 = vpop.f32.mrb[0].mxu0
        %v2441 = vadd.f32 0.0, %v2440
        %v2442 = vpop.f32.mrb[0].mxu0
        %2443 = vmatprep.mubr.f32.mxu0 0.0
        %2444 = vmatmul.mubr.f32.gmra.mrb[0].mxu0 %v2306
        %v2445 = vpop.f32.mrb[0].mxu0
        %v2446 = vadd.f32 0.0, %v2445
        %v2447 = vpop.f32.mrb[0].mxu0
        %2448 = vmatprep.mubr.f32.mxu0 0.0
        %2449 = vmatmul.mubr.f32.gmra.mrb[0].mxu0 %v2307
        %v2450 = vpop.f32.mrb[0].mxu0
        %v2451 = vadd.f32 0.0, %v2450
        %v2452 = vpop.f32.mrb[0].mxu0
        %2453 = vmatprep.mubr.f32.mxu0 0.0
        %2454 = vmatmul.mubr.f32.gmra.mrb[0].mxu0 %v2308
        %v2455 = vpop.f32.mrb[0].mxu0
        %v2456 = vadd.f32 0.0, %v2455
        %v2457 = vpop.f32.mrb[0].mxu0
        %2458 = vmatprep.mubr.f32.mxu0 0.0
        %2459 = vmatmul.mubr.f32.gmra.mrb[0].mxu0 %v2309
        %v2460 = vpop.f32.mrb[0].mxu0
        %v2461 = vadd.f32 0.0, %v2460
        %v2462 = vpop.f32.mrb[0].mxu0
        %2463 = vmatprep.mubr.f32.mxu0 0.0
        %2464 = vmatmul.mubr.f32.gmra.mrb[0].mxu0 %v2310
        %v2465 = vpop.f32.mrb[0].mxu0
        %v2466 = vadd.f32 0.0, %v2465
        %v2467 = vpop.f32.mrb[0].mxu0
        %2468 = vmatprep.mubr.f32.mxu0 0.0
        %2469 = vmatmul.mubr.f32.gmra.mrb[0].mxu0 %v2311
        %v2470 = vpop.f32.mrb[0].mxu0
        %v2471 = vadd.f32 0.0, %v2470
        %v2472 = vpop.f32.mrb[0].mxu0
        %2473 = vmatprep.mubr.f32.mxu0 0.0
        %2474 = vmatmul.mubr.f32.gmra.mrb[0].mxu0 %v2312
        %v2475 = vpop.f32.mrb[0].mxu0
        %v2476 = vadd.f32 0.0, %v2475
        %v2477 = vpop.f32.mrb[0].mxu0
        %2478 = vmatprep.mubr.f32.mxu0 0.0
        %2479 = vmatmul.mubr.f32.gmra.mrb[0].mxu0 %v2313
        %v2480 = vpop.f32.mrb[0].mxu0
        %v2481 = vadd.f32 0.0, %v2480
        %v2482 = vpop.f32.mrb[0].mxu0
        %2483 = vmatprep.mubr.f32.mxu0 0.0
        %2484 = vmatmul.mubr.f32.gmra.mrb[0].mxu0 %v2314
        %v2485 = vpop.f32.mrb[0].mxu0
        %v2486 = vadd.f32 0.0, %v2485
        %v2487 = vpop.f32.mrb[0].mxu0
        %2488 = vmatprep.mubr.f32.mxu0 0.0
        %2489 = vmatmul.mubr.f32.gmra.mrb[0].mxu0 %v2315
        %v2490 = vpop.f32.mrb[0].mxu0
        %v2491 = vadd.f32 0.0, %v2490
        %v2492 = vpop.f32.mrb[0].mxu0
        %2493 = vmatprep.mubr.f32.mxu0 0.0
        %2494 = vmatmul.mubr.f32.gmra.mrb[0].mxu0 %v2316
        %v2495 = vpop.f32.mrb[0].mxu0
        %v2496 = vadd.f32 0.0, %v2495
        %v2497 = vpop.f32.mrb[0].mxu0
        %2498 = vdwg.mxu0
        %v2499 = vadd.f32 %v2277, %v2401
        %v2500 = vadd.f32 %v2278, %v2406
        %v2501 = vadd.f32 %v2279, %v2411
        %v2502 = vadd.f32 %v2280, %v2416
        %v2503 = vadd.f32 %v2281, %v2421
        %v2504 = vadd.f32 %v2282, %v2426
        %v2505 = vadd.f32 %v2283, %v2431
        %v2506 = vadd.f32 %v2284, %v2436
        %v2507 = vadd.f32 %v2285, %v2441
        %v2508 = vadd.f32 %v2286, %v2446
        %v2509 = vadd.f32 %v2287, %v2451
        %v2510 = vadd.f32 %v2288, %v2456
        %v2511 = vadd.f32 %v2289, %v2461
        %v2512 = vadd.f32 %v2290, %v2466
        %v2513 = vadd.f32 %v2291, %v2471
        %v2514 = vadd.f32 %v2292, %v2476
        %v2515 = vadd.f32 %v2293, %v2481
        %v2516 = vadd.f32 %v2294, %v2486
        %v2517 = vadd.f32 %v2295, %v2491
        %v2518 = vadd.f32 %v2296, %v2496
        %v2519 = vld [vmem:[%s4] sm:$0x1]
        %v2521 = vlaneseq
        %v2522 = vshrl.u32 %v2521, 7
        %v2523 = vsub.s32 0, %v2522
        %v2524 = vrot.slane %v2519, %v2523
        %v2526 = vadd.f32 %v2499, %v2524
        %v2527 = vadd.f32 %v2500, %v2524
        %v2528 = vadd.f32 %v2501, %v2524
        %v2529 = vadd.f32 %v2502, %v2524
        %v2530 = vadd.f32 %v2503, %v2524
        %v2531 = vadd.f32 %v2504, %v2524
        %v2532 = vadd.f32 %v2505, %v2524
        %v2533 = vadd.f32 %v2506, %v2524
        %v2534 = vadd.f32 %v2507, %v2524
        %v2535 = vadd.f32 %v2508, %v2524
        %v2536 = vadd.f32 %v2509, %v2524
        %v2537 = vadd.f32 %v2510, %v2524
        %v2538 = vadd.f32 %v2511, %v2524
        %v2539 = vadd.f32 %v2512, %v2524
        %v2540 = vadd.f32 %v2513, %v2524
        %v2541 = vadd.f32 %v2514, %v2524
        %v2542 = vadd.f32 %v2515, %v2524
        %v2543 = vadd.f32 %v2516, %v2524
        %v2544 = vadd.f32 %v2517, %v2524
        %v2545 = vadd.f32 %v2518, %v2524
        %2546 = vst [vmem:[#allocation3 + $0x1] sm:$0xff] %v2526
        %2547 = vst [vmem:[#allocation3 + $0x9] sm:$0xff] %v2527
        %2548 = vst [vmem:[#allocation3 + $0x19] sm:$0xff] %v2528
        %2549 = vst [vmem:[#allocation3 + $0x21] sm:$0xff] %v2529
        %2550 = vst [vmem:[#allocation3 + $0x31] sm:$0xff] %v2530
        %2551 = vst [vmem:[#allocation3 + $0x39] sm:$0xff] %v2531
        %2552 = vst [vmem:[#allocation3 + $0x49] sm:$0xff] %v2532
        %2553 = vst [vmem:[#allocation3 + $0x51] sm:$0xff] %v2533
        %2554 = vst [vmem:[#allocation3 + $0x61] sm:$0xff] %v2534
        %2555 = vst [vmem:[#allocation3 + $0x69] sm:$0xff] %v2535
        %2556 = vst [vmem:[#allocation3 + $0x79] sm:$0xff] %v2536
        %2557 = vst [vmem:[#allocation3 + $0x81] sm:$0xff] %v2537
        %2558 = vst [vmem:[#allocation3 + $0x91] sm:$0xff] %v2538
        %2559 = vst [vmem:[#allocation3 + $0x99] sm:$0xff] %v2539
        %2560 = vst [vmem:[#allocation3 + $0xa9] sm:$0xff] %v2540
        %2561 = vst [vmem:[#allocation3 + $0xb1] sm:$0xff] %v2541
        %2562 = vst [vmem:[#allocation3 + $0xc1] sm:$0xff] %v2542
        %2563 = vst [vmem:[#allocation3 + $0xc9] sm:$0xff] %v2543
        %2564 = vst [vmem:[#allocation3 + $0xd9] sm:$0xff] %v2544
        %2565 = vst [vmem:[#allocation3 + $0xe1] sm:$0xff] %v2545
        %2566 = vst [vmem:[#allocation3] sm:$0x1] 0.0
        %2567 = vst [vmem:[#allocation3 + $0x18] sm:$0x1] 0.0
        %2568 = vst [vmem:[#allocation3 + $0x30] sm:$0x1] 0.0
        %2569 = vst [vmem:[#allocation3 + $0x48] sm:$0x1] 0.0
        %2570 = vst [vmem:[#allocation3 + $0x60] sm:$0x1] 0.0
        %2571 = vst [vmem:[#allocation3 + $0x78] sm:$0x1] 0.0
        %2572 = vst [vmem:[#allocation3 + $0x90] sm:$0x1] 0.0
        %2573 = vst [vmem:[#allocation3 + $0xa8] sm:$0x1] 0.0
        %2574 = vst [vmem:[#allocation3 + $0xc0] sm:$0x1] 0.0
        %2575 = vst [vmem:[#allocation3 + $0xd8] sm:$0x1] 0.0
        %2576 = vst [vmem:[#allocation3 + $0x11] sm:$0x1] 0.0
        %2577 = vst [vmem:[#allocation3 + $0x29] sm:$0x1] 0.0
        %2578 = vst [vmem:[#allocation3 + $0x41] sm:$0x1] 0.0
        %2579 = vst [vmem:[#allocation3 + $0x59] sm:$0x1] 0.0
        %2580 = vst [vmem:[#allocation3 + $0x71] sm:$0x1] 0.0
        %2581 = vst [vmem:[#allocation3 + $0x89] sm:$0x1] 0.0
        %2582 = vst [vmem:[#allocation3 + $0xa1] sm:$0x1] 0.0
        %2583 = vst [vmem:[#allocation3 + $0xb9] sm:$0x1] 0.0
        %2584 = vst [vmem:[#allocation3 + $0xd1] sm:$0x1] 0.0
        %2585 = vst [vmem:[#allocation3 + $0xe9] sm:$0x1] 0.0
        // Predicated region
        $region61: #{tpu_custom_call.1} parent=47 // pred_check
          %p2586 = pneg %p539
        $region62: #{tpu_custom_call.1} parent=47 // pred_check_branch
          %2588 = sbr.rel (%p2586) target = $region64
        $region63: #{tpu_custom_call.1} parent=47 // pred_region
          %2589 = vst [vmem:[#allocation3] sm:$0xff] 0.0
          %2590 = vst [vmem:[#allocation3 + $0x8] sm:$0xff] 0.0
          %2591 = vst [vmem:[#allocation3 + $0x10] sm:$0x3] 0.0
        $region64: #{tpu_custom_call.1} parent=47 // pred_fallthru
          _
        // Predicated region
        $region65: #{tpu_custom_call.1} parent=47 // pred_check
          %p2592 = pneg %p549
        $region66: #{tpu_custom_call.1} parent=47 // pred_check_branch
          %2594 = sbr.rel (%p2592) target = $region68
        $region67: #{tpu_custom_call.1} parent=47 // pred_region
          %s2595 = scalar_lea.vmem [#allocation3], 216
          %2596 = vst [vmem:[%s2595] sm:$0xff] 0.0
          %2597 = vst [vmem:[%s2595 + $0x8] sm:$0xff] 0.0
          %2598 = vst [vmem:[%s2595 + $0x10] sm:$0x3] 0.0
        $region68: #{tpu_custom_call.1} parent=47 // pred_fallthru
          _
        %v2599 = vld [vmem:[#allocation3] sm:$0xff]
        %v2600 = vld [vmem:[#allocation3 + $0x8] sm:$0xff]
        %v2601 = vld [vmem:[#allocation3 + $0x18] sm:$0xff]
        %v2602 = vld [vmem:[#allocation3 + $0x20] sm:$0xff]
        %v2603 = vld [vmem:[#allocation3 + $0x30] sm:$0xff]
        %v2604 = vld [vmem:[#allocation3 + $0x38] sm:$0xff]
        %v2605 = vld [vmem:[#allocation3 + $0x48] sm:$0xff]
        %v2606 = vld [vmem:[#allocation3 + $0x50] sm:$0xff]
        %v2607 = vld [vmem:[#allocation3 + $0x60] sm:$0xff]
        %v2608 = vld [vmem:[#allocation3 + $0x68] sm:$0xff]
        %v2609 = vld [vmem:[#allocation3 + $0x78] sm:$0xff]
        %v2610 = vld [vmem:[#allocation3 + $0x80] sm:$0xff]
        %v2611 = vld [vmem:[#allocation3 + $0x90] sm:$0xff]
        %v2612 = vld [vmem:[#allocation3 + $0x98] sm:$0xff]
        %v2613 = vld [vmem:[#allocation3 + $0xa8] sm:$0xff]
        %v2614 = vld [vmem:[#allocation3 + $0xb0] sm:$0xff]
        %v2615 = vld [vmem:[#allocation4] sm:$0xff]
        %v2616 = vld [vmem:[#allocation4 + $0x8] sm:$0xff]
        %v2617 = vld [vmem:[#allocation4 + $0x10] sm:$0xff]
        %v2618 = vld [vmem:[#allocation4 + $0x18] sm:$0xff]
        %v2619 = vld [vmem:[#allocation4 + $0x20] sm:$0xff]
        %v2620 = vld [vmem:[#allocation4 + $0x28] sm:$0xff]
        %v2621 = vld [vmem:[#allocation4 + $0x30] sm:$0xff]
        %v2622 = vld [vmem:[#allocation4 + $0x38] sm:$0xff]
        %v2623 = vld [vmem:[#allocation4 + $0x40] sm:$0xff]
        %v2624 = vld [vmem:[#allocation4 + $0x48] sm:$0xff]
        %v2625 = vld [vmem:[#allocation4 + $0x50] sm:$0xff]
        %v2626 = vld [vmem:[#allocation4 + $0x58] sm:$0xff]
        %v2627 = vld [vmem:[#allocation4 + $0x60] sm:$0xff]
        %v2628 = vld [vmem:[#allocation4 + $0x68] sm:$0xff]
        %v2629 = vld [vmem:[#allocation4 + $0x70] sm:$0xff]
        %v2630 = vld [vmem:[#allocation4 + $0x78] sm:$0xff]
        %v2631 = vld [vmem:[#allocation3 + $0x1] sm:$0xff]
        %v2632 = vld [vmem:[#allocation3 + $0x9] sm:$0xff]
        %v2633 = vld [vmem:[#allocation3 + $0x19] sm:$0xff]
        %v2634 = vld [vmem:[#allocation3 + $0x21] sm:$0xff]
        %v2635 = vld [vmem:[#allocation3 + $0x31] sm:$0xff]
        %v2636 = vld [vmem:[#allocation3 + $0x39] sm:$0xff]
        %v2637 = vld [vmem:[#allocation3 + $0x49] sm:$0xff]
        %v2638 = vld [vmem:[#allocation3 + $0x51] sm:$0xff]
        %v2639 = vld [vmem:[#allocation3 + $0x61] sm:$0xff]
        %v2640 = vld [vmem:[#allocation3 + $0x69] sm:$0xff]
        %v2641 = vld [vmem:[#allocation3 + $0x79] sm:$0xff]
        %v2642 = vld [vmem:[#allocation3 + $0x81] sm:$0xff]
        %v2643 = vld [vmem:[#allocation3 + $0x91] sm:$0xff]
        %v2644 = vld [vmem:[#allocation3 + $0x99] sm:$0xff]
        %v2645 = vld [vmem:[#allocation3 + $0xa9] sm:$0xff]
        %v2646 = vld [vmem:[#allocation3 + $0xb1] sm:$0xff]
        %s2647 = scalar_lea.vmem [#allocation4], 128
        %v2648 = vld [vmem:[%s2647] sm:$0xff]
        %v2649 = vld [vmem:[%s2647 + $0x8] sm:$0xff]
        %v2650 = vld [vmem:[%s2647 + $0x10] sm:$0xff]
        %v2651 = vld [vmem:[%s2647 + $0x18] sm:$0xff]
        %v2652 = vld [vmem:[%s2647 + $0x20] sm:$0xff]
        %v2653 = vld [vmem:[%s2647 + $0x28] sm:$0xff]
        %v2654 = vld [vmem:[%s2647 + $0x30] sm:$0xff]
        %v2655 = vld [vmem:[%s2647 + $0x38] sm:$0xff]
        %v2656 = vld [vmem:[%s2647 + $0x40] sm:$0xff]
        %v2657 = vld [vmem:[%s2647 + $0x48] sm:$0xff]
        %v2658 = vld [vmem:[%s2647 + $0x50] sm:$0xff]
        %v2659 = vld [vmem:[%s2647 + $0x58] sm:$0xff]
        %v2660 = vld [vmem:[%s2647 + $0x60] sm:$0xff]
        %v2661 = vld [vmem:[%s2647 + $0x68] sm:$0xff]
        %v2662 = vld [vmem:[%s2647 + $0x70] sm:$0xff]
        %v2663 = vld [vmem:[%s2647 + $0x78] sm:$0xff]
        %2664 = vmatprep.subr.mxu0 0.0
        %2665 = vmatpush1.msra.mxu0 %v2648
        %2666 = vmatprep.subr.mxu0 0.0
        %2667 = vmatpush1.msra.mxu0 %v2649
        %2668 = vmatprep.subr.mxu0 0.0
        %2669 = vmatpush1.msra.mxu0 %v2650
        %2670 = vmatprep.subr.mxu0 0.0
        %2671 = vmatpush1.msra.mxu0 %v2651
        %2672 = vmatprep.subr.mxu0 0.0
        %2673 = vmatpush1.msra.mxu0 %v2652
        %2674 = vmatprep.subr.mxu0 0.0
        %2675 = vmatpush1.msra.mxu0 %v2653
        %2676 = vmatprep.subr.mxu0 0.0
        %2677 = vmatpush1.msra.mxu0 %v2654
        %2678 = vmatprep.subr.mxu0 0.0
        %2679 = vmatpush1.msra.mxu0 %v2655
        %2680 = vmatprep.subr.mxu0 0.0
        %2681 = vmatpush1.msra.mxu0 %v2656
        %2682 = vmatprep.subr.mxu0 0.0
        %2683 = vmatpush1.msra.mxu0 %v2657
        %2684 = vmatprep.subr.mxu0 0.0
        %2685 = vmatpush1.msra.mxu0 %v2658
        %2686 = vmatprep.subr.mxu0 0.0
        %2687 = vmatpush1.msra.mxu0 %v2659
        %2688 = vmatprep.subr.mxu0 0.0
        %2689 = vmatpush1.msra.mxu0 %v2660
        %2690 = vmatprep.subr.mxu0 0.0
        %2691 = vmatpush1.msra.mxu0 %v2661
        %2692 = vmatprep.subr.mxu0 0.0
        %2693 = vmatpush1.msra.mxu0 %v2662
        %2694 = vmatprep.subr.mxu0 0.0
        %2695 = vmatpush1.msra.mxu0 %v2663
        %2696 = vmatprep.subr.mxu0 0.0
        %2697 = vmatpush1.msra.mxu0 0.0
        %2698 = vmatprep.subr.mxu0 0.0
        %2699 = vmatpush1.msra.mxu0 0.0
        %2700 = vmatprep.subr.mxu0 0.0
        %2701 = vmatpush1.msra.mxu0 0.0
        %2702 = vmatprep.subr.mxu0 0.0
        %2703 = vmatpush1.msra.mxu0 0.0
        %2704 = vmatprep.subr.mxu0 0.0
        %2705 = vmatpush1.msra.mxu0 0.0
        %2706 = vmatprep.subr.mxu0 0.0
        %2707 = vmatpush1.msra.mxu0 0.0
        %2708 = vmatprep.subr.mxu0 0.0
        %2709 = vmatpush1.msra.mxu0 0.0
        %2710 = vmatprep.subr.mxu0 0.0
        %2711 = vmatpush1.msra.mxu0 0.0
        %2712 = vmatprep.subr.mxu0 0.0
        %2713 = vmatpush1.msra.mxu0 0.0
        %2714 = vmatprep.subr.mxu0 0.0
        %2715 = vmatpush1.msra.mxu0 0.0
        %2716 = vmatprep.subr.mxu0 0.0
        %2717 = vmatpush1.msra.mxu0 0.0
        %2718 = vmatprep.subr.mxu0 0.0
        %2719 = vmatpush1.msra.mxu0 0.0
        %2720 = vmatprep.subr.mxu0 0.0
        %2721 = vmatpush1.msra.mxu0 0.0
        %2722 = vmatprep.subr.mxu0 0.0
        %2723 = vmatpush1.msra.mxu0 0.0
        %2724 = vmatprep.subr.mxu0 0.0
        %2725 = vmatpush1.msra.mxu0 0.0
        %2726 = vmatprep.subr.mxu0 0.0
        %2727 = vmatpush1.msra.mxu0 0.0
        %2728 = vmatprep.mubr.f32.mxu0 0.0
        %2729 = vmatmul.mubr.f32.gmra.mrb[0].mxu0 %v2631
        %v2730 = vpop.f32.mrb[0].mxu0
        %v2731 = vadd.f32 0.0, %v2730
        %v2732 = vpop.f32.mrb[0].mxu0
        %2733 = vmatprep.mubr.f32.mxu0 0.0
        %2734 = vmatmul.mubr.f32.gmra.mrb[0].mxu0 %v2632
        %v2735 = vpop.f32.mrb[0].mxu0
        %v2736 = vadd.f32 0.0, %v2735
        %v2737 = vpop.f32.mrb[0].mxu0
        %2738 = vmatprep.mubr.f32.mxu0 0.0
        %2739 = vmatmul.mubr.f32.gmra.mrb[0].mxu0 %v2633
        %v2740 = vpop.f32.mrb[0].mxu0
        %v2741 = vadd.f32 0.0, %v2740
        %v2742 = vpop.f32.mrb[0].mxu0
        %2743 = vmatprep.mubr.f32.mxu0 0.0
        %2744 = vmatmul.mubr.f32.gmra.mrb[0].mxu0 %v2634
        %v2745 = vpop.f32.mrb[0].mxu0
        %v2746 = vadd.f32 0.0, %v2745
        %v2747 = vpop.f32.mrb[0].mxu0
        %2748 = vmatprep.mubr.f32.mxu0 0.0
        %2749 = vmatmul.mubr.f32.gmra.mrb[0].mxu0 %v2635
        %v2750 = vpop.f32.mrb[0].mxu0
        %v2751 = vadd.f32 0.0, %v2750
        %v2752 = vpop.f32.mrb[0].mxu0
        %2753 = vmatprep.mubr.f32.mxu0 0.0
        %2754 = vmatmul.mubr.f32.gmra.mrb[0].mxu0 %v2636
        %v2755 = vpop.f32.mrb[0].mxu0
        %v2756 = vadd.f32 0.0, %v2755
        %v2757 = vpop.f32.mrb[0].mxu0
        %2758 = vmatprep.mubr.f32.mxu0 0.0
        %2759 = vmatmul.mubr.f32.gmra.mrb[0].mxu0 %v2637
        %v2760 = vpop.f32.mrb[0].mxu0
        %v2761 = vadd.f32 0.0, %v2760
        %v2762 = vpop.f32.mrb[0].mxu0
        %2763 = vmatprep.mubr.f32.mxu0 0.0
        %2764 = vmatmul.mubr.f32.gmra.mrb[0].mxu0 %v2638
        %v2765 = vpop.f32.mrb[0].mxu0
        %v2766 = vadd.f32 0.0, %v2765
        %v2767 = vpop.f32.mrb[0].mxu0
        %2768 = vmatprep.mubr.f32.mxu0 0.0
        %2769 = vmatmul.mubr.f32.gmra.mrb[0].mxu0 %v2639
        %v2770 = vpop.f32.mrb[0].mxu0
        %v2771 = vadd.f32 0.0, %v2770
        %v2772 = vpop.f32.mrb[0].mxu0
        %2773 = vmatprep.mubr.f32.mxu0 0.0
        %2774 = vmatmul.mubr.f32.gmra.mrb[0].mxu0 %v2640
        %v2775 = vpop.f32.mrb[0].mxu0
        %v2776 = vadd.f32 0.0, %v2775
        %v2777 = vpop.f32.mrb[0].mxu0
        %2778 = vmatprep.mubr.f32.mxu0 0.0
        %2779 = vmatmul.mubr.f32.gmra.mrb[0].mxu0 %v2641
        %v2780 = vpop.f32.mrb[0].mxu0
        %v2781 = vadd.f32 0.0, %v2780
        %v2782 = vpop.f32.mrb[0].mxu0
        %2783 = vmatprep.mubr.f32.mxu0 0.0
        %2784 = vmatmul.mubr.f32.gmra.mrb[0].mxu0 %v2642
        %v2785 = vpop.f32.mrb[0].mxu0
        %v2786 = vadd.f32 0.0, %v2785
        %v2787 = vpop.f32.mrb[0].mxu0
        %2788 = vmatprep.mubr.f32.mxu0 0.0
        %2789 = vmatmul.mubr.f32.gmra.mrb[0].mxu0 %v2643
        %v2790 = vpop.f32.mrb[0].mxu0
        %v2791 = vadd.f32 0.0, %v2790
        %v2792 = vpop.f32.mrb[0].mxu0
        %2793 = vmatprep.mubr.f32.mxu0 0.0
        %2794 = vmatmul.mubr.f32.gmra.mrb[0].mxu0 %v2644
        %v2795 = vpop.f32.mrb[0].mxu0
        %v2796 = vadd.f32 0.0, %v2795
        %v2797 = vpop.f32.mrb[0].mxu0
        %2798 = vmatprep.mubr.f32.mxu0 0.0
        %2799 = vmatmul.mubr.f32.gmra.mrb[0].mxu0 %v2645
        %v2800 = vpop.f32.mrb[0].mxu0
        %v2801 = vadd.f32 0.0, %v2800
        %v2802 = vpop.f32.mrb[0].mxu0
        %2803 = vmatprep.mubr.f32.mxu0 0.0
        %2804 = vmatmul.mubr.f32.gmra.mrb[0].mxu0 %v2646
        %v2805 = vpop.f32.mrb[0].mxu0
        %v2806 = vadd.f32 0.0, %v2805
        %v2807 = vpop.f32.mrb[0].mxu0
        %2808 = vdwg.mxu0
        %2809 = vmatprep.subr.mxu0 0.0
        %2810 = vmatpush1.msra.mxu0 %v2615
        %2811 = vmatprep.subr.mxu0 0.0
        %2812 = vmatpush1.msra.mxu0 %v2616
        %2813 = vmatprep.subr.mxu0 0.0
        %2814 = vmatpush1.msra.mxu0 %v2617
        %2815 = vmatprep.subr.mxu0 0.0
        %2816 = vmatpush1.msra.mxu0 %v2618
        %2817 = vmatprep.subr.mxu0 0.0
        %2818 = vmatpush1.msra.mxu0 %v2619
        %2819 = vmatprep.subr.mxu0 0.0
        %2820 = vmatpush1.msra.mxu0 %v2620
        %2821 = vmatprep.subr.mxu0 0.0
        %2822 = vmatpush1.msra.mxu0 %v2621
        %2823 = vmatprep.subr.mxu0 0.0
        %2824 = vmatpush1.msra.mxu0 %v2622
        %2825 = vmatprep.subr.mxu0 0.0
        %2826 = vmatpush1.msra.mxu0 %v2623
        %2827 = vmatprep.subr.mxu0 0.0
        %2828 = vmatpush1.msra.mxu0 %v2624
        %2829 = vmatprep.subr.mxu0 0.0
        %2830 = vmatpush1.msra.mxu0 %v2625
        %2831 = vmatprep.subr.mxu0 0.0
        %2832 = vmatpush1.msra.mxu0 %v2626
        %2833 = vmatprep.subr.mxu0 0.0
        %2834 = vmatpush1.msra.mxu0 %v2627
        %2835 = vmatprep.subr.mxu0 0.0
        %2836 = vmatpush1.msra.mxu0 %v2628
        %2837 = vmatprep.subr.mxu0 0.0
        %2838 = vmatpush1.msra.mxu0 %v2629
        %2839 = vmatprep.subr.mxu0 0.0
        %2840 = vmatpush1.msra.mxu0 %v2630
        %2841 = vmatprep.subr.mxu0 0.0
        %2842 = vmatpush1.msra.mxu0 0.0
        %2843 = vmatprep.subr.mxu0 0.0
        %2844 = vmatpush1.msra.mxu0 0.0
        %2845 = vmatprep.subr.mxu0 0.0
        %2846 = vmatpush1.msra.mxu0 0.0
        %2847 = vmatprep.subr.mxu0 0.0
        %2848 = vmatpush1.msra.mxu0 0.0
        %2849 = vmatprep.subr.mxu0 0.0
        %2850 = vmatpush1.msra.mxu0 0.0
        %2851 = vmatprep.subr.mxu0 0.0
        %2852 = vmatpush1.msra.mxu0 0.0
        %2853 = vmatprep.subr.mxu0 0.0
        %2854 = vmatpush1.msra.mxu0 0.0
        %2855 = vmatprep.subr.mxu0 0.0
        %2856 = vmatpush1.msra.mxu0 0.0
        %2857 = vmatprep.subr.mxu0 0.0
        %2858 = vmatpush1.msra.mxu0 0.0
        %2859 = vmatprep.subr.mxu0 0.0
        %2860 = vmatpush1.msra.mxu0 0.0
        %2861 = vmatprep.subr.mxu0 0.0
        %2862 = vmatpush1.msra.mxu0 0.0
        %2863 = vmatprep.subr.mxu0 0.0
        %2864 = vmatpush1.msra.mxu0 0.0
        %2865 = vmatprep.subr.mxu0 0.0
        %2866 = vmatpush1.msra.mxu0 0.0
        %2867 = vmatprep.subr.mxu0 0.0
        %2868 = vmatpush1.msra.mxu0 0.0
        %2869 = vmatprep.subr.mxu0 0.0
        %2870 = vmatpush1.msra.mxu0 0.0
        %2871 = vmatprep.subr.mxu0 0.0
        %2872 = vmatpush1.msra.mxu0 0.0
        %2873 = vmatprep.mubr.f32.mxu0 0.0
        %2874 = vmatmul.mubr.f32.gmra.mrb[0].mxu0 %v2599
        %v2875 = vpop.f32.mrb[0].mxu0
        %v2876 = vadd.f32 %v2731, %v2875
        %v2877 = vpop.f32.mrb[0].mxu0
        %2878 = vmatprep.mubr.f32.mxu0 0.0
        %2879 = vmatmul.mubr.f32.gmra.mrb[0].mxu0 %v2600
        %v2880 = vpop.f32.mrb[0].mxu0
        %v2881 = vadd.f32 %v2736, %v2880
        %v2882 = vpop.f32.mrb[0].mxu0
        %2883 = vmatprep.mubr.f32.mxu0 0.0
        %2884 = vmatmul.mubr.f32.gmra.mrb[0].mxu0 %v2601
        %v2885 = vpop.f32.mrb[0].mxu0
        %v2886 = vadd.f32 %v2741, %v2885
        %v2887 = vpop.f32.mrb[0].mxu0
        %2888 = vmatprep.mubr.f32.mxu0 0.0
        %2889 = vmatmul.mubr.f32.gmra.mrb[0].mxu0 %v2602
        %v2890 = vpop.f32.mrb[0].mxu0
        %v2891 = vadd.f32 %v2746, %v2890
        %v2892 = vpop.f32.mrb[0].mxu0
        %2893 = vmatprep.mubr.f32.mxu0 0.0
        %2894 = vmatmul.mubr.f32.gmra.mrb[0].mxu0 %v2603
        %v2895 = vpop.f32.mrb[0].mxu0
        %v2896 = vadd.f32 %v2751, %v2895
        %v2897 = vpop.f32.mrb[0].mxu0
        %2898 = vmatprep.mubr.f32.mxu0 0.0
        %2899 = vmatmul.mubr.f32.gmra.mrb[0].mxu0 %v2604
        %v2900 = vpop.f32.mrb[0].mxu0
        %v2901 = vadd.f32 %v2756, %v2900
        %v2902 = vpop.f32.mrb[0].mxu0
        %2903 = vmatprep.mubr.f32.mxu0 0.0
        %2904 = vmatmul.mubr.f32.gmra.mrb[0].mxu0 %v2605
        %v2905 = vpop.f32.mrb[0].mxu0
        %v2906 = vadd.f32 %v2761, %v2905
        %v2907 = vpop.f32.mrb[0].mxu0
        %2908 = vmatprep.mubr.f32.mxu0 0.0
        %2909 = vmatmul.mubr.f32.gmra.mrb[0].mxu0 %v2606
        %v2910 = vpop.f32.mrb[0].mxu0
        %v2911 = vadd.f32 %v2766, %v2910
        %v2912 = vpop.f32.mrb[0].mxu0
        %2913 = vmatprep.mubr.f32.mxu0 0.0
        %2914 = vmatmul.mubr.f32.gmra.mrb[0].mxu0 %v2607
        %v2915 = vpop.f32.mrb[0].mxu0
        %v2916 = vadd.f32 %v2771, %v2915
        %v2917 = vpop.f32.mrb[0].mxu0
        %2918 = vmatprep.mubr.f32.mxu0 0.0
        %2919 = vmatmul.mubr.f32.gmra.mrb[0].mxu0 %v2608
        %v2920 = vpop.f32.mrb[0].mxu0
        %v2921 = vadd.f32 %v2776, %v2920
        %v2922 = vpop.f32.mrb[0].mxu0
        %2923 = vmatprep.mubr.f32.mxu0 0.0
        %2924 = vmatmul.mubr.f32.gmra.mrb[0].mxu0 %v2609
        %v2925 = vpop.f32.mrb[0].mxu0
        %v2926 = vadd.f32 %v2781, %v2925
        %v2927 = vpop.f32.mrb[0].mxu0
        %2928 = vmatprep.mubr.f32.mxu0 0.0
        %2929 = vmatmul.mubr.f32.gmra.mrb[0].mxu0 %v2610
        %v2930 = vpop.f32.mrb[0].mxu0
        %v2931 = vadd.f32 %v2786, %v2930
        %v2932 = vpop.f32.mrb[0].mxu0
        %2933 = vmatprep.mubr.f32.mxu0 0.0
        %2934 = vmatmul.mubr.f32.gmra.mrb[0].mxu0 %v2611
        %v2935 = vpop.f32.mrb[0].mxu0
        %v2936 = vadd.f32 %v2791, %v2935
        %v2937 = vpop.f32.mrb[0].mxu0
        %2938 = vmatprep.mubr.f32.mxu0 0.0
        %2939 = vmatmul.mubr.f32.gmra.mrb[0].mxu0 %v2612
        %v2940 = vpop.f32.mrb[0].mxu0
        %v2941 = vadd.f32 %v2796, %v2940
        %v2942 = vpop.f32.mrb[0].mxu0
        %2943 = vmatprep.mubr.f32.mxu0 0.0
        %2944 = vmatmul.mubr.f32.gmra.mrb[0].mxu0 %v2613
        %v2945 = vpop.f32.mrb[0].mxu0
        %v2946 = vadd.f32 %v2801, %v2945
        %v2947 = vpop.f32.mrb[0].mxu0
        %2948 = vmatprep.mubr.f32.mxu0 0.0
        %2949 = vmatmul.mubr.f32.gmra.mrb[0].mxu0 %v2614
        %v2950 = vpop.f32.mrb[0].mxu0
        %v2951 = vadd.f32 %v2806, %v2950
        %v2952 = vpop.f32.mrb[0].mxu0
        %2953 = vdwg.mxu0
        %v2954 = vld [vmem:[#allocation3 + $0x2] sm:$0xff]
        %v2955 = vld [vmem:[#allocation3 + $0xa] sm:$0xff]
        %v2956 = vld [vmem:[#allocation3 + $0x1a] sm:$0xff]
        %v2957 = vld [vmem:[#allocation3 + $0x22] sm:$0xff]
        %v2958 = vld [vmem:[#allocation3 + $0x32] sm:$0xff]
        %v2959 = vld [vmem:[#allocation3 + $0x3a] sm:$0xff]
        %v2960 = vld [vmem:[#allocation3 + $0x4a] sm:$0xff]
        %v2961 = vld [vmem:[#allocation3 + $0x52] sm:$0xff]
        %v2962 = vld [vmem:[#allocation3 + $0x62] sm:$0xff]
        %v2963 = vld [vmem:[#allocation3 + $0x6a] sm:$0xff]
        %v2964 = vld [vmem:[#allocation3 + $0x7a] sm:$0xff]
        %v2965 = vld [vmem:[#allocation3 + $0x82] sm:$0xff]
        %v2966 = vld [vmem:[#allocation3 + $0x92] sm:$0xff]
        %v2967 = vld [vmem:[#allocation3 + $0x9a] sm:$0xff]
        %v2968 = vld [vmem:[#allocation3 + $0xaa] sm:$0xff]
        %v2969 = vld [vmem:[#allocation3 + $0xb2] sm:$0xff]
        %s2970 = scalar_lea.vmem [#allocation4], 256
        %v2971 = vld [vmem:[%s2970] sm:$0xff]
        %v2972 = vld [vmem:[%s2970 + $0x8] sm:$0xff]
        %v2973 = vld [vmem:[%s2970 + $0x10] sm:$0xff]
        %v2974 = vld [vmem:[%s2970 + $0x18] sm:$0xff]
        %v2975 = vld [vmem:[%s2970 + $0x20] sm:$0xff]
        %v2976 = vld [vmem:[%s2970 + $0x28] sm:$0xff]
        %v2977 = vld [vmem:[%s2970 + $0x30] sm:$0xff]
        %v2978 = vld [vmem:[%s2970 + $0x38] sm:$0xff]
        %v2979 = vld [vmem:[%s2970 + $0x40] sm:$0xff]
        %v2980 = vld [vmem:[%s2970 + $0x48] sm:$0xff]
        %v2981 = vld [vmem:[%s2970 + $0x50] sm:$0xff]
        %v2982 = vld [vmem:[%s2970 + $0x58] sm:$0xff]
        %v2983 = vld [vmem:[%s2970 + $0x60] sm:$0xff]
        %v2984 = vld [vmem:[%s2970 + $0x68] sm:$0xff]
        %v2985 = vld [vmem:[%s2970 + $0x70] sm:$0xff]
        %v2986 = vld [vmem:[%s2970 + $0x78] sm:$0xff]
        %2987 = vmatprep.subr.mxu0 0.0
        %2988 = vmatpush1.msra.mxu0 %v2971
        %2989 = vmatprep.subr.mxu0 0.0
        %2990 = vmatpush1.msra.mxu0 %v2972
        %2991 = vmatprep.subr.mxu0 0.0
        %2992 = vmatpush1.msra.mxu0 %v2973
        %2993 = vmatprep.subr.mxu0 0.0
        %2994 = vmatpush1.msra.mxu0 %v2974
        %2995 = vmatprep.subr.mxu0 0.0
        %2996 = vmatpush1.msra.mxu0 %v2975
        %2997 = vmatprep.subr.mxu0 0.0
        %2998 = vmatpush1.msra.mxu0 %v2976
        %2999 = vmatprep.subr.mxu0 0.0
        %3000 = vmatpush1.msra.mxu0 %v2977
        %3001 = vmatprep.subr.mxu0 0.0
        %3002 = vmatpush1.msra.mxu0 %v2978
        %3003 = vmatprep.subr.mxu0 0.0
        %3004 = vmatpush1.msra.mxu0 %v2979
        %3005 = vmatprep.subr.mxu0 0.0
        %3006 = vmatpush1.msra.mxu0 %v2980
        %3007 = vmatprep.subr.mxu0 0.0
        %3008 = vmatpush1.msra.mxu0 %v2981
        %3009 = vmatprep.subr.mxu0 0.0
        %3010 = vmatpush1.msra.mxu0 %v2982
        %3011 = vmatprep.subr.mxu0 0.0
        %3012 = vmatpush1.msra.mxu0 %v2983
        %3013 = vmatprep.subr.mxu0 0.0
        %3014 = vmatpush1.msra.mxu0 %v2984
        %3015 = vmatprep.subr.mxu0 0.0
        %3016 = vmatpush1.msra.mxu0 %v2985
        %3017 = vmatprep.subr.mxu0 0.0
        %3018 = vmatpush1.msra.mxu0 %v2986
        %3019 = vmatprep.subr.mxu0 0.0
        %3020 = vmatpush1.msra.mxu0 0.0
        %3021 = vmatprep.subr.mxu0 0.0
        %3022 = vmatpush1.msra.mxu0 0.0
        %3023 = vmatprep.subr.mxu0 0.0
        %3024 = vmatpush1.msra.mxu0 0.0
        %3025 = vmatprep.subr.mxu0 0.0
        %3026 = vmatpush1.msra.mxu0 0.0
        %3027 = vmatprep.subr.mxu0 0.0
        %3028 = vmatpush1.msra.mxu0 0.0
        %3029 = vmatprep.subr.mxu0 0.0
        %3030 = vmatpush1.msra.mxu0 0.0
        %3031 = vmatprep.subr.mxu0 0.0
        %3032 = vmatpush1.msra.mxu0 0.0
        %3033 = vmatprep.subr.mxu0 0.0
        %3034 = vmatpush1.msra.mxu0 0.0
        %3035 = vmatprep.subr.mxu0 0.0
        %3036 = vmatpush1.msra.mxu0 0.0
        %3037 = vmatprep.subr.mxu0 0.0
        %3038 = vmatpush1.msra.mxu0 0.0
        %3039 = vmatprep.subr.mxu0 0.0
        %3040 = vmatpush1.msra.mxu0 0.0
        %3041 = vmatprep.subr.mxu0 0.0
        %3042 = vmatpush1.msra.mxu0 0.0
        %3043 = vmatprep.subr.mxu0 0.0
        %3044 = vmatpush1.msra.mxu0 0.0
        %3045 = vmatprep.subr.mxu0 0.0
        %3046 = vmatpush1.msra.mxu0 0.0
        %3047 = vmatprep.subr.mxu0 0.0
        %3048 = vmatpush1.msra.mxu0 0.0
        %3049 = vmatprep.subr.mxu0 0.0
        %3050 = vmatpush1.msra.mxu0 0.0
        %3051 = vmatprep.mubr.f32.mxu0 0.0
        %3052 = vmatmul.mubr.f32.gmra.mrb[0].mxu0 %v2954
        %v3053 = vpop.f32.mrb[0].mxu0
        %v3054 = vadd.f32 0.0, %v3053
        %v3055 = vpop.f32.mrb[0].mxu0
        %3056 = vmatprep.mubr.f32.mxu0 0.0
        %3057 = vmatmul.mubr.f32.gmra.mrb[0].mxu0 %v2955
        %v3058 = vpop.f32.mrb[0].mxu0
        %v3059 = vadd.f32 0.0, %v3058
        %v3060 = vpop.f32.mrb[0].mxu0
        %3061 = vmatprep.mubr.f32.mxu0 0.0
        %3062 = vmatmul.mubr.f32.gmra.mrb[0].mxu0 %v2956
        %v3063 = vpop.f32.mrb[0].mxu0
        %v3064 = vadd.f32 0.0, %v3063
        %v3065 = vpop.f32.mrb[0].mxu0
        %3066 = vmatprep.mubr.f32.mxu0 0.0
        %3067 = vmatmul.mubr.f32.gmra.mrb[0].mxu0 %v2957
        %v3068 = vpop.f32.mrb[0].mxu0
        %v3069 = vadd.f32 0.0, %v3068
        %v3070 = vpop.f32.mrb[0].mxu0
        %3071 = vmatprep.mubr.f32.mxu0 0.0
        %3072 = vmatmul.mubr.f32.gmra.mrb[0].mxu0 %v2958
        %v3073 = vpop.f32.mrb[0].mxu0
        %v3074 = vadd.f32 0.0, %v3073
        %v3075 = vpop.f32.mrb[0].mxu0
        %3076 = vmatprep.mubr.f32.mxu0 0.0
        %3077 = vmatmul.mubr.f32.gmra.mrb[0].mxu0 %v2959
        %v3078 = vpop.f32.mrb[0].mxu0
        %v3079 = vadd.f32 0.0, %v3078
        %v3080 = vpop.f32.mrb[0].mxu0
        %3081 = vmatprep.mubr.f32.mxu0 0.0
        %3082 = vmatmul.mubr.f32.gmra.mrb[0].mxu0 %v2960
        %v3083 = vpop.f32.mrb[0].mxu0
        %v3084 = vadd.f32 0.0, %v3083
        %v3085 = vpop.f32.mrb[0].mxu0
        %3086 = vmatprep.mubr.f32.mxu0 0.0
        %3087 = vmatmul.mubr.f32.gmra.mrb[0].mxu0 %v2961
        %v3088 = vpop.f32.mrb[0].mxu0
        %v3089 = vadd.f32 0.0, %v3088
        %v3090 = vpop.f32.mrb[0].mxu0
        %3091 = vmatprep.mubr.f32.mxu0 0.0
        %3092 = vmatmul.mubr.f32.gmra.mrb[0].mxu0 %v2962
        %v3093 = vpop.f32.mrb[0].mxu0
        %v3094 = vadd.f32 0.0, %v3093
        %v3095 = vpop.f32.mrb[0].mxu0
        %3096 = vmatprep.mubr.f32.mxu0 0.0
        %3097 = vmatmul.mubr.f32.gmra.mrb[0].mxu0 %v2963
        %v3098 = vpop.f32.mrb[0].mxu0
        %v3099 = vadd.f32 0.0, %v3098
        %v3100 = vpop.f32.mrb[0].mxu0
        %3101 = vmatprep.mubr.f32.mxu0 0.0
        %3102 = vmatmul.mubr.f32.gmra.mrb[0].mxu0 %v2964
        %v3103 = vpop.f32.mrb[0].mxu0
        %v3104 = vadd.f32 0.0, %v3103
        %v3105 = vpop.f32.mrb[0].mxu0
        %3106 = vmatprep.mubr.f32.mxu0 0.0
        %3107 = vmatmul.mubr.f32.gmra.mrb[0].mxu0 %v2965
        %v3108 = vpop.f32.mrb[0].mxu0
        %v3109 = vadd.f32 0.0, %v3108
        %v3110 = vpop.f32.mrb[0].mxu0
        %3111 = vmatprep.mubr.f32.mxu0 0.0
        %3112 = vmatmul.mubr.f32.gmra.mrb[0].mxu0 %v2966
        %v3113 = vpop.f32.mrb[0].mxu0
        %v3114 = vadd.f32 0.0, %v3113
        %v3115 = vpop.f32.mrb[0].mxu0
        %3116 = vmatprep.mubr.f32.mxu0 0.0
        %3117 = vmatmul.mubr.f32.gmra.mrb[0].mxu0 %v2967
        %v3118 = vpop.f32.mrb[0].mxu0
        %v3119 = vadd.f32 0.0, %v3118
        %v3120 = vpop.f32.mrb[0].mxu0
        %3121 = vmatprep.mubr.f32.mxu0 0.0
        %3122 = vmatmul.mubr.f32.gmra.mrb[0].mxu0 %v2968
        %v3123 = vpop.f32.mrb[0].mxu0
        %v3124 = vadd.f32 0.0, %v3123
        %v3125 = vpop.f32.mrb[0].mxu0
        %3126 = vmatprep.mubr.f32.mxu0 0.0
        %3127 = vmatmul.mubr.f32.gmra.mrb[0].mxu0 %v2969
        %v3128 = vpop.f32.mrb[0].mxu0
        %v3129 = vadd.f32 0.0, %v3128
        %v3130 = vpop.f32.mrb[0].mxu0
        %3131 = vdwg.mxu0
        %v3132 = vadd.f32 %v2876, %v3054
        %v3133 = vadd.f32 %v2881, %v3059
        %v3134 = vadd.f32 %v2886, %v3064
        %v3135 = vadd.f32 %v2891, %v3069
        %v3136 = vadd.f32 %v2896, %v3074
        %v3137 = vadd.f32 %v2901, %v3079
        %v3138 = vadd.f32 %v2906, %v3084
        %v3139 = vadd.f32 %v2911, %v3089
        %v3140 = vadd.f32 %v2916, %v3094
        %v3141 = vadd.f32 %v2921, %v3099
        %v3142 = vadd.f32 %v2926, %v3104
        %v3143 = vadd.f32 %v2931, %v3109
        %v3144 = vadd.f32 %v2936, %v3114
        %v3145 = vadd.f32 %v2941, %v3119
        %v3146 = vadd.f32 %v2946, %v3124
        %v3147 = vadd.f32 %v2951, %v3129
        %s3148 = scalar_lea.vmem [#allocation3], 24
        %v3149 = vld [vmem:[%s3148] sm:$0xff]
        %v3150 = vld [vmem:[%s3148 + $0x8] sm:$0xff]
        %v3151 = vld [vmem:[%s3148 + $0x18] sm:$0xff]
        %v3152 = vld [vmem:[%s3148 + $0x20] sm:$0xff]
        %v3153 = vld [vmem:[%s3148 + $0x30] sm:$0xff]
        %v3154 = vld [vmem:[%s3148 + $0x38] sm:$0xff]
        %v3155 = vld [vmem:[%s3148 + $0x48] sm:$0xff]
        %v3156 = vld [vmem:[%s3148 + $0x50] sm:$0xff]
        %v3157 = vld [vmem:[%s3148 + $0x60] sm:$0xff]
        %v3158 = vld [vmem:[%s3148 + $0x68] sm:$0xff]
        %v3159 = vld [vmem:[%s3148 + $0x78] sm:$0xff]
        %v3160 = vld [vmem:[%s3148 + $0x80] sm:$0xff]
        %v3161 = vld [vmem:[%s3148 + $0x90] sm:$0xff]
        %v3162 = vld [vmem:[%s3148 + $0x98] sm:$0xff]
        %v3163 = vld [vmem:[%s3148 + $0xa8] sm:$0xff]
        %v3164 = vld [vmem:[%s3148 + $0xb0] sm:$0xff]
        %s3165 = scalar_lea.vmem [#allocation4], 384
        %v3166 = vld [vmem:[%s3165] sm:$0xff]
        %v3167 = vld [vmem:[%s3165 + $0x8] sm:$0xff]
        %v3168 = vld [vmem:[%s3165 + $0x10] sm:$0xff]
        %v3169 = vld [vmem:[%s3165 + $0x18] sm:$0xff]
        %v3170 = vld [vmem:[%s3165 + $0x20] sm:$0xff]
        %v3171 = vld [vmem:[%s3165 + $0x28] sm:$0xff]
        %v3172 = vld [vmem:[%s3165 + $0x30] sm:$0xff]
        %v3173 = vld [vmem:[%s3165 + $0x38] sm:$0xff]
        %v3174 = vld [vmem:[%s3165 + $0x40] sm:$0xff]
        %v3175 = vld [vmem:[%s3165 + $0x48] sm:$0xff]
        %v3176 = vld [vmem:[%s3165 + $0x50] sm:$0xff]
        %v3177 = vld [vmem:[%s3165 + $0x58] sm:$0xff]
        %v3178 = vld [vmem:[%s3165 + $0x60] sm:$0xff]
        %v3179 = vld [vmem:[%s3165 + $0x68] sm:$0xff]
        %v3180 = vld [vmem:[%s3165 + $0x70] sm:$0xff]
        %v3181 = vld [vmem:[%s3165 + $0x78] sm:$0xff]
        %3182 = vmatprep.subr.mxu0 0.0
        %3183 = vmatpush1.msra.mxu0 %v3166
        %3184 = vmatprep.subr.mxu0 0.0
        %3185 = vmatpush1.msra.mxu0 %v3167
        %3186 = vmatprep.subr.mxu0 0.0
        %3187 = vmatpush1.msra.mxu0 %v3168
        %3188 = vmatprep.subr.mxu0 0.0
        %3189 = vmatpush1.msra.mxu0 %v3169
        %3190 = vmatprep.subr.mxu0 0.0
        %3191 = vmatpush1.msra.mxu0 %v3170
        %3192 = vmatprep.subr.mxu0 0.0
        %3193 = vmatpush1.msra.mxu0 %v3171
        %3194 = vmatprep.subr.mxu0 0.0
        %3195 = vmatpush1.msra.mxu0 %v3172
        %3196 = vmatprep.subr.mxu0 0.0
        %3197 = vmatpush1.msra.mxu0 %v3173
        %3198 = vmatprep.subr.mxu0 0.0
        %3199 = vmatpush1.msra.mxu0 %v3174
        %3200 = vmatprep.subr.mxu0 0.0
        %3201 = vmatpush1.msra.mxu0 %v3175
        %3202 = vmatprep.subr.mxu0 0.0
        %3203 = vmatpush1.msra.mxu0 %v3176
        %3204 = vmatprep.subr.mxu0 0.0
        %3205 = vmatpush1.msra.mxu0 %v3177
        %3206 = vmatprep.subr.mxu0 0.0
        %3207 = vmatpush1.msra.mxu0 %v3178
        %3208 = vmatprep.subr.mxu0 0.0
        %3209 = vmatpush1.msra.mxu0 %v3179
        %3210 = vmatprep.subr.mxu0 0.0
        %3211 = vmatpush1.msra.mxu0 %v3180
        %3212 = vmatprep.subr.mxu0 0.0
        %3213 = vmatpush1.msra.mxu0 %v3181
        %3214 = vmatprep.subr.mxu0 0.0
        %3215 = vmatpush1.msra.mxu0 0.0
        %3216 = vmatprep.subr.mxu0 0.0
        %3217 = vmatpush1.msra.mxu0 0.0
        %3218 = vmatprep.subr.mxu0 0.0
        %3219 = vmatpush1.msra.mxu0 0.0
        %3220 = vmatprep.subr.mxu0 0.0
        %3221 = vmatpush1.msra.mxu0 0.0
        %3222 = vmatprep.subr.mxu0 0.0
        %3223 = vmatpush1.msra.mxu0 0.0
        %3224 = vmatprep.subr.mxu0 0.0
        %3225 = vmatpush1.msra.mxu0 0.0
        %3226 = vmatprep.subr.mxu0 0.0
        %3227 = vmatpush1.msra.mxu0 0.0
        %3228 = vmatprep.subr.mxu0 0.0
        %3229 = vmatpush1.msra.mxu0 0.0
        %3230 = vmatprep.subr.mxu0 0.0
        %3231 = vmatpush1.msra.mxu0 0.0
        %3232 = vmatprep.subr.mxu0 0.0
        %3233 = vmatpush1.msra.mxu0 0.0
        %3234 = vmatprep.subr.mxu0 0.0
        %3235 = vmatpush1.msra.mxu0 0.0
        %3236 = vmatprep.subr.mxu0 0.0
        %3237 = vmatpush1.msra.mxu0 0.0
        %3238 = vmatprep.subr.mxu0 0.0
        %3239 = vmatpush1.msra.mxu0 0.0
        %3240 = vmatprep.subr.mxu0 0.0
        %3241 = vmatpush1.msra.mxu0 0.0
        %3242 = vmatprep.subr.mxu0 0.0
        %3243 = vmatpush1.msra.mxu0 0.0
        %3244 = vmatprep.subr.mxu0 0.0
        %3245 = vmatpush1.msra.mxu0 0.0
        %3246 = vmatprep.mubr.f32.mxu0 0.0
        %3247 = vmatmul.mubr.f32.gmra.mrb[0].mxu0 %v3149
        %v3248 = vpop.f32.mrb[0].mxu0
        %v3249 = vadd.f32 0.0, %v3248
        %v3250 = vpop.f32.mrb[0].mxu0
        %3251 = vmatprep.mubr.f32.mxu0 0.0
        %3252 = vmatmul.mubr.f32.gmra.mrb[0].mxu0 %v3150
        %v3253 = vpop.f32.mrb[0].mxu0
        %v3254 = vadd.f32 0.0, %v3253
        %v3255 = vpop.f32.mrb[0].mxu0
        %3256 = vmatprep.mubr.f32.mxu0 0.0
        %3257 = vmatmul.mubr.f32.gmra.mrb[0].mxu0 %v3151
        %v3258 = vpop.f32.mrb[0].mxu0
        %v3259 = vadd.f32 0.0, %v3258
        %v3260 = vpop.f32.mrb[0].mxu0
        %3261 = vmatprep.mubr.f32.mxu0 0.0
        %3262 = vmatmul.mubr.f32.gmra.mrb[0].mxu0 %v3152
        %v3263 = vpop.f32.mrb[0].mxu0
        %v3264 = vadd.f32 0.0, %v3263
        %v3265 = vpop.f32.mrb[0].mxu0
        %3266 = vmatprep.mubr.f32.mxu0 0.0
        %3267 = vmatmul.mubr.f32.gmra.mrb[0].mxu0 %v3153
        %v3268 = vpop.f32.mrb[0].mxu0
        %v3269 = vadd.f32 0.0, %v3268
        %v3270 = vpop.f32.mrb[0].mxu0
        %3271 = vmatprep.mubr.f32.mxu0 0.0
        %3272 = vmatmul.mubr.f32.gmra.mrb[0].mxu0 %v3154
        %v3273 = vpop.f32.mrb[0].mxu0
        %v3274 = vadd.f32 0.0, %v3273
        %v3275 = vpop.f32.mrb[0].mxu0
        %3276 = vmatprep.mubr.f32.mxu0 0.0
        %3277 = vmatmul.mubr.f32.gmra.mrb[0].mxu0 %v3155
        %v3278 = vpop.f32.mrb[0].mxu0
        %v3279 = vadd.f32 0.0, %v3278
        %v3280 = vpop.f32.mrb[0].mxu0
        %3281 = vmatprep.mubr.f32.mxu0 0.0
        %3282 = vmatmul.mubr.f32.gmra.mrb[0].mxu0 %v3156
        %v3283 = vpop.f32.mrb[0].mxu0
        %v3284 = vadd.f32 0.0, %v3283
        %v3285 = vpop.f32.mrb[0].mxu0
        %3286 = vmatprep.mubr.f32.mxu0 0.0
        %3287 = vmatmul.mubr.f32.gmra.mrb[0].mxu0 %v3157
        %v3288 = vpop.f32.mrb[0].mxu0
        %v3289 = vadd.f32 0.0, %v3288
        %v3290 = vpop.f32.mrb[0].mxu0
        %3291 = vmatprep.mubr.f32.mxu0 0.0
        %3292 = vmatmul.mubr.f32.gmra.mrb[0].mxu0 %v3158
        %v3293 = vpop.f32.mrb[0].mxu0
        %v3294 = vadd.f32 0.0, %v3293
        %v3295 = vpop.f32.mrb[0].mxu0
        %3296 = vmatprep.mubr.f32.mxu0 0.0
        %3297 = vmatmul.mubr.f32.gmra.mrb[0].mxu0 %v3159
        %v3298 = vpop.f32.mrb[0].mxu0
        %v3299 = vadd.f32 0.0, %v3298
        %v3300 = vpop.f32.mrb[0].mxu0
        %3301 = vmatprep.mubr.f32.mxu0 0.0
        %3302 = vmatmul.mubr.f32.gmra.mrb[0].mxu0 %v3160
        %v3303 = vpop.f32.mrb[0].mxu0
        %v3304 = vadd.f32 0.0, %v3303
        %v3305 = vpop.f32.mrb[0].mxu0
        %3306 = vmatprep.mubr.f32.mxu0 0.0
        %3307 = vmatmul.mubr.f32.gmra.mrb[0].mxu0 %v3161
        %v3308 = vpop.f32.mrb[0].mxu0
        %v3309 = vadd.f32 0.0, %v3308
        %v3310 = vpop.f32.mrb[0].mxu0
        %3311 = vmatprep.mubr.f32.mxu0 0.0
        %3312 = vmatmul.mubr.f32.gmra.mrb[0].mxu0 %v3162
        %v3313 = vpop.f32.mrb[0].mxu0
        %v3314 = vadd.f32 0.0, %v3313
        %v3315 = vpop.f32.mrb[0].mxu0
        %3316 = vmatprep.mubr.f32.mxu0 0.0
        %3317 = vmatmul.mubr.f32.gmra.mrb[0].mxu0 %v3163
        %v3318 = vpop.f32.mrb[0].mxu0
        %v3319 = vadd.f32 0.0, %v3318
        %v3320 = vpop.f32.mrb[0].mxu0
        %3321 = vmatprep.mubr.f32.mxu0 0.0
        %3322 = vmatmul.mubr.f32.gmra.mrb[0].mxu0 %v3164
        %v3323 = vpop.f32.mrb[0].mxu0
        %v3324 = vadd.f32 0.0, %v3323
        %v3325 = vpop.f32.mrb[0].mxu0
        %3326 = vdwg.mxu0
        %v3327 = vadd.f32 %v3132, %v3249
        %v3328 = vadd.f32 %v3133, %v3254
        %v3329 = vadd.f32 %v3134, %v3259
        %v3330 = vadd.f32 %v3135, %v3264
        %v3331 = vadd.f32 %v3136, %v3269
        %v3332 = vadd.f32 %v3137, %v3274
        %v3333 = vadd.f32 %v3138, %v3279
        %v3334 = vadd.f32 %v3139, %v3284
        %v3335 = vadd.f32 %v3140, %v3289
        %v3336 = vadd.f32 %v3141, %v3294
        %v3337 = vadd.f32 %v3142, %v3299
        %v3338 = vadd.f32 %v3143, %v3304
        %v3339 = vadd.f32 %v3144, %v3309
        %v3340 = vadd.f32 %v3145, %v3314
        %v3341 = vadd.f32 %v3146, %v3319
        %v3342 = vadd.f32 %v3147, %v3324
        %v3343 = vld [vmem:[%s3148 + $0x1] sm:$0xff]
        %v3344 = vld [vmem:[%s3148 + $0x9] sm:$0xff]
        %v3345 = vld [vmem:[%s3148 + $0x19] sm:$0xff]
        %v3346 = vld [vmem:[%s3148 + $0x21] sm:$0xff]
        %v3347 = vld [vmem:[%s3148 + $0x31] sm:$0xff]
        %v3348 = vld [vmem:[%s3148 + $0x39] sm:$0xff]
        %v3349 = vld [vmem:[%s3148 + $0x49] sm:$0xff]
        %v3350 = vld [vmem:[%s3148 + $0x51] sm:$0xff]
        %v3351 = vld [vmem:[%s3148 + $0x61] sm:$0xff]
        %v3352 = vld [vmem:[%s3148 + $0x69] sm:$0xff]
        %v3353 = vld [vmem:[%s3148 + $0x79] sm:$0xff]
        %v3354 = vld [vmem:[%s3148 + $0x81] sm:$0xff]
        %v3355 = vld [vmem:[%s3148 + $0x91] sm:$0xff]
        %v3356 = vld [vmem:[%s3148 + $0x99] sm:$0xff]
        %v3357 = vld [vmem:[%s3148 + $0xa9] sm:$0xff]
        %v3358 = vld [vmem:[%s3148 + $0xb1] sm:$0xff]
        %s3359 = scalar_lea.vmem [#allocation4], 512
        %v3360 = vld [vmem:[%s3359] sm:$0xff]
        %v3361 = vld [vmem:[%s3359 + $0x8] sm:$0xff]
        %v3362 = vld [vmem:[%s3359 + $0x10] sm:$0xff]
        %v3363 = vld [vmem:[%s3359 + $0x18] sm:$0xff]
        %v3364 = vld [vmem:[%s3359 + $0x20] sm:$0xff]
        %v3365 = vld [vmem:[%s3359 + $0x28] sm:$0xff]
        %v3366 = vld [vmem:[%s3359 + $0x30] sm:$0xff]
        %v3367 = vld [vmem:[%s3359 + $0x38] sm:$0xff]
        %v3368 = vld [vmem:[%s3359 + $0x40] sm:$0xff]
        %v3369 = vld [vmem:[%s3359 + $0x48] sm:$0xff]
        %v3370 = vld [vmem:[%s3359 + $0x50] sm:$0xff]
        %v3371 = vld [vmem:[%s3359 + $0x58] sm:$0xff]
        %v3372 = vld [vmem:[%s3359 + $0x60] sm:$0xff]
        %v3373 = vld [vmem:[%s3359 + $0x68] sm:$0xff]
        %v3374 = vld [vmem:[%s3359 + $0x70] sm:$0xff]
        %v3375 = vld [vmem:[%s3359 + $0x78] sm:$0xff]
        %3376 = vmatprep.subr.mxu0 0.0
        %3377 = vmatpush1.msra.mxu0 %v3360
        %3378 = vmatprep.subr.mxu0 0.0
        %3379 = vmatpush1.msra.mxu0 %v3361
        %3380 = vmatprep.subr.mxu0 0.0
        %3381 = vmatpush1.msra.mxu0 %v3362
        %3382 = vmatprep.subr.mxu0 0.0
        %3383 = vmatpush1.msra.mxu0 %v3363
        %3384 = vmatprep.subr.mxu0 0.0
        %3385 = vmatpush1.msra.mxu0 %v3364
        %3386 = vmatprep.subr.mxu0 0.0
        %3387 = vmatpush1.msra.mxu0 %v3365
        %3388 = vmatprep.subr.mxu0 0.0
        %3389 = vmatpush1.msra.mxu0 %v3366
        %3390 = vmatprep.subr.mxu0 0.0
        %3391 = vmatpush1.msra.mxu0 %v3367
        %3392 = vmatprep.subr.mxu0 0.0
        %3393 = vmatpush1.msra.mxu0 %v3368
        %3394 = vmatprep.subr.mxu0 0.0
        %3395 = vmatpush1.msra.mxu0 %v3369
        %3396 = vmatprep.subr.mxu0 0.0
        %3397 = vmatpush1.msra.mxu0 %v3370
        %3398 = vmatprep.subr.mxu0 0.0
        %3399 = vmatpush1.msra.mxu0 %v3371
        %3400 = vmatprep.subr.mxu0 0.0
        %3401 = vmatpush1.msra.mxu0 %v3372
        %3402 = vmatprep.subr.mxu0 0.0
        %3403 = vmatpush1.msra.mxu0 %v3373
        %3404 = vmatprep.subr.mxu0 0.0
        %3405 = vmatpush1.msra.mxu0 %v3374
        %3406 = vmatprep.subr.mxu0 0.0
        %3407 = vmatpush1.msra.mxu0 %v3375
        %3408 = vmatprep.subr.mxu0 0.0
        %3409 = vmatpush1.msra.mxu0 0.0
        %3410 = vmatprep.subr.mxu0 0.0
        %3411 = vmatpush1.msra.mxu0 0.0
        %3412 = vmatprep.subr.mxu0 0.0
        %3413 = vmatpush1.msra.mxu0 0.0
        %3414 = vmatprep.subr.mxu0 0.0
        %3415 = vmatpush1.msra.mxu0 0.0
        %3416 = vmatprep.subr.mxu0 0.0
        %3417 = vmatpush1.msra.mxu0 0.0
        %3418 = vmatprep.subr.mxu0 0.0
        %3419 = vmatpush1.msra.mxu0 0.0
        %3420 = vmatprep.subr.mxu0 0.0
        %3421 = vmatpush1.msra.mxu0 0.0
        %3422 = vmatprep.subr.mxu0 0.0
        %3423 = vmatpush1.msra.mxu0 0.0
        %3424 = vmatprep.subr.mxu0 0.0
        %3425 = vmatpush1.msra.mxu0 0.0
        %3426 = vmatprep.subr.mxu0 0.0
        %3427 = vmatpush1.msra.mxu0 0.0
        %3428 = vmatprep.subr.mxu0 0.0
        %3429 = vmatpush1.msra.mxu0 0.0
        %3430 = vmatprep.subr.mxu0 0.0
        %3431 = vmatpush1.msra.mxu0 0.0
        %3432 = vmatprep.subr.mxu0 0.0
        %3433 = vmatpush1.msra.mxu0 0.0
        %3434 = vmatprep.subr.mxu0 0.0
        %3435 = vmatpush1.msra.mxu0 0.0
        %3436 = vmatprep.subr.mxu0 0.0
        %3437 = vmatpush1.msra.mxu0 0.0
        %3438 = vmatprep.subr.mxu0 0.0
        %3439 = vmatpush1.msra.mxu0 0.0
        %3440 = vmatprep.mubr.f32.mxu0 0.0
        %3441 = vmatmul.mubr.f32.gmra.mrb[0].mxu0 %v3343
        %v3442 = vpop.f32.mrb[0].mxu0
        %v3443 = vadd.f32 0.0, %v3442
        %v3444 = vpop.f32.mrb[0].mxu0
        %3445 = vmatprep.mubr.f32.mxu0 0.0
        %3446 = vmatmul.mubr.f32.gmra.mrb[0].mxu0 %v3344
        %v3447 = vpop.f32.mrb[0].mxu0
        %v3448 = vadd.f32 0.0, %v3447
        %v3449 = vpop.f32.mrb[0].mxu0
        %3450 = vmatprep.mubr.f32.mxu0 0.0
        %3451 = vmatmul.mubr.f32.gmra.mrb[0].mxu0 %v3345
        %v3452 = vpop.f32.mrb[0].mxu0
        %v3453 = vadd.f32 0.0, %v3452
        %v3454 = vpop.f32.mrb[0].mxu0
        %3455 = vmatprep.mubr.f32.mxu0 0.0
        %3456 = vmatmul.mubr.f32.gmra.mrb[0].mxu0 %v3346
        %v3457 = vpop.f32.mrb[0].mxu0
        %v3458 = vadd.f32 0.0, %v3457
        %v3459 = vpop.f32.mrb[0].mxu0
        %3460 = vmatprep.mubr.f32.mxu0 0.0
        %3461 = vmatmul.mubr.f32.gmra.mrb[0].mxu0 %v3347
        %v3462 = vpop.f32.mrb[0].mxu0
        %v3463 = vadd.f32 0.0, %v3462
        %v3464 = vpop.f32.mrb[0].mxu0
        %3465 = vmatprep.mubr.f32.mxu0 0.0
        %3466 = vmatmul.mubr.f32.gmra.mrb[0].mxu0 %v3348
        %v3467 = vpop.f32.mrb[0].mxu0
        %v3468 = vadd.f32 0.0, %v3467
        %v3469 = vpop.f32.mrb[0].mxu0
        %3470 = vmatprep.mubr.f32.mxu0 0.0
        %3471 = vmatmul.mubr.f32.gmra.mrb[0].mxu0 %v3349
        %v3472 = vpop.f32.mrb[0].mxu0
        %v3473 = vadd.f32 0.0, %v3472
        %v3474 = vpop.f32.mrb[0].mxu0
        %3475 = vmatprep.mubr.f32.mxu0 0.0
        %3476 = vmatmul.mubr.f32.gmra.mrb[0].mxu0 %v3350
        %v3477 = vpop.f32.mrb[0].mxu0
        %v3478 = vadd.f32 0.0, %v3477
        %v3479 = vpop.f32.mrb[0].mxu0
        %3480 = vmatprep.mubr.f32.mxu0 0.0
        %3481 = vmatmul.mubr.f32.gmra.mrb[0].mxu0 %v3351
        %v3482 = vpop.f32.mrb[0].mxu0
        %v3483 = vadd.f32 0.0, %v3482
        %v3484 = vpop.f32.mrb[0].mxu0
        %3485 = vmatprep.mubr.f32.mxu0 0.0
        %3486 = vmatmul.mubr.f32.gmra.mrb[0].mxu0 %v3352
        %v3487 = vpop.f32.mrb[0].mxu0
        %v3488 = vadd.f32 0.0, %v3487
        %v3489 = vpop.f32.mrb[0].mxu0
        %3490 = vmatprep.mubr.f32.mxu0 0.0
        %3491 = vmatmul.mubr.f32.gmra.mrb[0].mxu0 %v3353
        %v3492 = vpop.f32.mrb[0].mxu0
        %v3493 = vadd.f32 0.0, %v3492
        %v3494 = vpop.f32.mrb[0].mxu0
        %3495 = vmatprep.mubr.f32.mxu0 0.0
        %3496 = vmatmul.mubr.f32.gmra.mrb[0].mxu0 %v3354
        %v3497 = vpop.f32.mrb[0].mxu0
        %v3498 = vadd.f32 0.0, %v3497
        %v3499 = vpop.f32.mrb[0].mxu0
        %3500 = vmatprep.mubr.f32.mxu0 0.0
        %3501 = vmatmul.mubr.f32.gmra.mrb[0].mxu0 %v3355
        %v3502 = vpop.f32.mrb[0].mxu0
        %v3503 = vadd.f32 0.0, %v3502
        %v3504 = vpop.f32.mrb[0].mxu0
        %3505 = vmatprep.mubr.f32.mxu0 0.0
        %3506 = vmatmul.mubr.f32.gmra.mrb[0].mxu0 %v3356
        %v3507 = vpop.f32.mrb[0].mxu0
        %v3508 = vadd.f32 0.0, %v3507
        %v3509 = vpop.f32.mrb[0].mxu0
        %3510 = vmatprep.mubr.f32.mxu0 0.0
        %3511 = vmatmul.mubr.f32.gmra.mrb[0].mxu0 %v3357
        %v3512 = vpop.f32.mrb[0].mxu0
        %v3513 = vadd.f32 0.0, %v3512
        %v3514 = vpop.f32.mrb[0].mxu0
        %3515 = vmatprep.mubr.f32.mxu0 0.0
        %3516 = vmatmul.mubr.f32.gmra.mrb[0].mxu0 %v3358
        %v3517 = vpop.f32.mrb[0].mxu0
        %v3518 = vadd.f32 0.0, %v3517
        %v3519 = vpop.f32.mrb[0].mxu0
        %3520 = vdwg.mxu0
        %v3521 = vadd.f32 %v3327, %v3443
        %v3522 = vadd.f32 %v3328, %v3448
        %v3523 = vadd.f32 %v3329, %v3453
        %v3524 = vadd.f32 %v3330, %v3458
        %v3525 = vadd.f32 %v3331, %v3463
        %v3526 = vadd.f32 %v3332, %v3468
        %v3527 = vadd.f32 %v3333, %v3473
        %v3528 = vadd.f32 %v3334, %v3478
        %v3529 = vadd.f32 %v3335, %v3483
        %v3530 = vadd.f32 %v3336, %v3488
        %v3531 = vadd.f32 %v3337, %v3493
        %v3532 = vadd.f32 %v3338, %v3498
        %v3533 = vadd.f32 %v3339, %v3503
        %v3534 = vadd.f32 %v3340, %v3508
        %v3535 = vadd.f32 %v3341, %v3513
        %v3536 = vadd.f32 %v3342, %v3518
        %v3537 = vld [vmem:[%s3148 + $0x2] sm:$0xff]
        %v3538 = vld [vmem:[%s3148 + $0xa] sm:$0xff]
        %v3539 = vld [vmem:[%s3148 + $0x1a] sm:$0xff]
        %v3540 = vld [vmem:[%s3148 + $0x22] sm:$0xff]
        %v3541 = vld [vmem:[%s3148 + $0x32] sm:$0xff]
        %v3542 = vld [vmem:[%s3148 + $0x3a] sm:$0xff]
        %v3543 = vld [vmem:[%s3148 + $0x4a] sm:$0xff]
        %v3544 = vld [vmem:[%s3148 + $0x52] sm:$0xff]
        %v3545 = vld [vmem:[%s3148 + $0x62] sm:$0xff]
        %v3546 = vld [vmem:[%s3148 + $0x6a] sm:$0xff]
        %v3547 = vld [vmem:[%s3148 + $0x7a] sm:$0xff]
        %v3548 = vld [vmem:[%s3148 + $0x82] sm:$0xff]
        %v3549 = vld [vmem:[%s3148 + $0x92] sm:$0xff]
        %v3550 = vld [vmem:[%s3148 + $0x9a] sm:$0xff]
        %v3551 = vld [vmem:[%s3148 + $0xaa] sm:$0xff]
        %v3552 = vld [vmem:[%s3148 + $0xb2] sm:$0xff]
        %s3553 = scalar_lea.vmem [#allocation4], 640
        %v3554 = vld [vmem:[%s3553] sm:$0xff]
        %v3555 = vld [vmem:[%s3553 + $0x8] sm:$0xff]
        %v3556 = vld [vmem:[%s3553 + $0x10] sm:$0xff]
        %v3557 = vld [vmem:[%s3553 + $0x18] sm:$0xff]
        %v3558 = vld [vmem:[%s3553 + $0x20] sm:$0xff]
        %v3559 = vld [vmem:[%s3553 + $0x28] sm:$0xff]
        %v3560 = vld [vmem:[%s3553 + $0x30] sm:$0xff]
        %v3561 = vld [vmem:[%s3553 + $0x38] sm:$0xff]
        %v3562 = vld [vmem:[%s3553 + $0x40] sm:$0xff]
        %v3563 = vld [vmem:[%s3553 + $0x48] sm:$0xff]
        %v3564 = vld [vmem:[%s3553 + $0x50] sm:$0xff]
        %v3565 = vld [vmem:[%s3553 + $0x58] sm:$0xff]
        %v3566 = vld [vmem:[%s3553 + $0x60] sm:$0xff]
        %v3567 = vld [vmem:[%s3553 + $0x68] sm:$0xff]
        %v3568 = vld [vmem:[%s3553 + $0x70] sm:$0xff]
        %v3569 = vld [vmem:[%s3553 + $0x78] sm:$0xff]
        %3570 = vmatprep.subr.mxu0 0.0
        %3571 = vmatpush1.msra.mxu0 %v3554
        %3572 = vmatprep.subr.mxu0 0.0
        %3573 = vmatpush1.msra.mxu0 %v3555
        %3574 = vmatprep.subr.mxu0 0.0
        %3575 = vmatpush1.msra.mxu0 %v3556
        %3576 = vmatprep.subr.mxu0 0.0
        %3577 = vmatpush1.msra.mxu0 %v3557
        %3578 = vmatprep.subr.mxu0 0.0
        %3579 = vmatpush1.msra.mxu0 %v3558
        %3580 = vmatprep.subr.mxu0 0.0
        %3581 = vmatpush1.msra.mxu0 %v3559
        %3582 = vmatprep.subr.mxu0 0.0
        %3583 = vmatpush1.msra.mxu0 %v3560
        %3584 = vmatprep.subr.mxu0 0.0
        %3585 = vmatpush1.msra.mxu0 %v3561
        %3586 = vmatprep.subr.mxu0 0.0
        %3587 = vmatpush1.msra.mxu0 %v3562
        %3588 = vmatprep.subr.mxu0 0.0
        %3589 = vmatpush1.msra.mxu0 %v3563
        %3590 = vmatprep.subr.mxu0 0.0
        %3591 = vmatpush1.msra.mxu0 %v3564
        %3592 = vmatprep.subr.mxu0 0.0
        %3593 = vmatpush1.msra.mxu0 %v3565
        %3594 = vmatprep.subr.mxu0 0.0
        %3595 = vmatpush1.msra.mxu0 %v3566
        %3596 = vmatprep.subr.mxu0 0.0
        %3597 = vmatpush1.msra.mxu0 %v3567
        %3598 = vmatprep.subr.mxu0 0.0
        %3599 = vmatpush1.msra.mxu0 %v3568
        %3600 = vmatprep.subr.mxu0 0.0
        %3601 = vmatpush1.msra.mxu0 %v3569
        %3602 = vmatprep.subr.mxu0 0.0
        %3603 = vmatpush1.msra.mxu0 0.0
        %3604 = vmatprep.subr.mxu0 0.0
        %3605 = vmatpush1.msra.mxu0 0.0
        %3606 = vmatprep.subr.mxu0 0.0
        %3607 = vmatpush1.msra.mxu0 0.0
        %3608 = vmatprep.subr.mxu0 0.0
        %3609 = vmatpush1.msra.mxu0 0.0
        %3610 = vmatprep.subr.mxu0 0.0
        %3611 = vmatpush1.msra.mxu0 0.0
        %3612 = vmatprep.subr.mxu0 0.0
        %3613 = vmatpush1.msra.mxu0 0.0
        %3614 = vmatprep.subr.mxu0 0.0
        %3615 = vmatpush1.msra.mxu0 0.0
        %3616 = vmatprep.subr.mxu0 0.0
        %3617 = vmatpush1.msra.mxu0 0.0
        %3618 = vmatprep.subr.mxu0 0.0
        %3619 = vmatpush1.msra.mxu0 0.0
        %3620 = vmatprep.subr.mxu0 0.0
        %3621 = vmatpush1.msra.mxu0 0.0
        %3622 = vmatprep.subr.mxu0 0.0
        %3623 = vmatpush1.msra.mxu0 0.0
        %3624 = vmatprep.subr.mxu0 0.0
        %3625 = vmatpush1.msra.mxu0 0.0
        %3626 = vmatprep.subr.mxu0 0.0
        %3627 = vmatpush1.msra.mxu0 0.0
        %3628 = vmatprep.subr.mxu0 0.0
        %3629 = vmatpush1.msra.mxu0 0.0
        %3630 = vmatprep.subr.mxu0 0.0
        %3631 = vmatpush1.msra.mxu0 0.0
        %3632 = vmatprep.subr.mxu0 0.0
        %3633 = vmatpush1.msra.mxu0 0.0
        %3634 = vmatprep.mubr.f32.mxu0 0.0
        %3635 = vmatmul.mubr.f32.gmra.mrb[0].mxu0 %v3537
        %v3636 = vpop.f32.mrb[0].mxu0
        %v3637 = vadd.f32 0.0, %v3636
        %v3638 = vpop.f32.mrb[0].mxu0
        %3639 = vmatprep.mubr.f32.mxu0 0.0
        %3640 = vmatmul.mubr.f32.gmra.mrb[0].mxu0 %v3538
        %v3641 = vpop.f32.mrb[0].mxu0
        %v3642 = vadd.f32 0.0, %v3641
        %v3643 = vpop.f32.mrb[0].mxu0
        %3644 = vmatprep.mubr.f32.mxu0 0.0
        %3645 = vmatmul.mubr.f32.gmra.mrb[0].mxu0 %v3539
        %v3646 = vpop.f32.mrb[0].mxu0
        %v3647 = vadd.f32 0.0, %v3646
        %v3648 = vpop.f32.mrb[0].mxu0
        %3649 = vmatprep.mubr.f32.mxu0 0.0
        %3650 = vmatmul.mubr.f32.gmra.mrb[0].mxu0 %v3540
        %v3651 = vpop.f32.mrb[0].mxu0
        %v3652 = vadd.f32 0.0, %v3651
        %v3653 = vpop.f32.mrb[0].mxu0
        %3654 = vmatprep.mubr.f32.mxu0 0.0
        %3655 = vmatmul.mubr.f32.gmra.mrb[0].mxu0 %v3541
        %v3656 = vpop.f32.mrb[0].mxu0
        %v3657 = vadd.f32 0.0, %v3656
        %v3658 = vpop.f32.mrb[0].mxu0
        %3659 = vmatprep.mubr.f32.mxu0 0.0
        %3660 = vmatmul.mubr.f32.gmra.mrb[0].mxu0 %v3542
        %v3661 = vpop.f32.mrb[0].mxu0
        %v3662 = vadd.f32 0.0, %v3661
        %v3663 = vpop.f32.mrb[0].mxu0
        %3664 = vmatprep.mubr.f32.mxu0 0.0
        %3665 = vmatmul.mubr.f32.gmra.mrb[0].mxu0 %v3543
        %v3666 = vpop.f32.mrb[0].mxu0
        %v3667 = vadd.f32 0.0, %v3666
        %v3668 = vpop.f32.mrb[0].mxu0
        %3669 = vmatprep.mubr.f32.mxu0 0.0
        %3670 = vmatmul.mubr.f32.gmra.mrb[0].mxu0 %v3544
        %v3671 = vpop.f32.mrb[0].mxu0
        %v3672 = vadd.f32 0.0, %v3671
        %v3673 = vpop.f32.mrb[0].mxu0
        %3674 = vmatprep.mubr.f32.mxu0 0.0
        %3675 = vmatmul.mubr.f32.gmra.mrb[0].mxu0 %v3545
        %v3676 = vpop.f32.mrb[0].mxu0
        %v3677 = vadd.f32 0.0, %v3676
        %v3678 = vpop.f32.mrb[0].mxu0
        %3679 = vmatprep.mubr.f32.mxu0 0.0
        %3680 = vmatmul.mubr.f32.gmra.mrb[0].mxu0 %v3546
        %v3681 = vpop.f32.mrb[0].mxu0
        %v3682 = vadd.f32 0.0, %v3681
        %v3683 = vpop.f32.mrb[0].mxu0
        %3684 = vmatprep.mubr.f32.mxu0 0.0
        %3685 = vmatmul.mubr.f32.gmra.mrb[0].mxu0 %v3547
        %v3686 = vpop.f32.mrb[0].mxu0
        %v3687 = vadd.f32 0.0, %v3686
        %v3688 = vpop.f32.mrb[0].mxu0
        %3689 = vmatprep.mubr.f32.mxu0 0.0
        %3690 = vmatmul.mubr.f32.gmra.mrb[0].mxu0 %v3548
        %v3691 = vpop.f32.mrb[0].mxu0
        %v3692 = vadd.f32 0.0, %v3691
        %v3693 = vpop.f32.mrb[0].mxu0
        %3694 = vmatprep.mubr.f32.mxu0 0.0
        %3695 = vmatmul.mubr.f32.gmra.mrb[0].mxu0 %v3549
        %v3696 = vpop.f32.mrb[0].mxu0
        %v3697 = vadd.f32 0.0, %v3696
        %v3698 = vpop.f32.mrb[0].mxu0
        %3699 = vmatprep.mubr.f32.mxu0 0.0
        %3700 = vmatmul.mubr.f32.gmra.mrb[0].mxu0 %v3550
        %v3701 = vpop.f32.mrb[0].mxu0
        %v3702 = vadd.f32 0.0, %v3701
        %v3703 = vpop.f32.mrb[0].mxu0
        %3704 = vmatprep.mubr.f32.mxu0 0.0
        %3705 = vmatmul.mubr.f32.gmra.mrb[0].mxu0 %v3551
        %v3706 = vpop.f32.mrb[0].mxu0
        %v3707 = vadd.f32 0.0, %v3706
        %v3708 = vpop.f32.mrb[0].mxu0
        %3709 = vmatprep.mubr.f32.mxu0 0.0
        %3710 = vmatmul.mubr.f32.gmra.mrb[0].mxu0 %v3552
        %v3711 = vpop.f32.mrb[0].mxu0
        %v3712 = vadd.f32 0.0, %v3711
        %v3713 = vpop.f32.mrb[0].mxu0
        %3714 = vdwg.mxu0
        %v3715 = vadd.f32 %v3521, %v3637
        %v3716 = vadd.f32 %v3522, %v3642
        %v3717 = vadd.f32 %v3523, %v3647
        %v3718 = vadd.f32 %v3524, %v3652
        %v3719 = vadd.f32 %v3525, %v3657
        %v3720 = vadd.f32 %v3526, %v3662
        %v3721 = vadd.f32 %v3527, %v3667
        %v3722 = vadd.f32 %v3528, %v3672
        %v3723 = vadd.f32 %v3529, %v3677
        %v3724 = vadd.f32 %v3530, %v3682
        %v3725 = vadd.f32 %v3531, %v3687
        %v3726 = vadd.f32 %v3532, %v3692
        %v3727 = vadd.f32 %v3533, %v3697
        %v3728 = vadd.f32 %v3534, %v3702
        %v3729 = vadd.f32 %v3535, %v3707
        %v3730 = vadd.f32 %v3536, %v3712
        %s3731 = scalar_lea.vmem [#allocation3], 48
        %v3732 = vld [vmem:[%s3731] sm:$0xff]
        %v3733 = vld [vmem:[%s3731 + $0x8] sm:$0xff]
        %v3734 = vld [vmem:[%s3731 + $0x18] sm:$0xff]
        %v3735 = vld [vmem:[%s3731 + $0x20] sm:$0xff]
        %v3736 = vld [vmem:[%s3731 + $0x30] sm:$0xff]
        %v3737 = vld [vmem:[%s3731 + $0x38] sm:$0xff]
        %v3738 = vld [vmem:[%s3731 + $0x48] sm:$0xff]
        %v3739 = vld [vmem:[%s3731 + $0x50] sm:$0xff]
        %v3740 = vld [vmem:[%s3731 + $0x60] sm:$0xff]
        %v3741 = vld [vmem:[%s3731 + $0x68] sm:$0xff]
        %v3742 = vld [vmem:[%s3731 + $0x78] sm:$0xff]
        %v3743 = vld [vmem:[%s3731 + $0x80] sm:$0xff]
        %v3744 = vld [vmem:[%s3731 + $0x90] sm:$0xff]
        %v3745 = vld [vmem:[%s3731 + $0x98] sm:$0xff]
        %v3746 = vld [vmem:[%s3731 + $0xa8] sm:$0xff]
        %v3747 = vld [vmem:[%s3731 + $0xb0] sm:$0xff]
        %s3748 = scalar_lea.vmem [#allocation4], 768
        %v3749 = vld [vmem:[%s3748] sm:$0xff]
        %v3750 = vld [vmem:[%s3748 + $0x8] sm:$0xff]
        %v3751 = vld [vmem:[%s3748 + $0x10] sm:$0xff]
        %v3752 = vld [vmem:[%s3748 + $0x18] sm:$0xff]
        %v3753 = vld [vmem:[%s3748 + $0x20] sm:$0xff]
        %v3754 = vld [vmem:[%s3748 + $0x28] sm:$0xff]
        %v3755 = vld [vmem:[%s3748 + $0x30] sm:$0xff]
        %v3756 = vld [vmem:[%s3748 + $0x38] sm:$0xff]
        %v3757 = vld [vmem:[%s3748 + $0x40] sm:$0xff]
        %v3758 = vld [vmem:[%s3748 + $0x48] sm:$0xff]
        %v3759 = vld [vmem:[%s3748 + $0x50] sm:$0xff]
        %v3760 = vld [vmem:[%s3748 + $0x58] sm:$0xff]
        %v3761 = vld [vmem:[%s3748 + $0x60] sm:$0xff]
        %v3762 = vld [vmem:[%s3748 + $0x68] sm:$0xff]
        %v3763 = vld [vmem:[%s3748 + $0x70] sm:$0xff]
        %v3764 = vld [vmem:[%s3748 + $0x78] sm:$0xff]
        %3765 = vmatprep.subr.mxu0 0.0
        %3766 = vmatpush1.msra.mxu0 %v3749
        %3767 = vmatprep.subr.mxu0 0.0
        %3768 = vmatpush1.msra.mxu0 %v3750
        %3769 = vmatprep.subr.mxu0 0.0
        %3770 = vmatpush1.msra.mxu0 %v3751
        %3771 = vmatprep.subr.mxu0 0.0
        %3772 = vmatpush1.msra.mxu0 %v3752
        %3773 = vmatprep.subr.mxu0 0.0
        %3774 = vmatpush1.msra.mxu0 %v3753
        %3775 = vmatprep.subr.mxu0 0.0
        %3776 = vmatpush1.msra.mxu0 %v3754
        %3777 = vmatprep.subr.mxu0 0.0
        %3778 = vmatpush1.msra.mxu0 %v3755
        %3779 = vmatprep.subr.mxu0 0.0
        %3780 = vmatpush1.msra.mxu0 %v3756
        %3781 = vmatprep.subr.mxu0 0.0
        %3782 = vmatpush1.msra.mxu0 %v3757
        %3783 = vmatprep.subr.mxu0 0.0
        %3784 = vmatpush1.msra.mxu0 %v3758
        %3785 = vmatprep.subr.mxu0 0.0
        %3786 = vmatpush1.msra.mxu0 %v3759
        %3787 = vmatprep.subr.mxu0 0.0
        %3788 = vmatpush1.msra.mxu0 %v3760
        %3789 = vmatprep.subr.mxu0 0.0
        %3790 = vmatpush1.msra.mxu0 %v3761
        %3791 = vmatprep.subr.mxu0 0.0
        %3792 = vmatpush1.msra.mxu0 %v3762
        %3793 = vmatprep.subr.mxu0 0.0
        %3794 = vmatpush1.msra.mxu0 %v3763
        %3795 = vmatprep.subr.mxu0 0.0
        %3796 = vmatpush1.msra.mxu0 %v3764
        %3797 = vmatprep.subr.mxu0 0.0
        %3798 = vmatpush1.msra.mxu0 0.0
        %3799 = vmatprep.subr.mxu0 0.0
        %3800 = vmatpush1.msra.mxu0 0.0
        %3801 = vmatprep.subr.mxu0 0.0
        %3802 = vmatpush1.msra.mxu0 0.0
        %3803 = vmatprep.subr.mxu0 0.0
        %3804 = vmatpush1.msra.mxu0 0.0
        %3805 = vmatprep.subr.mxu0 0.0
        %3806 = vmatpush1.msra.mxu0 0.0
        %3807 = vmatprep.subr.mxu0 0.0
        %3808 = vmatpush1.msra.mxu0 0.0
        %3809 = vmatprep.subr.mxu0 0.0
        %3810 = vmatpush1.msra.mxu0 0.0
        %3811 = vmatprep.subr.mxu0 0.0
        %3812 = vmatpush1.msra.mxu0 0.0
        %3813 = vmatprep.subr.mxu0 0.0
        %3814 = vmatpush1.msra.mxu0 0.0
        %3815 = vmatprep.subr.mxu0 0.0
        %3816 = vmatpush1.msra.mxu0 0.0
        %3817 = vmatprep.subr.mxu0 0.0
        %3818 = vmatpush1.msra.mxu0 0.0
        %3819 = vmatprep.subr.mxu0 0.0
        %3820 = vmatpush1.msra.mxu0 0.0
        %3821 = vmatprep.subr.mxu0 0.0
        %3822 = vmatpush1.msra.mxu0 0.0
        %3823 = vmatprep.subr.mxu0 0.0
        %3824 = vmatpush1.msra.mxu0 0.0
        %3825 = vmatprep.subr.mxu0 0.0
        %3826 = vmatpush1.msra.mxu0 0.0
        %3827 = vmatprep.subr.mxu0 0.0
        %3828 = vmatpush1.msra.mxu0 0.0
        %3829 = vmatprep.mubr.f32.mxu0 0.0
        %3830 = vmatmul.mubr.f32.gmra.mrb[0].mxu0 %v3732
        %v3831 = vpop.f32.mrb[0].mxu0
        %v3832 = vadd.f32 0.0, %v3831
        %v3833 = vpop.f32.mrb[0].mxu0
        %3834 = vmatprep.mubr.f32.mxu0 0.0
        %3835 = vmatmul.mubr.f32.gmra.mrb[0].mxu0 %v3733
        %v3836 = vpop.f32.mrb[0].mxu0
        %v3837 = vadd.f32 0.0, %v3836
        %v3838 = vpop.f32.mrb[0].mxu0
        %3839 = vmatprep.mubr.f32.mxu0 0.0
        %3840 = vmatmul.mubr.f32.gmra.mrb[0].mxu0 %v3734
        %v3841 = vpop.f32.mrb[0].mxu0
        %v3842 = vadd.f32 0.0, %v3841
        %v3843 = vpop.f32.mrb[0].mxu0
        %3844 = vmatprep.mubr.f32.mxu0 0.0
        %3845 = vmatmul.mubr.f32.gmra.mrb[0].mxu0 %v3735
        %v3846 = vpop.f32.mrb[0].mxu0
        %v3847 = vadd.f32 0.0, %v3846
        %v3848 = vpop.f32.mrb[0].mxu0
        %3849 = vmatprep.mubr.f32.mxu0 0.0
        %3850 = vmatmul.mubr.f32.gmra.mrb[0].mxu0 %v3736
        %v3851 = vpop.f32.mrb[0].mxu0
        %v3852 = vadd.f32 0.0, %v3851
        %v3853 = vpop.f32.mrb[0].mxu0
        %3854 = vmatprep.mubr.f32.mxu0 0.0
        %3855 = vmatmul.mubr.f32.gmra.mrb[0].mxu0 %v3737
        %v3856 = vpop.f32.mrb[0].mxu0
        %v3857 = vadd.f32 0.0, %v3856
        %v3858 = vpop.f32.mrb[0].mxu0
        %3859 = vmatprep.mubr.f32.mxu0 0.0
        %3860 = vmatmul.mubr.f32.gmra.mrb[0].mxu0 %v3738
        %v3861 = vpop.f32.mrb[0].mxu0
        %v3862 = vadd.f32 0.0, %v3861
        %v3863 = vpop.f32.mrb[0].mxu0
        %3864 = vmatprep.mubr.f32.mxu0 0.0
        %3865 = vmatmul.mubr.f32.gmra.mrb[0].mxu0 %v3739
        %v3866 = vpop.f32.mrb[0].mxu0
        %v3867 = vadd.f32 0.0, %v3866
        %v3868 = vpop.f32.mrb[0].mxu0
        %3869 = vmatprep.mubr.f32.mxu0 0.0
        %3870 = vmatmul.mubr.f32.gmra.mrb[0].mxu0 %v3740
        %v3871 = vpop.f32.mrb[0].mxu0
        %v3872 = vadd.f32 0.0, %v3871
        %v3873 = vpop.f32.mrb[0].mxu0
        %3874 = vmatprep.mubr.f32.mxu0 0.0
        %3875 = vmatmul.mubr.f32.gmra.mrb[0].mxu0 %v3741
        %v3876 = vpop.f32.mrb[0].mxu0
        %v3877 = vadd.f32 0.0, %v3876
        %v3878 = vpop.f32.mrb[0].mxu0
        %3879 = vmatprep.mubr.f32.mxu0 0.0
        %3880 = vmatmul.mubr.f32.gmra.mrb[0].mxu0 %v3742
        %v3881 = vpop.f32.mrb[0].mxu0
        %v3882 = vadd.f32 0.0, %v3881
        %v3883 = vpop.f32.mrb[0].mxu0
        %3884 = vmatprep.mubr.f32.mxu0 0.0
        %3885 = vmatmul.mubr.f32.gmra.mrb[0].mxu0 %v3743
        %v3886 = vpop.f32.mrb[0].mxu0
        %v3887 = vadd.f32 0.0, %v3886
        %v3888 = vpop.f32.mrb[0].mxu0
        %3889 = vmatprep.mubr.f32.mxu0 0.0
        %3890 = vmatmul.mubr.f32.gmra.mrb[0].mxu0 %v3744
        %v3891 = vpop.f32.mrb[0].mxu0
        %v3892 = vadd.f32 0.0, %v3891
        %v3893 = vpop.f32.mrb[0].mxu0
        %3894 = vmatprep.mubr.f32.mxu0 0.0
        %3895 = vmatmul.mubr.f32.gmra.mrb[0].mxu0 %v3745
        %v3896 = vpop.f32.mrb[0].mxu0
        %v3897 = vadd.f32 0.0, %v3896
        %v3898 = vpop.f32.mrb[0].mxu0
        %3899 = vmatprep.mubr.f32.mxu0 0.0
        %3900 = vmatmul.mubr.f32.gmra.mrb[0].mxu0 %v3746
        %v3901 = vpop.f32.mrb[0].mxu0
        %v3902 = vadd.f32 0.0, %v3901
        %v3903 = vpop.f32.mrb[0].mxu0
        %3904 = vmatprep.mubr.f32.mxu0 0.0
        %3905 = vmatmul.mubr.f32.gmra.mrb[0].mxu0 %v3747
        %v3906 = vpop.f32.mrb[0].mxu0
        %v3907 = vadd.f32 0.0, %v3906
        %v3908 = vpop.f32.mrb[0].mxu0
        %3909 = vdwg.mxu0
        %v3910 = vadd.f32 %v3715, %v3832
        %v3911 = vadd.f32 %v3716, %v3837
        %v3912 = vadd.f32 %v3717, %v3842
        %v3913 = vadd.f32 %v3718, %v3847
        %v3914 = vadd.f32 %v3719, %v3852
        %v3915 = vadd.f32 %v3720, %v3857
        %v3916 = vadd.f32 %v3721, %v3862
        %v3917 = vadd.f32 %v3722, %v3867
        %v3918 = vadd.f32 %v3723, %v3872
        %v3919 = vadd.f32 %v3724, %v3877
        %v3920 = vadd.f32 %v3725, %v3882
        %v3921 = vadd.f32 %v3726, %v3887
        %v3922 = vadd.f32 %v3727, %v3892
        %v3923 = vadd.f32 %v3728, %v3897
        %v3924 = vadd.f32 %v3729, %v3902
        %v3925 = vadd.f32 %v3730, %v3907
        %v3926 = vld [vmem:[%s3731 + $0x1] sm:$0xff]
        %v3927 = vld [vmem:[%s3731 + $0x9] sm:$0xff]
        %v3928 = vld [vmem:[%s3731 + $0x19] sm:$0xff]
        %v3929 = vld [vmem:[%s3731 + $0x21] sm:$0xff]
        %v3930 = vld [vmem:[%s3731 + $0x31] sm:$0xff]
        %v3931 = vld [vmem:[%s3731 + $0x39] sm:$0xff]
        %v3932 = vld [vmem:[%s3731 + $0x49] sm:$0xff]
        %v3933 = vld [vmem:[%s3731 + $0x51] sm:$0xff]
        %v3934 = vld [vmem:[%s3731 + $0x61] sm:$0xff]
        %v3935 = vld [vmem:[%s3731 + $0x69] sm:$0xff]
        %v3936 = vld [vmem:[%s3731 + $0x79] sm:$0xff]
        %v3937 = vld [vmem:[%s3731 + $0x81] sm:$0xff]
        %v3938 = vld [vmem:[%s3731 + $0x91] sm:$0xff]
        %v3939 = vld [vmem:[%s3731 + $0x99] sm:$0xff]
        %v3940 = vld [vmem:[%s3731 + $0xa9] sm:$0xff]
        %v3941 = vld [vmem:[%s3731 + $0xb1] sm:$0xff]
        %s3942 = scalar_lea.vmem [#allocation4], 896
        %v3943 = vld [vmem:[%s3942] sm:$0xff]
        %v3944 = vld [vmem:[%s3942 + $0x8] sm:$0xff]
        %v3945 = vld [vmem:[%s3942 + $0x10] sm:$0xff]
        %v3946 = vld [vmem:[%s3942 + $0x18] sm:$0xff]
        %v3947 = vld [vmem:[%s3942 + $0x20] sm:$0xff]
        %v3948 = vld [vmem:[%s3942 + $0x28] sm:$0xff]
        %v3949 = vld [vmem:[%s3942 + $0x30] sm:$0xff]
        %v3950 = vld [vmem:[%s3942 + $0x38] sm:$0xff]
        %v3951 = vld [vmem:[%s3942 + $0x40] sm:$0xff]
        %v3952 = vld [vmem:[%s3942 + $0x48] sm:$0xff]
        %v3953 = vld [vmem:[%s3942 + $0x50] sm:$0xff]
        %v3954 = vld [vmem:[%s3942 + $0x58] sm:$0xff]
        %v3955 = vld [vmem:[%s3942 + $0x60] sm:$0xff]
        %v3956 = vld [vmem:[%s3942 + $0x68] sm:$0xff]
        %v3957 = vld [vmem:[%s3942 + $0x70] sm:$0xff]
        %v3958 = vld [vmem:[%s3942 + $0x78] sm:$0xff]
        %3959 = vmatprep.subr.mxu0 0.0
        %3960 = vmatpush1.msra.mxu0 %v3943
        %3961 = vmatprep.subr.mxu0 0.0
        %3962 = vmatpush1.msra.mxu0 %v3944
        %3963 = vmatprep.subr.mxu0 0.0
        %3964 = vmatpush1.msra.mxu0 %v3945
        %3965 = vmatprep.subr.mxu0 0.0
        %3966 = vmatpush1.msra.mxu0 %v3946
        %3967 = vmatprep.subr.mxu0 0.0
        %3968 = vmatpush1.msra.mxu0 %v3947
        %3969 = vmatprep.subr.mxu0 0.0
        %3970 = vmatpush1.msra.mxu0 %v3948
        %3971 = vmatprep.subr.mxu0 0.0
        %3972 = vmatpush1.msra.mxu0 %v3949
        %3973 = vmatprep.subr.mxu0 0.0
        %3974 = vmatpush1.msra.mxu0 %v3950
        %3975 = vmatprep.subr.mxu0 0.0
        %3976 = vmatpush1.msra.mxu0 %v3951
        %3977 = vmatprep.subr.mxu0 0.0
        %3978 = vmatpush1.msra.mxu0 %v3952
        %3979 = vmatprep.subr.mxu0 0.0
        %3980 = vmatpush1.msra.mxu0 %v3953
        %3981 = vmatprep.subr.mxu0 0.0
        %3982 = vmatpush1.msra.mxu0 %v3954
        %3983 = vmatprep.subr.mxu0 0.0
        %3984 = vmatpush1.msra.mxu0 %v3955
        %3985 = vmatprep.subr.mxu0 0.0
        %3986 = vmatpush1.msra.mxu0 %v3956
        %3987 = vmatprep.subr.mxu0 0.0
        %3988 = vmatpush1.msra.mxu0 %v3957
        %3989 = vmatprep.subr.mxu0 0.0
        %3990 = vmatpush1.msra.mxu0 %v3958
        %3991 = vmatprep.subr.mxu0 0.0
        %3992 = vmatpush1.msra.mxu0 0.0
        %3993 = vmatprep.subr.mxu0 0.0
        %3994 = vmatpush1.msra.mxu0 0.0
        %3995 = vmatprep.subr.mxu0 0.0
        %3996 = vmatpush1.msra.mxu0 0.0
        %3997 = vmatprep.subr.mxu0 0.0
        %3998 = vmatpush1.msra.mxu0 0.0
        %3999 = vmatprep.subr.mxu0 0.0
        %4000 = vmatpush1.msra.mxu0 0.0
        %4001 = vmatprep.subr.mxu0 0.0
        %4002 = vmatpush1.msra.mxu0 0.0
        %4003 = vmatprep.subr.mxu0 0.0
        %4004 = vmatpush1.msra.mxu0 0.0
        %4005 = vmatprep.subr.mxu0 0.0
        %4006 = vmatpush1.msra.mxu0 0.0
        %4007 = vmatprep.subr.mxu0 0.0
        %4008 = vmatpush1.msra.mxu0 0.0
        %4009 = vmatprep.subr.mxu0 0.0
        %4010 = vmatpush1.msra.mxu0 0.0
        %4011 = vmatprep.subr.mxu0 0.0
        %4012 = vmatpush1.msra.mxu0 0.0
        %4013 = vmatprep.subr.mxu0 0.0
        %4014 = vmatpush1.msra.mxu0 0.0
        %4015 = vmatprep.subr.mxu0 0.0
        %4016 = vmatpush1.msra.mxu0 0.0
        %4017 = vmatprep.subr.mxu0 0.0
        %4018 = vmatpush1.msra.mxu0 0.0
        %4019 = vmatprep.subr.mxu0 0.0
        %4020 = vmatpush1.msra.mxu0 0.0
        %4021 = vmatprep.subr.mxu0 0.0
        %4022 = vmatpush1.msra.mxu0 0.0
        %4023 = vmatprep.mubr.f32.mxu0 0.0
        %4024 = vmatmul.mubr.f32.gmra.mrb[0].mxu0 %v3926
        %v4025 = vpop.f32.mrb[0].mxu0
        %v4026 = vadd.f32 0.0, %v4025
        %v4027 = vpop.f32.mrb[0].mxu0
        %4028 = vmatprep.mubr.f32.mxu0 0.0
        %4029 = vmatmul.mubr.f32.gmra.mrb[0].mxu0 %v3927
        %v4030 = vpop.f32.mrb[0].mxu0
        %v4031 = vadd.f32 0.0, %v4030
        %v4032 = vpop.f32.mrb[0].mxu0
        %4033 = vmatprep.mubr.f32.mxu0 0.0
        %4034 = vmatmul.mubr.f32.gmra.mrb[0].mxu0 %v3928
        %v4035 = vpop.f32.mrb[0].mxu0
        %v4036 = vadd.f32 0.0, %v4035
        %v4037 = vpop.f32.mrb[0].mxu0
        %4038 = vmatprep.mubr.f32.mxu0 0.0
        %4039 = vmatmul.mubr.f32.gmra.mrb[0].mxu0 %v3929
        %v4040 = vpop.f32.mrb[0].mxu0
        %v4041 = vadd.f32 0.0, %v4040
        %v4042 = vpop.f32.mrb[0].mxu0
        %4043 = vmatprep.mubr.f32.mxu0 0.0
        %4044 = vmatmul.mubr.f32.gmra.mrb[0].mxu0 %v3930
        %v4045 = vpop.f32.mrb[0].mxu0
        %v4046 = vadd.f32 0.0, %v4045
        %v4047 = vpop.f32.mrb[0].mxu0
        %4048 = vmatprep.mubr.f32.mxu0 0.0
        %4049 = vmatmul.mubr.f32.gmra.mrb[0].mxu0 %v3931
        %v4050 = vpop.f32.mrb[0].mxu0
        %v4051 = vadd.f32 0.0, %v4050
        %v4052 = vpop.f32.mrb[0].mxu0
        %4053 = vmatprep.mubr.f32.mxu0 0.0
        %4054 = vmatmul.mubr.f32.gmra.mrb[0].mxu0 %v3932
        %v4055 = vpop.f32.mrb[0].mxu0
        %v4056 = vadd.f32 0.0, %v4055
        %v4057 = vpop.f32.mrb[0].mxu0
        %4058 = vmatprep.mubr.f32.mxu0 0.0
        %4059 = vmatmul.mubr.f32.gmra.mrb[0].mxu0 %v3933
        %v4060 = vpop.f32.mrb[0].mxu0
        %v4061 = vadd.f32 0.0, %v4060
        %v4062 = vpop.f32.mrb[0].mxu0
        %4063 = vmatprep.mubr.f32.mxu0 0.0
        %4064 = vmatmul.mubr.f32.gmra.mrb[0].mxu0 %v3934
        %v4065 = vpop.f32.mrb[0].mxu0
        %v4066 = vadd.f32 0.0, %v4065
        %v4067 = vpop.f32.mrb[0].mxu0
        %4068 = vmatprep.mubr.f32.mxu0 0.0
        %4069 = vmatmul.mubr.f32.gmra.mrb[0].mxu0 %v3935
        %v4070 = vpop.f32.mrb[0].mxu0
        %v4071 = vadd.f32 0.0, %v4070
        %v4072 = vpop.f32.mrb[0].mxu0
        %4073 = vmatprep.mubr.f32.mxu0 0.0
        %4074 = vmatmul.mubr.f32.gmra.mrb[0].mxu0 %v3936
        %v4075 = vpop.f32.mrb[0].mxu0
        %v4076 = vadd.f32 0.0, %v4075
        %v4077 = vpop.f32.mrb[0].mxu0
        %4078 = vmatprep.mubr.f32.mxu0 0.0
        %4079 = vmatmul.mubr.f32.gmra.mrb[0].mxu0 %v3937
        %v4080 = vpop.f32.mrb[0].mxu0
        %v4081 = vadd.f32 0.0, %v4080
        %v4082 = vpop.f32.mrb[0].mxu0
        %4083 = vmatprep.mubr.f32.mxu0 0.0
        %4084 = vmatmul.mubr.f32.gmra.mrb[0].mxu0 %v3938
        %v4085 = vpop.f32.mrb[0].mxu0
        %v4086 = vadd.f32 0.0, %v4085
        %v4087 = vpop.f32.mrb[0].mxu0
        %4088 = vmatprep.mubr.f32.mxu0 0.0
        %4089 = vmatmul.mubr.f32.gmra.mrb[0].mxu0 %v3939
        %v4090 = vpop.f32.mrb[0].mxu0
        %v4091 = vadd.f32 0.0, %v4090
        %v4092 = vpop.f32.mrb[0].mxu0
        %4093 = vmatprep.mubr.f32.mxu0 0.0
        %4094 = vmatmul.mubr.f32.gmra.mrb[0].mxu0 %v3940
        %v4095 = vpop.f32.mrb[0].mxu0
        %v4096 = vadd.f32 0.0, %v4095
        %v4097 = vpop.f32.mrb[0].mxu0
        %4098 = vmatprep.mubr.f32.mxu0 0.0
        %4099 = vmatmul.mubr.f32.gmra.mrb[0].mxu0 %v3941
        %v4100 = vpop.f32.mrb[0].mxu0
        %v4101 = vadd.f32 0.0, %v4100
        %v4102 = vpop.f32.mrb[0].mxu0
        %4103 = vdwg.mxu0
        %v4104 = vadd.f32 %v3910, %v4026
        %v4105 = vadd.f32 %v3911, %v4031
        %v4106 = vadd.f32 %v3912, %v4036
        %v4107 = vadd.f32 %v3913, %v4041
        %v4108 = vadd.f32 %v3914, %v4046
        %v4109 = vadd.f32 %v3915, %v4051
        %v4110 = vadd.f32 %v3916, %v4056
        %v4111 = vadd.f32 %v3917, %v4061
        %v4112 = vadd.f32 %v3918, %v4066
        %v4113 = vadd.f32 %v3919, %v4071
        %v4114 = vadd.f32 %v3920, %v4076
        %v4115 = vadd.f32 %v3921, %v4081
        %v4116 = vadd.f32 %v3922, %v4086
        %v4117 = vadd.f32 %v3923, %v4091
        %v4118 = vadd.f32 %v3924, %v4096
        %v4119 = vadd.f32 %v3925, %v4101
        %v4120 = vld [vmem:[%s3731 + $0x2] sm:$0xff]
        %v4121 = vld [vmem:[%s3731 + $0xa] sm:$0xff]
        %v4122 = vld [vmem:[%s3731 + $0x1a] sm:$0xff]
        %v4123 = vld [vmem:[%s3731 + $0x22] sm:$0xff]
        %v4124 = vld [vmem:[%s3731 + $0x32] sm:$0xff]
        %v4125 = vld [vmem:[%s3731 + $0x3a] sm:$0xff]
        %v4126 = vld [vmem:[%s3731 + $0x4a] sm:$0xff]
        %v4127 = vld [vmem:[%s3731 + $0x52] sm:$0xff]
        %v4128 = vld [vmem:[%s3731 + $0x62] sm:$0xff]
        %v4129 = vld [vmem:[%s3731 + $0x6a] sm:$0xff]
        %v4130 = vld [vmem:[%s3731 + $0x7a] sm:$0xff]
        %v4131 = vld [vmem:[%s3731 + $0x82] sm:$0xff]
        %v4132 = vld [vmem:[%s3731 + $0x92] sm:$0xff]
        %v4133 = vld [vmem:[%s3731 + $0x9a] sm:$0xff]
        %v4134 = vld [vmem:[%s3731 + $0xaa] sm:$0xff]
        %v4135 = vld [vmem:[%s3731 + $0xb2] sm:$0xff]
        %s4136 = scalar_lea.vmem [#allocation4], 1024
        %v4137 = vld [vmem:[%s4136] sm:$0xff]
        %v4138 = vld [vmem:[%s4136 + $0x8] sm:$0xff]
        %v4139 = vld [vmem:[%s4136 + $0x10] sm:$0xff]
        %v4140 = vld [vmem:[%s4136 + $0x18] sm:$0xff]
        %v4141 = vld [vmem:[%s4136 + $0x20] sm:$0xff]
        %v4142 = vld [vmem:[%s4136 + $0x28] sm:$0xff]
        %v4143 = vld [vmem:[%s4136 + $0x30] sm:$0xff]
        %v4144 = vld [vmem:[%s4136 + $0x38] sm:$0xff]
        %v4145 = vld [vmem:[%s4136 + $0x40] sm:$0xff]
        %v4146 = vld [vmem:[%s4136 + $0x48] sm:$0xff]
        %v4147 = vld [vmem:[%s4136 + $0x50] sm:$0xff]
        %v4148 = vld [vmem:[%s4136 + $0x58] sm:$0xff]
        %v4149 = vld [vmem:[%s4136 + $0x60] sm:$0xff]
        %v4150 = vld [vmem:[%s4136 + $0x68] sm:$0xff]
        %v4151 = vld [vmem:[%s4136 + $0x70] sm:$0xff]
        %v4152 = vld [vmem:[%s4136 + $0x78] sm:$0xff]
        %4153 = vmatprep.subr.mxu0 0.0
        %4154 = vmatpush1.msra.mxu0 %v4137
        %4155 = vmatprep.subr.mxu0 0.0
        %4156 = vmatpush1.msra.mxu0 %v4138
        %4157 = vmatprep.subr.mxu0 0.0
        %4158 = vmatpush1.msra.mxu0 %v4139
        %4159 = vmatprep.subr.mxu0 0.0
        %4160 = vmatpush1.msra.mxu0 %v4140
        %4161 = vmatprep.subr.mxu0 0.0
        %4162 = vmatpush1.msra.mxu0 %v4141
        %4163 = vmatprep.subr.mxu0 0.0
        %4164 = vmatpush1.msra.mxu0 %v4142
        %4165 = vmatprep.subr.mxu0 0.0
        %4166 = vmatpush1.msra.mxu0 %v4143
        %4167 = vmatprep.subr.mxu0 0.0
        %4168 = vmatpush1.msra.mxu0 %v4144
        %4169 = vmatprep.subr.mxu0 0.0
        %4170 = vmatpush1.msra.mxu0 %v4145
        %4171 = vmatprep.subr.mxu0 0.0
        %4172 = vmatpush1.msra.mxu0 %v4146
        %4173 = vmatprep.subr.mxu0 0.0
        %4174 = vmatpush1.msra.mxu0 %v4147
        %4175 = vmatprep.subr.mxu0 0.0
        %4176 = vmatpush1.msra.mxu0 %v4148
        %4177 = vmatprep.subr.mxu0 0.0
        %4178 = vmatpush1.msra.mxu0 %v4149
        %4179 = vmatprep.subr.mxu0 0.0
        %4180 = vmatpush1.msra.mxu0 %v4150
        %4181 = vmatprep.subr.mxu0 0.0
        %4182 = vmatpush1.msra.mxu0 %v4151
        %4183 = vmatprep.subr.mxu0 0.0
        %4184 = vmatpush1.msra.mxu0 %v4152
        %4185 = vmatprep.subr.mxu0 0.0
        %4186 = vmatpush1.msra.mxu0 0.0
        %4187 = vmatprep.subr.mxu0 0.0
        %4188 = vmatpush1.msra.mxu0 0.0
        %4189 = vmatprep.subr.mxu0 0.0
        %4190 = vmatpush1.msra.mxu0 0.0
        %4191 = vmatprep.subr.mxu0 0.0
        %4192 = vmatpush1.msra.mxu0 0.0
        %4193 = vmatprep.subr.mxu0 0.0
        %4194 = vmatpush1.msra.mxu0 0.0
        %4195 = vmatprep.subr.mxu0 0.0
        %4196 = vmatpush1.msra.mxu0 0.0
        %4197 = vmatprep.subr.mxu0 0.0
        %4198 = vmatpush1.msra.mxu0 0.0
        %4199 = vmatprep.subr.mxu0 0.0
        %4200 = vmatpush1.msra.mxu0 0.0
        %4201 = vmatprep.subr.mxu0 0.0
        %4202 = vmatpush1.msra.mxu0 0.0
        %4203 = vmatprep.subr.mxu0 0.0
        %4204 = vmatpush1.msra.mxu0 0.0
        %4205 = vmatprep.subr.mxu0 0.0
        %4206 = vmatpush1.msra.mxu0 0.0
        %4207 = vmatprep.subr.mxu0 0.0
        %4208 = vmatpush1.msra.mxu0 0.0
        %4209 = vmatprep.subr.mxu0 0.0
        %4210 = vmatpush1.msra.mxu0 0.0
        %4211 = vmatprep.subr.mxu0 0.0
        %4212 = vmatpush1.msra.mxu0 0.0
        %4213 = vmatprep.subr.mxu0 0.0
        %4214 = vmatpush1.msra.mxu0 0.0
        %4215 = vmatprep.subr.mxu0 0.0
        %4216 = vmatpush1.msra.mxu0 0.0
        %4217 = vmatprep.mubr.f32.mxu0 0.0
        %4218 = vmatmul.mubr.f32.gmra.mrb[0].mxu0 %v4120
        %v4219 = vpop.f32.mrb[0].mxu0
        %v4220 = vadd.f32 0.0, %v4219
        %v4221 = vpop.f32.mrb[0].mxu0
        %4222 = vmatprep.mubr.f32.mxu0 0.0
        %4223 = vmatmul.mubr.f32.gmra.mrb[0].mxu0 %v4121
        %v4224 = vpop.f32.mrb[0].mxu0
        %v4225 = vadd.f32 0.0, %v4224
        %v4226 = vpop.f32.mrb[0].mxu0
        %4227 = vmatprep.mubr.f32.mxu0 0.0
        %4228 = vmatmul.mubr.f32.gmra.mrb[0].mxu0 %v4122
        %v4229 = vpop.f32.mrb[0].mxu0
        %v4230 = vadd.f32 0.0, %v4229
        %v4231 = vpop.f32.mrb[0].mxu0
        %4232 = vmatprep.mubr.f32.mxu0 0.0
        %4233 = vmatmul.mubr.f32.gmra.mrb[0].mxu0 %v4123
        %v4234 = vpop.f32.mrb[0].mxu0
        %v4235 = vadd.f32 0.0, %v4234
        %v4236 = vpop.f32.mrb[0].mxu0
        %4237 = vmatprep.mubr.f32.mxu0 0.0
        %4238 = vmatmul.mubr.f32.gmra.mrb[0].mxu0 %v4124
        %v4239 = vpop.f32.mrb[0].mxu0
        %v4240 = vadd.f32 0.0, %v4239
        %v4241 = vpop.f32.mrb[0].mxu0
        %4242 = vmatprep.mubr.f32.mxu0 0.0
        %4243 = vmatmul.mubr.f32.gmra.mrb[0].mxu0 %v4125
        %v4244 = vpop.f32.mrb[0].mxu0
        %v4245 = vadd.f32 0.0, %v4244
        %v4246 = vpop.f32.mrb[0].mxu0
        %4247 = vmatprep.mubr.f32.mxu0 0.0
        %4248 = vmatmul.mubr.f32.gmra.mrb[0].mxu0 %v4126
        %v4249 = vpop.f32.mrb[0].mxu0
        %v4250 = vadd.f32 0.0, %v4249
        %v4251 = vpop.f32.mrb[0].mxu0
        %4252 = vmatprep.mubr.f32.mxu0 0.0
        %4253 = vmatmul.mubr.f32.gmra.mrb[0].mxu0 %v4127
        %v4254 = vpop.f32.mrb[0].mxu0
        %v4255 = vadd.f32 0.0, %v4254
        %v4256 = vpop.f32.mrb[0].mxu0
        %4257 = vmatprep.mubr.f32.mxu0 0.0
        %4258 = vmatmul.mubr.f32.gmra.mrb[0].mxu0 %v4128
        %v4259 = vpop.f32.mrb[0].mxu0
        %v4260 = vadd.f32 0.0, %v4259
        %v4261 = vpop.f32.mrb[0].mxu0
        %4262 = vmatprep.mubr.f32.mxu0 0.0
        %4263 = vmatmul.mubr.f32.gmra.mrb[0].mxu0 %v4129
        %v4264 = vpop.f32.mrb[0].mxu0
        %v4265 = vadd.f32 0.0, %v4264
        %v4266 = vpop.f32.mrb[0].mxu0
        %4267 = vmatprep.mubr.f32.mxu0 0.0
        %4268 = vmatmul.mubr.f32.gmra.mrb[0].mxu0 %v4130
        %v4269 = vpop.f32.mrb[0].mxu0
        %v4270 = vadd.f32 0.0, %v4269
        %v4271 = vpop.f32.mrb[0].mxu0
        %4272 = vmatprep.mubr.f32.mxu0 0.0
        %4273 = vmatmul.mubr.f32.gmra.mrb[0].mxu0 %v4131
        %v4274 = vpop.f32.mrb[0].mxu0
        %v4275 = vadd.f32 0.0, %v4274
        %v4276 = vpop.f32.mrb[0].mxu0
        %4277 = vmatprep.mubr.f32.mxu0 0.0
        %4278 = vmatmul.mubr.f32.gmra.mrb[0].mxu0 %v4132
        %v4279 = vpop.f32.mrb[0].mxu0
        %v4280 = vadd.f32 0.0, %v4279
        %v4281 = vpop.f32.mrb[0].mxu0
        %4282 = vmatprep.mubr.f32.mxu0 0.0
        %4283 = vmatmul.mubr.f32.gmra.mrb[0].mxu0 %v4133
        %v4284 = vpop.f32.mrb[0].mxu0
        %v4285 = vadd.f32 0.0, %v4284
        %v4286 = vpop.f32.mrb[0].mxu0
        %4287 = vmatprep.mubr.f32.mxu0 0.0
        %4288 = vmatmul.mubr.f32.gmra.mrb[0].mxu0 %v4134
        %v4289 = vpop.f32.mrb[0].mxu0
        %v4290 = vadd.f32 0.0, %v4289
        %v4291 = vpop.f32.mrb[0].mxu0
        %4292 = vmatprep.mubr.f32.mxu0 0.0
        %4293 = vmatmul.mubr.f32.gmra.mrb[0].mxu0 %v4135
        %v4294 = vpop.f32.mrb[0].mxu0
        %v4295 = vadd.f32 0.0, %v4294
        %v4296 = vpop.f32.mrb[0].mxu0
        %4297 = vdwg.mxu0
        %v4298 = vadd.f32 %v4104, %v4220
        %v4299 = vadd.f32 %v4105, %v4225
        %v4300 = vadd.f32 %v4106, %v4230
        %v4301 = vadd.f32 %v4107, %v4235
        %v4302 = vadd.f32 %v4108, %v4240
        %v4303 = vadd.f32 %v4109, %v4245
        %v4304 = vadd.f32 %v4110, %v4250
        %v4305 = vadd.f32 %v4111, %v4255
        %v4306 = vadd.f32 %v4112, %v4260
        %v4307 = vadd.f32 %v4113, %v4265
        %v4308 = vadd.f32 %v4114, %v4270
        %v4309 = vadd.f32 %v4115, %v4275
        %v4310 = vadd.f32 %v4116, %v4280
        %v4311 = vadd.f32 %v4117, %v4285
        %v4312 = vadd.f32 %v4118, %v4290
        %v4313 = vadd.f32 %v4119, %v4295
        %v4314 = vld [vmem:[%s6] sm:$0x1]
        %v4316 = vlaneseq
        %v4317 = vshrl.u32 %v4316, 7
        %v4318 = vsub.s32 0, %v4317
        %v4319 = vrot.slane %v4314, %v4318
        %v4321 = vadd.f32 %v4298, %v4319
        %v4322 = vadd.f32 %v4299, %v4319
        %v4323 = vadd.f32 %v4300, %v4319
        %v4324 = vadd.f32 %v4301, %v4319
        %v4325 = vadd.f32 %v4302, %v4319
        %v4326 = vadd.f32 %v4303, %v4319
        %v4327 = vadd.f32 %v4304, %v4319
        %v4328 = vadd.f32 %v4305, %v4319
        %v4329 = vadd.f32 %v4306, %v4319
        %v4330 = vadd.f32 %v4307, %v4319
        %v4331 = vadd.f32 %v4308, %v4319
        %v4332 = vadd.f32 %v4309, %v4319
        %v4333 = vadd.f32 %v4310, %v4319
        %v4334 = vadd.f32 %v4311, %v4319
        %v4335 = vadd.f32 %v4312, %v4319
        %v4336 = vadd.f32 %v4313, %v4319
        %s4337 = scalar_lea.vmem %s319, 48
        %v4338 = vld [vmem:[%s4337 + $0x1] sm:$0xff]
        %v4339 = vld [vmem:[%s4337 + $0x9] sm:$0xff]
        %v4340 = vld [vmem:[%s4337 + $0x19] sm:$0xff]
        %v4341 = vld [vmem:[%s4337 + $0x21] sm:$0xff]
        %v4342 = vld [vmem:[%s4337 + $0x31] sm:$0xff]
        %v4343 = vld [vmem:[%s4337 + $0x39] sm:$0xff]
        %v4344 = vld [vmem:[%s4337 + $0x49] sm:$0xff]
        %v4345 = vld [vmem:[%s4337 + $0x51] sm:$0xff]
        %v4346 = vld [vmem:[%s4337 + $0x61] sm:$0xff]
        %v4347 = vld [vmem:[%s4337 + $0x69] sm:$0xff]
        %v4348 = vld [vmem:[%s4337 + $0x79] sm:$0xff]
        %v4349 = vld [vmem:[%s4337 + $0x81] sm:$0xff]
        %v4350 = vld [vmem:[%s4337 + $0x91] sm:$0xff]
        %v4351 = vld [vmem:[%s4337 + $0x99] sm:$0xff]
        %v4352 = vld [vmem:[%s4337 + $0xa9] sm:$0xff]
        %v4353 = vld [vmem:[%s4337 + $0xb1] sm:$0xff]
        %v4354 = vadd.f32 %v4338, %v4321
        %v4355 = vadd.f32 %v4339, %v4322
        %v4356 = vadd.f32 %v4340, %v4323
        %v4357 = vadd.f32 %v4341, %v4324
        %v4358 = vadd.f32 %v4342, %v4325
        %v4359 = vadd.f32 %v4343, %v4326
        %v4360 = vadd.f32 %v4344, %v4327
        %v4361 = vadd.f32 %v4345, %v4328
        %v4362 = vadd.f32 %v4346, %v4329
        %v4363 = vadd.f32 %v4347, %v4330
        %v4364 = vadd.f32 %v4348, %v4331
        %v4365 = vadd.f32 %v4349, %v4332
        %v4366 = vadd.f32 %v4350, %v4333
        %v4367 = vadd.f32 %v4351, %v4334
        %v4368 = vadd.f32 %v4352, %v4335
        %v4369 = vadd.f32 %v4353, %v4336
        %4370 = vst [vmem:[%s310] sm:$0xff] %v4354
        %4371 = vst [vmem:[%s310 + $0x8] sm:$0xff] %v4355
        %4372 = vst [vmem:[%s310 + $0x10] sm:$0xff] %v4356
        %4373 = vst [vmem:[%s310 + $0x18] sm:$0xff] %v4357
        %4374 = vst [vmem:[%s310 + $0x20] sm:$0xff] %v4358
        %4375 = vst [vmem:[%s310 + $0x28] sm:$0xff] %v4359
        %4376 = vst [vmem:[%s310 + $0x30] sm:$0xff] %v4360
        %4377 = vst [vmem:[%s310 + $0x38] sm:$0xff] %v4361
        %4378 = vst [vmem:[%s310 + $0x40] sm:$0xff] %v4362
        %4379 = vst [vmem:[%s310 + $0x48] sm:$0xff] %v4363
        %4380 = vst [vmem:[%s310 + $0x50] sm:$0xff] %v4364
        %4381 = vst [vmem:[%s310 + $0x58] sm:$0xff] %v4365
        %4382 = vst [vmem:[%s310 + $0x60] sm:$0xff] %v4366
        %4383 = vst [vmem:[%s310 + $0x68] sm:$0xff] %v4367
        %4384 = vst [vmem:[%s310 + $0x70] sm:$0xff] %v4368
        %4385 = vst [vmem:[%s310 + $0x78] sm:$0xff] %v4369
        %s4386 = sand.u32 %s198, 1
        %s4387 = scalar_lea.sflag [#allocation6], %s4386
        %s4388 = sand.u32 %s198, 1
        %s4389 = smul.addr %s4388, 128
        %s4390 = scalar_lea.vmem [#allocation7], %s4389
        // Predicated region
        $region69: #{tpu_custom_call.1} parent=47 // pred_check
          %p4391 = pneg %p208
        $region70: #{tpu_custom_call.1} parent=47 // pred_check_branch
          %4393 = sbr.rel (%p4391) target = $region72
        $region71: #{tpu_custom_call.1} parent=47 // pred_region
          %s4394 = smul.u32 8, %s27
          %s4396 = ssub.s32 2048, 2048
          %4397 = vsyncadd %s4387, %s4396
          %s4398 = smul.addr %s4394, 2
          %s4399 = smul.addr %s26, 32
          %s4400 = sadd.s32 %s4398, %s4399
          %s4401 = smul.addr %s4400, 128
          %s4402 = scalar_lea.hbm %s7, %s4401
          %s4403 = sshll.u32 %s4390, 4
          %s4404 = int_to_ptr.vmem [resolvable:$true] %s4403
          %4409 = dma.vmem_to_hbm [thread:$0]  %s4404, 2048, %s4402, %s4387, 128, 128, 8
        $region72: #{tpu_custom_call.1} parent=47 // pred_fallthru
          _
      $region48: #{tpu_custom_call.1} parent=5 // pred_fallthru
        _
      %p4410 = scmp.le.s32.totalorder 2, %s17
      // Predicated region
      $region73: #{tpu_custom_call.1} parent=5 // pred_check
        %p4411 = pneg %p4410
      $region74: #{tpu_custom_call.1} parent=5 // pred_check_branch
        %4413 = sbr.rel (%p4411) target = $region76
      $region75: #{tpu_custom_call.1} parent=5 // pred_region
        %s4414 = ssub.s32 %s17, 2
        // Predicated region
        $region77: #{tpu_custom_call.1} parent=75 // pred_check
          %p4415 = pneg %p214
        $region78: #{tpu_custom_call.1} parent=75 // pred_check_branch
          %4417 = sbr.rel (%p4415) target = $region80
        $region79: #{tpu_custom_call.1} parent=75 // pred_region
          %s4418 = sand.u32 %s199, 1
          %s4419 = scalar_lea.sflag [#allocation6], %s4418
          %s4420 = sand.u32 %s199, 1
          %s4421 = smul.addr %s4420, 128
          %s4422 = scalar_lea.vmem [#allocation7], %s4421
          %4423 = dma.done %s4419, 2048
        $region80: #{tpu_custom_call.1} parent=75 // pred_fallthru
          _
      $region76: #{tpu_custom_call.1} parent=5 // pred_fallthru
        _
    $region6: #{tpu_custom_call.1} parent=1 // loop_footer
      %s21 = sadd.s32 1, %s17
    $region7: #{tpu_custom_call.1} parent=1 // loop_footer_branch
      %16 = sbr.rel target = $region3
    $region8: #{tpu_custom_call.1} parent=1 // loop_exit
      _
    %4424 = vsyncpa [#allocation5], 1
    %s4425 = scalar_lea.sflag [#allocation5], 1
    %4426 = vsyncpa %s4425, 1
    %4427 = vsyncpa [#allocation6], 1
    %s4428 = scalar_lea.sflag [#allocation6], 1
    %4429 = vsyncpa %s4428, 1

</llo_original>
